<compile_context>
chip_gen: v7x
topology: tpu7x:2x2x1
jax: 0.10.0
libtpu: 0.0.40
codegen_flags: <defaults>
</compile_context>

<pallas_src>
import functools

import numpy as np
import jax
import jax.numpy as jnp
from jax import lax
from jax.experimental import pallas as pl


# ----------------------------------------------------------------------------
# Config (cifar100 / resnet20 branch of MYNET)
# ----------------------------------------------------------------------------
ARGS = dict(
    dataset='cifar100',
    num_features=64,      # resnet20 branch
    token_dim=16,
    q_dim=16,
    v_dim=16,
    num_classes=10,
    moco_dim=32,
    moco_t=0.07,
    temperature=16.0,
)
ATTEN_FEATURES = ARGS['num_features'] // ARGS['token_dim'] * ARGS['v_dim']  # 64
LANE = 128


# ----------------------------------------------------------------------------
# Small in-kernel helpers
# ----------------------------------------------------------------------------
def _dot_t(x, w):
    # y = x @ w.T   (torch F.linear / nn.Linear(bias=False)), fp32 accumulate.
    return lax.dot_general(
        x, w, dimension_numbers=(((1,), (1,)), ((), ())),
        preferred_element_type=jnp.float32)


def _l2_normalize(x):
    # F.normalize(x, p=2, dim=-1) via rsqrt (EUP slot) instead of sqrt+divide.
    return x * lax.rsqrt(jnp.sum(x * x, axis=-1, keepdims=True) + 1e-24)


# ----------------------------------------------------------------------------
# Single fused forward kernel for the training branch
#   encode(im_cla|im_q|im_k) -> projector(q,k) -> cosine heads (+ text branch)
# All intermediates stay in VMEM/vregs; one lane-dense (B, 128) packed output.
# ----------------------------------------------------------------------------
def _fused_forward_kernel(x_ref, text_ref, wbig_ref, wtext_ref, segs_ref,
                          bones_ref, selw_ref, sego_ref, proj1_ref, proj2_ref,
                          fc_ref, o_ref, *, b, a_dim, q_off, exp_dim,
                          temperature, inv_moco_t, out_pad):
    # ---- one big MXU matmul: pool + backbone stubs + fc_clip + q/k/v + pair
    #      expansion are all folded into wbig (built once in init_params). ----
    y = jnp.dot(x_ref[...], wbig_ref[...], preferred_element_type=jnp.float32)
    image_feature = y[:, :a_dim]                       # (rows, A)
    q_exp = y[:, q_off:q_off + exp_dim]                # (rows, n*n*q_dim)
    k_exp = y[:, q_off + exp_dim:q_off + 2 * exp_dim]
    v_exp = y[:, q_off + 2 * exp_dim:q_off + 3 * exp_dim]

    # ---- self-attention: segmented reductions done on the MXU with constant
    #      selector matrices; only exp / reciprocal on the EUP/VPU. -----------
    # scores s[:, i*n+j] = scale * q_i . k_j   (scale folded into segs)
    s = jnp.dot(q_exp * k_exp, segs_ref[...],
                preferred_element_type=jnp.float32)    # (rows, n*n)
    # Softmax over each group of n key lanes.  Max-subtraction dropped: softmax
    # is shift invariant and scores here are tiny/bounded.
    # TODO(synk): restore a segmented max (via a selector matmul) if score
    # magnitudes ever grow enough to overflow exp.
    p = jnp.exp(s)
    denom = jnp.dot(p, bones_ref[...],
                    preferred_element_type=jnp.float32)   # per-group sum, bcast
    attn_w = p * pl.reciprocal(denom, approx=True)
    w_exp = jnp.dot(attn_w, selw_ref[...],
                    preferred_element_type=jnp.float32)   # (rows, n*n*v_dim)
    attn = jnp.dot(w_exp * v_exp, sego_ref[...],
                   preferred_element_type=jnp.float32)    # (rows, A)

    # ---- fusion -------------------------------------------------------------
    fu = (image_feature + attn) * 0.5                  # (rows, A)

    # ---- projector (Linear -> ReLU -> Linear) on ALL rows (no pre-matmul row
    #      slicing); q/k rows are sliced afterwards. --------------------------
    h = jnp.maximum(_dot_t(fu, proj1_ref[...]), 0.0)
    proj = _dot_t(h, proj2_ref[...])                   # (rows, moco_dim)
    proj_n = _l2_normalize(proj)
    x1 = inv_moco_t * lax.dot_general(                 # (b, b) MoCo logits
        proj_n[b:2 * b, :], proj_n[2 * b:3 * b, :],
        dimension_numbers=(((1,), (1,)), ((), ())),
        preferred_element_type=jnp.float32)

    # ---- cosine heads: text branch fused (tfeat = text @ (fc_clip@clip_txt).T)
    #      and the fc / tfeat heads share a single matmul. --------------------
    tfeat = _dot_t(text_ref[...], wtext_ref[...])      # (num_classes, A)
    heads = _l2_normalize(jnp.concatenate([fc_ref[...], tfeat], axis=0))
    fu_n = _l2_normalize(fu)
    logits = temperature * _dot_t(fu_n, heads)         # (rows, 2C + C)

    # ---- pack everything into one lane-dense 128-wide slab ------------------
    o_ref[...] = jnp.concatenate(
        [logits[:b, :], x1, jnp.zeros((b, out_pad), jnp.float32)], axis=-1)


# ----------------------------------------------------------------------------
# Parameters: raw MYNET weights + all folded / constant kernel weights.
# ----------------------------------------------------------------------------
def init_params(key, c=3, h=16, w=16):
    ks = jax.random.split(key, 10)
    s = 0.02
    nfeat = ARGS['num_features']
    A = ATTEN_FEATURES
    raw = {
        # MYNET's own parameters
        'fc':       s * jax.random.normal(ks[0], (ARGS['num_classes'] * 2, A)),
        'proj1':    s * jax.random.normal(ks[1], (A, A)),
        'proj2':    s * jax.random.normal(ks[2], (ARGS['moco_dim'], A)),
        'fc_clip':  s * jax.random.normal(ks[3], (A, 768)),
        'wq':       s * jax.random.normal(ks[4], (ARGS['q_dim'], ARGS['token_dim'])),
        'wk':       s * jax.random.normal(ks[5], (ARGS['q_dim'], ARGS['token_dim'])),
        'wv':       s * jax.random.normal(ks[6], (ARGS['v_dim'], ARGS['token_dim'])),
        # TODO(synk): CLIP ViT-L/14@336px image/text towers and resnet20 are
        # external pretrained backbones; stubbed as global-avg-pool + linear.
        'clip_img': s * jax.random.normal(ks[7], (768, c)),
        'clip_txt': s * jax.random.normal(ks[8], (768, 77)),
        'enc':      s * jax.random.normal(ks[9], (nfeat, c)),
    }
    raw = {k2: v.astype(jnp.float32) for k2, v in raw.items()}

    n = nfeat // ARGS['token_dim']
    qd, vd = ARGS['q_dim'], ARGS['v_dim']
    scale = qd ** (-0.5)
    hw = h * w
    chw = c * hw
    npair = n * n

    # ---- constant selector / segment-sum matrices (built once, numpy) -------
    selq = np.zeros((n * qd, npair * qd), np.float32)   # Q pair-expansion
    selk = np.zeros((n * qd, npair * qd), np.float32)   # K pair-expansion
    selv = np.zeros((n * vd, npair * vd), np.float32)   # V pair-expansion
    segs = np.zeros((npair * qd, npair), np.float32)    # segmented score sum
    bones = np.zeros((npair, npair), np.float32)        # softmax group sum
    selw = np.zeros((npair, npair * vd), np.float32)    # weight lane broadcast
    sego = np.zeros((npair * vd, n * vd), np.float32)   # segmented output sum
    for i in range(n):
        for j in range(n):
            pij = i * n + j
            bones[pij, i * n:(i + 1) * n] = 1.0
            for d in range(qd):
                selq[i * qd + d, pij * qd + d] = 1.0
                selk[j * qd + d, pij * qd + d] = 1.0
                segs[pij * qd + d, pij] = scale
            for d in range(vd):
                selv[j * vd + d, pij * vd + d] = 1.0
                selw[pij, pij * vd + d] = 1.0
                sego[pij * vd + d, i * vd + d] = 1.0

    # ---- fold avg-pool + stub backbones + fc_clip + q/k/v + pair expansion --
    w_pool = jnp.kron(jnp.eye(c, dtype=jnp.float32),
                      jnp.ones((hw, 1), jnp.float32)) / hw          # (chw, c)
    w_imgfeat = w_pool @ raw['clip_img'].T @ raw['fc_clip'].T       # (chw, A)
    w_feat = w_pool @ raw['enc'].T                                  # (chw, nfeat)
    kron_q = jnp.kron(jnp.eye(n, dtype=jnp.float32), raw['wq'].T)   # (nfeat, n*qd)
    kron_k = jnp.kron(jnp.eye(n, dtype=jnp.float32), raw['wk'].T)
    kron_v = jnp.kron(jnp.eye(n, dtype=jnp.float32), raw['wv'].T)
    q_off = ((A + LANE - 1) // LANE) * LANE                         # 128
    w_big = jnp.concatenate(
        [w_imgfeat,
         jnp.zeros((chw, q_off - A), jnp.float32),                  # lane pad
         w_feat @ kron_q @ jnp.asarray(selq),
         w_feat @ kron_k @ jnp.asarray(selk),
         w_feat @ kron_v @ jnp.asarray(selv)], axis=1)   # (chw, q_off + 3*n*n*qd)

    return {
        'fc': raw['fc'], 'proj1': raw['proj1'], 'proj2': raw['proj2'],
        # static text branch pre-folded: tfeat = text @ (fc_clip @ clip_txt).T
        'w_text': raw['fc_clip'] @ raw['clip_txt'],                 # (A, 77)
        'w_big': w_big,
        'seg_s': jnp.asarray(segs),
        'block_ones': jnp.asarray(bones),
        'sel_w': jnp.asarray(selw),
        'seg_o': jnp.asarray(sego),
    }


# ----------------------------------------------------------------------------
# MYNET forward (mode='ft_cos', training branch: im_cla + im_q + im_k + text)
# ----------------------------------------------------------------------------
@jax.jit
def mynet_forward(params, im_cla, im_q, im_k, text_inputs):
    b, c, h, w = im_cla.shape
    chw = c * h * w
    nc = ARGS['num_classes']
    n = ARGS['num_features'] // ARGS['token_dim']
    exp_dim = n * n * ARGS['q_dim']
    a_dim = ATTEN_FEATURES
    q_off = ((a_dim + LANE - 1) // LANE) * LANE

    # Batch the three image streams through a single encode pass; single
    # concatenate builds the flat (rows_pad, chw) input (avg-pool is folded
    # into the kernel weight, so no per-pixel layout survives).
    rows = 3 * b
    rows_pad = ((rows + 7) // 8) * 8
    pieces = [im_cla.reshape(b, chw), im_q.reshape(b, chw), im_k.reshape(b, chw)]
    if rows_pad != rows:
        pieces.append(jnp.zeros((rows_pad - rows, chw), im_cla.dtype))
    x_flat = jnp.concatenate(pieces, axis=0)                     # (rows_pad, chw)

    used = 3 * nc + b
    out_width = max(LANE, ((used + LANE - 1) // LANE) * LANE)
    kernel = functools.partial(
        _fused_forward_kernel,
        b=b, a_dim=a_dim, q_off=q_off, exp_dim=exp_dim,
        temperature=ARGS['temperature'], inv_moco_t=1.0 / ARGS['moco_t'],
        out_pad=out_width - used)

    # Advisory cost estimate so XLA schedules the surrounding glue ops around
    # this tiny custom call.
    wb_rows, wb_cols = params['w_big'].shape
    npair = n * n
    flops = 2 * rows_pad * (wb_rows * wb_cols
                            + exp_dim * npair + npair * npair
                            + npair * exp_dim + exp_dim * a_dim
                            + a_dim * a_dim + a_dim * ARGS['moco_dim']
                            + a_dim * 3 * nc)
    flops += 2 * nc * 77 * a_dim
    bytes_accessed = 4 * (x_flat.size + text_inputs.size
                          + sum(int(params[k].size) for k in
                                ('w_big', 'w_text', 'seg_s', 'block_ones',
                                 'sel_w', 'seg_o', 'proj1', 'proj2', 'fc'))
                          + b * out_width)
    cost = pl.CostEstimate(flops=int(flops),
                           transcendentals=int(rows_pad * npair),
                           bytes_accessed=int(bytes_accessed))

    packed = pl.pallas_call(
        kernel,
        out_shape=jax.ShapeDtypeStruct((b, out_width), jnp.float32),
        cost_estimate=cost,
    )(x_flat, text_inputs, params['w_big'], params['w_text'], params['seg_s'],
      params['block_ones'], params['sel_w'], params['seg_o'],
      params['proj1'], params['proj2'], params['fc'])

    logits_classify = packed[:, :2 * nc]                         # (B, 2C)
    # PyTorch: text = F.linear(normalize(fu_x[:len(fu_x)//2]), normalize(text))
    text_logits = packed[:b // 2, 2 * nc:3 * nc]                 # (B//2, C)
    x1 = packed[:, 3 * nc:3 * nc + b]                            # (B, B)
    return logits_classify, x1, text_logits


# ----------------------------------------------------------------------------

if __name__ == "__main__":
    key = jax.random.PRNGKey(0)
    kp, k1, k2, k3, k4 = jax.random.split(key, 5)

    B, C, H, W = 2, 3, 16, 16
    params = init_params(kp, c=C, h=H, w=W)

    im_cla = jax.random.normal(k1, (B, C, H, W), dtype=jnp.float32)
    im_q = jax.random.normal(k2, (B, C, H, W), dtype=jnp.float32)
    im_k = jax.random.normal(k3, (B, C, H, W), dtype=jnp.float32)
    # TODO(synk): real text_inputs are int CLIP token ids; stub uses float tokens.
    text_inputs = jax.random.normal(k4, (ARGS['num_classes'], 77),
                                    dtype=jnp.float32)

    logits_classify, x1, text = mynet_forward(params, im_cla, im_q, im_k,
                                              text_inputs)
    jax.block_until_ready((logits_classify, x1, text))

    assert logits_classify.shape == (B, ARGS['num_classes'] * 2)
    assert x1.shape == (B, B)
    assert text.shape == (B // 2, ARGS['num_classes'])
    assert bool(jnp.all(jnp.isfinite(logits_classify)))
    assert bool(jnp.all(jnp.isfinite(x1)))
    assert bool(jnp.all(jnp.isfinite(text)))
    print("KERNEL_OK")
</pallas_src>

<mosaic_0001>
module attributes {stable_mosaic.version = 11 : i64} {
  func.func @_fused_forward_kernel(%arg0: memref<8x768xf32, #tpu.memory_space<vmem>>, %arg1: memref<10x77xf32, #tpu.memory_space<vmem>>, %arg2: memref<768x896xf32, #tpu.memory_space<vmem>>, %arg3: memref<64x77xf32, #tpu.memory_space<vmem>>, %arg4: memref<256x16xf32, #tpu.memory_space<vmem>>, %arg5: memref<16x16xf32, #tpu.memory_space<vmem>>, %arg6: memref<16x256xf32, #tpu.memory_space<vmem>>, %arg7: memref<256x64xf32, #tpu.memory_space<vmem>>, %arg8: memref<64x64xf32, #tpu.memory_space<vmem>>, %arg9: memref<32x64xf32, #tpu.memory_space<vmem>>, %arg10: memref<20x64xf32, #tpu.memory_space<vmem>>, %arg11: memref<2x128xf32, #tpu.memory_space<vmem>>) attributes {dimension_semantics = [], scalar_prefetch = 0 : i64, scratch_operands = 0 : i64, tpu.core_type = #tpu.core_type<tc>} {
    %c0 = arith.constant 0 : index
    %c0_0 = arith.constant 0 : index
    %0 = vector.load %arg0[%c0, %c0_0] : memref<8x768xf32, #tpu.memory_space<vmem>>, vector<8x768xf32>
    %c0_1 = arith.constant 0 : index
    %c0_2 = arith.constant 0 : index
    %1 = vector.load %arg2[%c0_1, %c0_2] : memref<768x896xf32, #tpu.memory_space<vmem>>, vector<768x896xf32>
    %cst = arith.constant dense<0.000000e+00> : vector<8x896xf32>
    %2 = tpu.matmul %0, %1, %cst {dimension_numbers = #tpu.dot_dimension_numbers<[1], [0], [0], [1], [0, 0, 1, 1], [], []>} : vector<8x768xf32>, vector<768x896xf32>, vector<8x896xf32> -> vector<8x896xf32>
    %3 = vector.extract_strided_slice %2 {offsets = [0, 0], sizes = [8, 64], strides = [1, 1]} : vector<8x896xf32> to vector<8x64xf32>
    %4 = vector.extract_strided_slice %2 {offsets = [0, 128], sizes = [8, 256], strides = [1, 1]} : vector<8x896xf32> to vector<8x256xf32>
    %5 = vector.extract_strided_slice %2 {offsets = [0, 384], sizes = [8, 256], strides = [1, 1]} : vector<8x896xf32> to vector<8x256xf32>
    %6 = vector.extract_strided_slice %2 {offsets = [0, 640], sizes = [8, 256], strides = [1, 1]} : vector<8x896xf32> to vector<8x256xf32>
    %7 = arith.mulf %4, %5 : vector<8x256xf32>
    %c0_3 = arith.constant 0 : index
    %c0_4 = arith.constant 0 : index
    %8 = vector.load %arg4[%c0_3, %c0_4] : memref<256x16xf32, #tpu.memory_space<vmem>>, vector<256x16xf32>
    %cst_5 = arith.constant dense<0.000000e+00> : vector<8x16xf32>
    %9 = tpu.matmul %7, %8, %cst_5 {dimension_numbers = #tpu.dot_dimension_numbers<[1], [0], [0], [1], [0, 0, 1, 1], [], []>} : vector<8x256xf32>, vector<256x16xf32>, vector<8x16xf32> -> vector<8x16xf32>
    %10 = math.exp %9 : vector<8x16xf32>
    %c0_6 = arith.constant 0 : index
    %c0_7 = arith.constant 0 : index
    %11 = vector.load %arg5[%c0_6, %c0_7] : memref<16x16xf32, #tpu.memory_space<vmem>>, vector<16x16xf32>
    %cst_8 = arith.constant dense<0.000000e+00> : vector<8x16xf32>
    %12 = tpu.matmul %10, %11, %cst_8 {dimension_numbers = #tpu.dot_dimension_numbers<[1], [0], [0], [1], [0, 0, 1, 1], [], []>} : vector<8x16xf32>, vector<16x16xf32>, vector<8x16xf32> -> vector<8x16xf32>
    %13 = tpu.reciprocal %12 {approx = true} : vector<8x16xf32> -> vector<8x16xf32>
    %14 = arith.mulf %10, %13 : vector<8x16xf32>
    %c0_9 = arith.constant 0 : index
    %c0_10 = arith.constant 0 : index
    %15 = vector.load %arg6[%c0_9, %c0_10] : memref<16x256xf32, #tpu.memory_space<vmem>>, vector<16x256xf32>
    %cst_11 = arith.constant dense<0.000000e+00> : vector<8x256xf32>
    %16 = tpu.matmul %14, %15, %cst_11 {dimension_numbers = #tpu.dot_dimension_numbers<[1], [0], [0], [1], [0, 0, 1, 1], [], []>} : vector<8x16xf32>, vector<16x256xf32>, vector<8x256xf32> -> vector<8x256xf32>
    %17 = arith.mulf %16, %6 : vector<8x256xf32>
    %c0_12 = arith.constant 0 : index
    %c0_13 = arith.constant 0 : index
    %18 = vector.load %arg7[%c0_12, %c0_13] : memref<256x64xf32, #tpu.memory_space<vmem>>, vector<256x64xf32>
    %cst_14 = arith.constant dense<0.000000e+00> : vector<8x64xf32>
    %19 = tpu.matmul %17, %18, %cst_14 {dimension_numbers = #tpu.dot_dimension_numbers<[1], [0], [0], [1], [0, 0, 1, 1], [], []>} : vector<8x256xf32>, vector<256x64xf32>, vector<8x64xf32> -> vector<8x64xf32>
    %20 = arith.addf %3, %19 : vector<8x64xf32>
    %cst_15 = arith.constant 5.000000e-01 : f32
    %21 = vector.broadcast %cst_15 : f32 to vector<8x64xf32>
    %22 = arith.mulf %20, %21 : vector<8x64xf32>
    %c0_16 = arith.constant 0 : index
    %c0_17 = arith.constant 0 : index
    %23 = vector.load %arg8[%c0_16, %c0_17] : memref<64x64xf32, #tpu.memory_space<vmem>>, vector<64x64xf32>
    %cst_18 = arith.constant dense<0.000000e+00> : vector<8x64xf32>
    %24 = tpu.matmul %22, %23, %cst_18 {dimension_numbers = #tpu.dot_dimension_numbers<[1], [1], [0], [0], [0, 0, 1, 0], [], []>} : vector<8x64xf32>, vector<64x64xf32>, vector<8x64xf32> -> vector<8x64xf32>
    %cst_19 = arith.constant 0.000000e+00 : f32
    %25 = vector.broadcast %cst_19 : f32 to vector<8x64xf32>
    %26 = arith.maximumf %24, %25 : vector<8x64xf32>
    %c0_20 = arith.constant 0 : index
    %c0_21 = arith.constant 0 : index
    %27 = vector.load %arg9[%c0_20, %c0_21] : memref<32x64xf32, #tpu.memory_space<vmem>>, vector<32x64xf32>
    %cst_22 = arith.constant dense<0.000000e+00> : vector<8x32xf32>
    %28 = tpu.matmul %26, %27, %cst_22 {dimension_numbers = #tpu.dot_dimension_numbers<[1], [1], [0], [0], [0, 0, 1, 0], [], []>} : vector<8x64xf32>, vector<32x64xf32>, vector<8x32xf32> -> vector<8x32xf32>
    %29 = arith.mulf %28, %28 : vector<8x32xf32>
    %cst_23 = arith.constant dense<0.000000e+00> : vector<8xf32>
    %30 = vector.multi_reduction <add>, %29, %cst_23 [1] : vector<8x32xf32> to vector<8xf32>
    %31 = vector.shape_cast %30 : vector<8xf32> to vector<8x1xf32>
    %cst_24 = arith.constant 1.000000e-24 : f32
    %32 = vector.broadcast %cst_24 : f32 to vector<8x1xf32>
    %33 = arith.addf %31, %32 : vector<8x1xf32>
    %34 = math.rsqrt %33 : vector<8x1xf32>
    %35 = vector.broadcast %34 : vector<8x1xf32> to vector<8x32xf32>
    %36 = arith.mulf %28, %35 : vector<8x32xf32>
    %37 = vector.extract_strided_slice %36 {offsets = [2, 0], sizes = [2, 32], strides = [1, 1]} : vector<8x32xf32> to vector<2x32xf32>
    %38 = vector.extract_strided_slice %36 {offsets = [4, 0], sizes = [2, 32], strides = [1, 1]} : vector<8x32xf32> to vector<2x32xf32>
    %cst_25 = arith.constant dense<0.000000e+00> : vector<2x2xf32>
    %39 = tpu.matmul %37, %38, %cst_25 {dimension_numbers = #tpu.dot_dimension_numbers<[1], [1], [0], [0], [0, 0, 1, 0], [], []>} : vector<2x32xf32>, vector<2x32xf32>, vector<2x2xf32> -> vector<2x2xf32>
    %cst_26 = arith.constant 14.2857141 : f32
    %40 = vector.broadcast %cst_26 : f32 to vector<2x2xf32>
    %41 = arith.mulf %40, %39 : vector<2x2xf32>
    %c0_27 = arith.constant 0 : index
    %c0_28 = arith.constant 0 : index
    %42 = vector.load %arg1[%c0_27, %c0_28] : memref<10x77xf32, #tpu.memory_space<vmem>>, vector<10x77xf32>
    %c0_29 = arith.constant 0 : index
    %c0_30 = arith.constant 0 : index
    %43 = vector.load %arg3[%c0_29, %c0_30] : memref<64x77xf32, #tpu.memory_space<vmem>>, vector<64x77xf32>
    %cst_31 = arith.constant dense<0.000000e+00> : vector<10x64xf32>
    %44 = tpu.matmul %42, %43, %cst_31 {dimension_numbers = #tpu.dot_dimension_numbers<[1], [1], [0], [0], [0, 0, 1, 0], [], []>} : vector<10x77xf32>, vector<64x77xf32>, vector<10x64xf32> -> vector<10x64xf32>
    %c0_32 = arith.constant 0 : index
    %c0_33 = arith.constant 0 : index
    %45 = vector.load %arg10[%c0_32, %c0_33] : memref<20x64xf32, #tpu.memory_space<vmem>>, vector<20x64xf32>
    %46 = tpu.concatenate %45, %44 in 0 : vector<20x64xf32>, vector<10x64xf32> -> vector<30x64xf32>
    %47 = arith.mulf %46, %46 : vector<30x64xf32>
    %cst_34 = arith.constant dense<0.000000e+00> : vector<30xf32>
    %48 = vector.multi_reduction <add>, %47, %cst_34 [1] : vector<30x64xf32> to vector<30xf32>
    %49 = vector.shape_cast %48 : vector<30xf32> to vector<30x1xf32>
    %cst_35 = arith.constant 1.000000e-24 : f32
    %50 = vector.broadcast %cst_35 : f32 to vector<30x1xf32>
    %51 = arith.addf %49, %50 : vector<30x1xf32>
    %52 = math.rsqrt %51 : vector<30x1xf32>
    %53 = vector.broadcast %52 : vector<30x1xf32> to vector<30x64xf32>
    %54 = arith.mulf %46, %53 : vector<30x64xf32>
    %55 = arith.mulf %22, %22 : vector<8x64xf32>
    %cst_36 = arith.constant dense<0.000000e+00> : vector<8xf32>
    %56 = vector.multi_reduction <add>, %55, %cst_36 [1] : vector<8x64xf32> to vector<8xf32>
    %57 = vector.shape_cast %56 : vector<8xf32> to vector<8x1xf32>
    %cst_37 = arith.constant 1.000000e-24 : f32
    %58 = vector.broadcast %cst_37 : f32 to vector<8x1xf32>
    %59 = arith.addf %57, %58 : vector<8x1xf32>
    %60 = math.rsqrt %59 : vector<8x1xf32>
    %61 = vector.broadcast %60 : vector<8x1xf32> to vector<8x64xf32>
    %62 = arith.mulf %22, %61 : vector<8x64xf32>
    %cst_38 = arith.constant dense<0.000000e+00> : vector<8x30xf32>
    %63 = tpu.matmul %62, %54, %cst_38 {dimension_numbers = #tpu.dot_dimension_numbers<[1], [1], [0], [0], [0, 0, 1, 0], [], []>} : vector<8x64xf32>, vector<30x64xf32>, vector<8x30xf32> -> vector<8x30xf32>
    %cst_39 = arith.constant 1.600000e+01 : f32
    %64 = vector.broadcast %cst_39 : f32 to vector<8x30xf32>
    %65 = arith.mulf %64, %63 : vector<8x30xf32>
    %66 = vector.extract_strided_slice %65 {offsets = [0, 0], sizes = [2, 30], strides = [1, 1]} : vector<8x30xf32> to vector<2x30xf32>
    %cst_40 = arith.constant 0.000000e+00 : f32
    %67 = vector.broadcast %cst_40 : f32 to vector<2x96xf32>
    %68 = tpu.concatenate %66, %41, %67 in 1 : vector<2x30xf32>, vector<2x2xf32>, vector<2x96xf32> -> vector<2x128xf32>
    %c0_41 = arith.constant 0 : index
    %c0_42 = arith.constant 0 : index
    %69 = vector.load %arg11[%c0_41, %c0_42] : memref<2x128xf32, #tpu.memory_space<vmem>>, vector<2x128xf32>
    tpu.vector_store %arg11[%c0_41, %c0_42], %68 {strides = array<i32>} : memref<2x128xf32, #tpu.memory_space<vmem>>, vector<2x128xf32>,
    return
  }
}

</mosaic_0001>

<llo_original>
// kernel: mynet_forward.1
$region0: #{mynet_forward.1}
  #allocation0 [shape = 'u32[]', space=smem, size = 0x4, offset = 0x4, fixed_abs, tag = 'smem constant byte address 0x4 - core index']
  #allocation1 [shape = 'u32[144,128]{1,0:T(1,128)}', space=vmem, size = 0x12000, scoped, tag = 'internal scratch']
  %s0 = inlined_call_operand.vmem [shape: f32[8,768], index: 0, kind: input, shape index: {}]
  %s1 = inlined_call_operand.hbm [shape: f32[10,77], index: 1, kind: input, shape index: {}]
  %s2 = inlined_call_operand.hbm [shape: f32[768,896], index: 2, kind: input, shape index: {}]
  %s3 = inlined_call_operand.hbm [shape: f32[64,77], index: 3, kind: input, shape index: {}]
  %s4 = inlined_call_operand.vmem [shape: f32[256,16], index: 4, kind: input, shape index: {}]
  %s5 = inlined_call_operand.hbm [shape: f32[16,16], index: 5, kind: input, shape index: {}]
  %s6 = inlined_call_operand.hbm [shape: f32[16,256], index: 6, kind: input, shape index: {}]
  %s7 = inlined_call_operand.vmem [shape: f32[256,64], index: 7, kind: input, shape index: {}]
  %s8 = inlined_call_operand.hbm [shape: f32[64,64], index: 8, kind: input, shape index: {}]
  %s9 = inlined_call_operand.hbm [shape: f32[32,64], index: 9, kind: input, shape index: {}]
  %s10 = inlined_call_operand.hbm [shape: f32[20,64], index: 10, kind: input, shape index: {}]
  %s11 = inlined_call_operand.vmem [shape: f32[2,128], index: 11, kind: output, shape index: {}]
  %s12 = sld [smem:[#allocation0]]
  $region86: #{mynet_forward.1} parent=0
    _
  %s14 = ssub.s32 1, %s12
  %s15 = scalar_select 0, %s14, %s12
  $region1: #{mynet_forward.1} parent=0
    #allocation2 [shape = 'u8[8192]{0}', space=vmem, size = 0x2000, scoped, tag = 'input window, operand 1, single buffered']
    #allocation3 [shape = 's32[1]{0}', space=sflag, size = 0x4, scoped, tag = 'scoped memory for mynet_forward.1']
    #allocation4 [shape = 'u8[2752512]{0}', space=vmem, size = 0x2a0000, scoped, tag = 'input window, operand 2, single buffered']
    #allocation5 [shape = 's32[1]{0}', space=sflag, size = 0x4, scoped, tag = 'scoped memory for mynet_forward.1']
    #allocation6 [shape = 'u8[32768]{0}', space=vmem, size = 0x8000, scoped, tag = 'input window, operand 3, single buffered']
    #allocation7 [shape = 'u8[8192]{0}', space=vmem, size = 0x2000, scoped, tag = 'input window, operand 5, single buffered']
    #allocation8 [shape = 's32[1]{0}', space=sflag, size = 0x4, scoped, tag = 'scoped memory for mynet_forward.1']
    #allocation9 [shape = 'u8[16384]{0}', space=vmem, size = 0x4000, scoped, tag = 'input window, operand 6, single buffered']
    #allocation10 [shape = 'u8[32768]{0}', space=vmem, size = 0x8000, scoped, tag = 'input window, operand 8, single buffered']
    #allocation11 [shape = 's32[1]{0}', space=sflag, size = 0x4, scoped, tag = 'scoped memory for mynet_forward.1']
    #allocation12 [shape = 'u8[16384]{0}', space=vmem, size = 0x4000, scoped, tag = 'input window, operand 9, single buffered']
    #allocation13 [shape = 'u8[12288]{0}', space=vmem, size = 0x3000, scoped, tag = 'input window, operand 10, single buffered']
    #allocation14 [shape = 's32[1]{0}', space=sflag, size = 0x4, scoped, tag = 'scoped memory for mynet_forward.1']
    %16 = vsyncpa [#allocation3], 0
    %17 = vsyncpa [#allocation5], 0
    %18 = vsyncpa [#allocation8], 0
    %19 = vsyncpa [#allocation11], 0
    %20 = vsyncpa [#allocation14], 0
    // Predicated region
    $region2: #{mynet_forward.1} parent=1 // pred_check
      _
    $region3: #{mynet_forward.1} parent=1 // pred_check_branch
      %22 = sbr.rel (0) target = $region5
    $region4: #{mynet_forward.1} parent=1 // pred_region
      _
    $region5: #{mynet_forward.1} parent=1 // pred_fallthru
      _
    // Predicated region
    $region6: #{mynet_forward.1} parent=1 // pred_check
      _
    $region7: #{mynet_forward.1} parent=1 // pred_check_branch
      %24 = sbr.rel (0) target = $region9
    $region8: #{mynet_forward.1} parent=1 // pred_region
      %s26 = ssub.s32 256, 256
      %27 = vsyncadd [#allocation3], %s26
      %s28 = sshll.u32 [#allocation2], 4
      %s29 = int_to_ptr.vmem [resolvable:$true] %s28
      %34 = dma.hbm_to_vmem [thread:$0]  %s1, 256, %s29, [#allocation3], 128, 128, 8
    $region9: #{mynet_forward.1} parent=1 // pred_fallthru
      _
    // Predicated region
    $region10: #{mynet_forward.1} parent=1 // pred_check
      _
    $region11: #{mynet_forward.1} parent=1 // pred_check_branch
      %36 = sbr.rel (0) target = $region13
    $region12: #{mynet_forward.1} parent=1 // pred_region
      %s38 = ssub.s32 86016, 86016
      %39 = vsyncadd [#allocation5], %s38
      %s40 = sshll.u32 [#allocation4], 4
      %s41 = int_to_ptr.vmem [resolvable:$true] %s40
      %46 = dma.hbm_to_vmem [thread:$0]  %s2, 86016, %s41, [#allocation5], 896, 896, 56
    $region13: #{mynet_forward.1} parent=1 // pred_fallthru
      _
    // Predicated region
    $region14: #{mynet_forward.1} parent=1 // pred_check
      _
    $region15: #{mynet_forward.1} parent=1 // pred_check_branch
      %48 = sbr.rel (0) target = $region17
    $region16: #{mynet_forward.1} parent=1 // pred_region
      %s50 = ssub.s32 1024, 1024
      %51 = vsyncadd [#allocation5], %s50
      %s52 = sshll.u32 [#allocation6], 4
      %s53 = int_to_ptr.vmem [resolvable:$true] %s52
      %58 = dma.hbm_to_vmem [thread:$0]  %s3, 1024, %s53, [#allocation5], 128, 128, 8
    $region17: #{mynet_forward.1} parent=1 // pred_fallthru
      _
    // Predicated region
    $region18: #{mynet_forward.1} parent=1 // pred_check
      _
    $region19: #{mynet_forward.1} parent=1 // pred_check_branch
      %60 = sbr.rel (0) target = $region21
    $region20: #{mynet_forward.1} parent=1 // pred_region
      _
    $region21: #{mynet_forward.1} parent=1 // pred_fallthru
      _
    // Predicated region
    $region22: #{mynet_forward.1} parent=1 // pred_check
      _
    $region23: #{mynet_forward.1} parent=1 // pred_check_branch
      %62 = sbr.rel (0) target = $region25
    $region24: #{mynet_forward.1} parent=1 // pred_region
      %s64 = ssub.s32 256, 256
      %65 = vsyncadd [#allocation8], %s64
      %s66 = sshll.u32 [#allocation7], 4
      %s67 = int_to_ptr.vmem [resolvable:$true] %s66
      %72 = dma.hbm_to_vmem [thread:$0]  %s5, 256, %s67, [#allocation8], 128, 128, 8
    $region25: #{mynet_forward.1} parent=1 // pred_fallthru
      _
    // Predicated region
    $region26: #{mynet_forward.1} parent=1 // pred_check
      _
    $region27: #{mynet_forward.1} parent=1 // pred_check_branch
      %74 = sbr.rel (0) target = $region29
    $region28: #{mynet_forward.1} parent=1 // pred_region
      %s76 = ssub.s32 512, 512
      %77 = vsyncadd [#allocation8], %s76
      %s78 = sshll.u32 [#allocation9], 4
      %s79 = int_to_ptr.vmem [resolvable:$true] %s78
      %84 = dma.hbm_to_vmem [thread:$0]  %s6, 512, %s79, [#allocation8], 256, 256, 16
    $region29: #{mynet_forward.1} parent=1 // pred_fallthru
      _
    // Predicated region
    $region30: #{mynet_forward.1} parent=1 // pred_check
      _
    $region31: #{mynet_forward.1} parent=1 // pred_check_branch
      %86 = sbr.rel (0) target = $region33
    $region32: #{mynet_forward.1} parent=1 // pred_region
      _
    $region33: #{mynet_forward.1} parent=1 // pred_fallthru
      _
    // Predicated region
    $region34: #{mynet_forward.1} parent=1 // pred_check
      _
    $region35: #{mynet_forward.1} parent=1 // pred_check_branch
      %88 = sbr.rel (0) target = $region37
    $region36: #{mynet_forward.1} parent=1 // pred_region
      %s90 = ssub.s32 1024, 1024
      %91 = vsyncadd [#allocation11], %s90
      %s92 = sshll.u32 [#allocation10], 4
      %s93 = int_to_ptr.vmem [resolvable:$true] %s92
      %98 = dma.hbm_to_vmem [thread:$0]  %s8, 1024, %s93, [#allocation11], 128, 128, 8
    $region37: #{mynet_forward.1} parent=1 // pred_fallthru
      _
    // Predicated region
    $region38: #{mynet_forward.1} parent=1 // pred_check
      _
    $region39: #{mynet_forward.1} parent=1 // pred_check_branch
      %100 = sbr.rel (0) target = $region41
    $region40: #{mynet_forward.1} parent=1 // pred_region
      %s102 = ssub.s32 512, 512
      %103 = vsyncadd [#allocation11], %s102
      %s104 = sshll.u32 [#allocation12], 4
      %s105 = int_to_ptr.vmem [resolvable:$true] %s104
      %110 = dma.hbm_to_vmem [thread:$0]  %s9, 512, %s105, [#allocation11], 128, 128, 8
    $region41: #{mynet_forward.1} parent=1 // pred_fallthru
      _
    // Predicated region
    $region42: #{mynet_forward.1} parent=1 // pred_check
      _
    $region43: #{mynet_forward.1} parent=1 // pred_check_branch
      %112 = sbr.rel (0) target = $region45
    $region44: #{mynet_forward.1} parent=1 // pred_region
      %s114 = ssub.s32 384, 384
      %115 = vsyncadd [#allocation14], %s114
      %s116 = sshll.u32 [#allocation13], 4
      %s117 = int_to_ptr.vmem [resolvable:$true] %s116
      %122 = dma.hbm_to_vmem [thread:$0]  %s10, 384, %s117, [#allocation14], 128, 128, 8
    $region45: #{mynet_forward.1} parent=1 // pred_fallthru
      _
    // Predicated region
    $region46: #{mynet_forward.1} parent=1 // pred_check
      _
    $region47: #{mynet_forward.1} parent=1 // pred_check_branch
      %124 = sbr.rel (0) target = $region49
    $region48: #{mynet_forward.1} parent=1 // pred_region
      %125 = dma.done [#allocation3], 256
    $region49: #{mynet_forward.1} parent=1 // pred_fallthru
      _
    // Predicated region
    $region50: #{mynet_forward.1} parent=1 // pred_check
      _
    $region51: #{mynet_forward.1} parent=1 // pred_check_branch
      %127 = sbr.rel (0) target = $region53
    $region52: #{mynet_forward.1} parent=1 // pred_region
      %128 = dma.done [#allocation5], 86016
    $region53: #{mynet_forward.1} parent=1 // pred_fallthru
      _
    // Predicated region
    $region54: #{mynet_forward.1} parent=1 // pred_check
      _
    $region55: #{mynet_forward.1} parent=1 // pred_check_branch
      %130 = sbr.rel (0) target = $region57
    $region56: #{mynet_forward.1} parent=1 // pred_region
      %131 = dma.done [#allocation5], 1024
    $region57: #{mynet_forward.1} parent=1 // pred_fallthru
      _
    // Predicated region
    $region58: #{mynet_forward.1} parent=1 // pred_check
      _
    $region59: #{mynet_forward.1} parent=1 // pred_check_branch
      %133 = sbr.rel (0) target = $region61
    $region60: #{mynet_forward.1} parent=1 // pred_region
      %134 = dma.done [#allocation8], 256
    $region61: #{mynet_forward.1} parent=1 // pred_fallthru
      _
    // Predicated region
    $region62: #{mynet_forward.1} parent=1 // pred_check
      _
    $region63: #{mynet_forward.1} parent=1 // pred_check_branch
      %136 = sbr.rel (0) target = $region65
    $region64: #{mynet_forward.1} parent=1 // pred_region
      %137 = dma.done [#allocation8], 512
    $region65: #{mynet_forward.1} parent=1 // pred_fallthru
      _
    // Predicated region
    $region66: #{mynet_forward.1} parent=1 // pred_check
      _
    $region67: #{mynet_forward.1} parent=1 // pred_check_branch
      %139 = sbr.rel (0) target = $region69
    $region68: #{mynet_forward.1} parent=1 // pred_region
      %140 = dma.done [#allocation11], 1024
    $region69: #{mynet_forward.1} parent=1 // pred_fallthru
      _
    // Predicated region
    $region70: #{mynet_forward.1} parent=1 // pred_check
      _
    $region71: #{mynet_forward.1} parent=1 // pred_check_branch
      %142 = sbr.rel (0) target = $region73
    $region72: #{mynet_forward.1} parent=1 // pred_region
      %143 = dma.done [#allocation11], 512
    $region73: #{mynet_forward.1} parent=1 // pred_fallthru
      _
    // Predicated region
    $region74: #{mynet_forward.1} parent=1 // pred_check
      _
    $region75: #{mynet_forward.1} parent=1 // pred_check_branch
      %145 = sbr.rel (0) target = $region77
    $region76: #{mynet_forward.1} parent=1 // pred_region
      %146 = dma.done [#allocation14], 384
    $region77: #{mynet_forward.1} parent=1 // pred_fallthru
      _
    %v147 = vld [vmem:[%s0] sm:$0xff]
    %v148 = vld [vmem:[%s0 + $0x8] sm:$0xff]
    %v149 = vld [vmem:[%s0 + $0x10] sm:$0xff]
    %v150 = vld [vmem:[%s0 + $0x18] sm:$0xff]
    %v151 = vld [vmem:[%s0 + $0x20] sm:$0xff]
    %v152 = vld [vmem:[%s0 + $0x28] sm:$0xff]
    %v153 = vld [vmem:[#allocation4] sm:$0xff]
    %v154 = vld [vmem:[#allocation4 + $0x8] sm:$0xff]
    %v155 = vld [vmem:[#allocation4 + $0x10] sm:$0xff]
    %v156 = vld [vmem:[#allocation4 + $0x18] sm:$0xff]
    %v157 = vld [vmem:[#allocation4 + $0x20] sm:$0xff]
    %v158 = vld [vmem:[#allocation4 + $0x28] sm:$0xff]
    %v159 = vld [vmem:[#allocation4 + $0x30] sm:$0xff]
    %v160 = vld [vmem:[#allocation4 + $0x38] sm:$0xff]
    %v161 = vld [vmem:[#allocation4 + $0x40] sm:$0xff]
    %v162 = vld [vmem:[#allocation4 + $0x48] sm:$0xff]
    %v163 = vld [vmem:[#allocation4 + $0x50] sm:$0xff]
    %v164 = vld [vmem:[#allocation4 + $0x58] sm:$0xff]
    %v165 = vld [vmem:[#allocation4 + $0x60] sm:$0xff]
    %v166 = vld [vmem:[#allocation4 + $0x68] sm:$0xff]
    %v167 = vld [vmem:[#allocation4 + $0x70] sm:$0xff]
    %v168 = vld [vmem:[#allocation4 + $0x78] sm:$0xff]
    %v169 = vld [vmem:[#allocation4 + $0x80] sm:$0xff]
    %v170 = vld [vmem:[#allocation4 + $0x88] sm:$0xff]
    %v171 = vld [vmem:[#allocation4 + $0x90] sm:$0xff]
    %v172 = vld [vmem:[#allocation4 + $0x98] sm:$0xff]
    %v173 = vld [vmem:[#allocation4 + $0xa0] sm:$0xff]
    %v174 = vld [vmem:[#allocation4 + $0xa8] sm:$0xff]
    %v175 = vld [vmem:[#allocation4 + $0xb0] sm:$0xff]
    %v176 = vld [vmem:[#allocation4 + $0xb8] sm:$0xff]
    %v177 = vld [vmem:[#allocation4 + $0xc0] sm:$0xff]
    %v178 = vld [vmem:[#allocation4 + $0xc8] sm:$0xff]
    %v179 = vld [vmem:[#allocation4 + $0xd0] sm:$0xff]
    %v180 = vld [vmem:[#allocation4 + $0xd8] sm:$0xff]
    %v181 = vld [vmem:[#allocation4 + $0xe0] sm:$0xff]
    %v182 = vld [vmem:[#allocation4 + $0xe8] sm:$0xff]
    %v183 = vld [vmem:[#allocation4 + $0xf0] sm:$0xff]
    %v184 = vld [vmem:[#allocation4 + $0xf8] sm:$0xff]
    %v185 = vld [vmem:[#allocation4 + $0x100] sm:$0xff]
    %v186 = vld [vmem:[#allocation4 + $0x108] sm:$0xff]
    %v187 = vld [vmem:[#allocation4 + $0x110] sm:$0xff]
    %v188 = vld [vmem:[#allocation4 + $0x118] sm:$0xff]
    %v189 = vld [vmem:[#allocation4 + $0x120] sm:$0xff]
    %v190 = vld [vmem:[#allocation4 + $0x128] sm:$0xff]
    %v191 = vld [vmem:[#allocation4 + $0x130] sm:$0xff]
    %v192 = vld [vmem:[#allocation4 + $0x138] sm:$0xff]
    %v193 = vld [vmem:[#allocation4 + $0x140] sm:$0xff]
    %v194 = vld [vmem:[#allocation4 + $0x148] sm:$0xff]
    %v195 = vld [vmem:[#allocation4 + $0x150] sm:$0xff]
    %v196 = vld [vmem:[#allocation4 + $0x158] sm:$0xff]
    %v197 = vld [vmem:[#allocation4 + $0x160] sm:$0xff]
    %v198 = vld [vmem:[#allocation4 + $0x168] sm:$0xff]
    %v199 = vld [vmem:[#allocation4 + $0x170] sm:$0xff]
    %v200 = vld [vmem:[#allocation4 + $0x178] sm:$0xff]
    %v201 = vld [vmem:[#allocation4 + $0x180] sm:$0xff]
    %v202 = vld [vmem:[#allocation4 + $0x188] sm:$0xff]
    %v203 = vld [vmem:[#allocation4 + $0x190] sm:$0xff]
    %v204 = vld [vmem:[#allocation4 + $0x198] sm:$0xff]
    %v205 = vld [vmem:[#allocation4 + $0x1a0] sm:$0xff]
    %v206 = vld [vmem:[#allocation4 + $0x1a8] sm:$0xff]
    %v207 = vld [vmem:[#allocation4 + $0x1b0] sm:$0xff]
    %v208 = vld [vmem:[#allocation4 + $0x1b8] sm:$0xff]
    %v209 = vld [vmem:[#allocation4 + $0x1c0] sm:$0xff]
    %v210 = vld [vmem:[#allocation4 + $0x1c8] sm:$0xff]
    %v211 = vld [vmem:[#allocation4 + $0x1d0] sm:$0xff]
    %v212 = vld [vmem:[#allocation4 + $0x1d8] sm:$0xff]
    %v213 = vld [vmem:[#allocation4 + $0x1e0] sm:$0xff]
    %v214 = vld [vmem:[#allocation4 + $0x1e8] sm:$0xff]
    %v215 = vld [vmem:[#allocation4 + $0x1f0] sm:$0xff]
    %v216 = vld [vmem:[#allocation4 + $0x1f8] sm:$0xff]
    %v217 = vld [vmem:[#allocation4 + $0x200] sm:$0xff]
    %v218 = vld [vmem:[#allocation4 + $0x208] sm:$0xff]
    %v219 = vld [vmem:[#allocation4 + $0x210] sm:$0xff]
    %v220 = vld [vmem:[#allocation4 + $0x218] sm:$0xff]
    %v221 = vld [vmem:[#allocation4 + $0x220] sm:$0xff]
    %v222 = vld [vmem:[#allocation4 + $0x228] sm:$0xff]
    %v223 = vld [vmem:[#allocation4 + $0x230] sm:$0xff]
    %v224 = vld [vmem:[#allocation4 + $0x238] sm:$0xff]
    %v225 = vld [vmem:[#allocation4 + $0x240] sm:$0xff]
    %v226 = vld [vmem:[#allocation4 + $0x248] sm:$0xff]
    %v227 = vld [vmem:[#allocation4 + $0x250] sm:$0xff]
    %v228 = vld [vmem:[#allocation4 + $0x258] sm:$0xff]
    %v229 = vld [vmem:[#allocation4 + $0x260] sm:$0xff]
    %v230 = vld [vmem:[#allocation4 + $0x268] sm:$0xff]
    %v231 = vld [vmem:[#allocation4 + $0x270] sm:$0xff]
    %v232 = vld [vmem:[#allocation4 + $0x278] sm:$0xff]
    %v233 = vld [vmem:[#allocation4 + $0x280] sm:$0xff]
    %v234 = vld [vmem:[#allocation4 + $0x288] sm:$0xff]
    %v235 = vld [vmem:[#allocation4 + $0x290] sm:$0xff]
    %v236 = vld [vmem:[#allocation4 + $0x298] sm:$0xff]
    %v237 = vld [vmem:[#allocation4 + $0x2a0] sm:$0xff]
    %v238 = vld [vmem:[#allocation4 + $0x2a8] sm:$0xff]
    %v239 = vld [vmem:[#allocation4 + $0x2b0] sm:$0xff]
    %v240 = vld [vmem:[#allocation4 + $0x2b8] sm:$0xff]
    %v241 = vld [vmem:[#allocation4 + $0x2c0] sm:$0xff]
    %v242 = vld [vmem:[#allocation4 + $0x2c8] sm:$0xff]
    %v243 = vld [vmem:[#allocation4 + $0x2d0] sm:$0xff]
    %v244 = vld [vmem:[#allocation4 + $0x2d8] sm:$0xff]
    %v245 = vld [vmem:[#allocation4 + $0x2e0] sm:$0xff]
    %v246 = vld [vmem:[#allocation4 + $0x2e8] sm:$0xff]
    %v247 = vld [vmem:[#allocation4 + $0x2f0] sm:$0xff]
    %v248 = vld [vmem:[#allocation4 + $0x2f8] sm:$0xff]
    %v249 = vld [vmem:[#allocation4 + $0x300] sm:$0xff]
    %v250 = vld [vmem:[#allocation4 + $0x308] sm:$0xff]
    %v251 = vld [vmem:[#allocation4 + $0x310] sm:$0xff]
    %v252 = vld [vmem:[#allocation4 + $0x318] sm:$0xff]
    %v253 = vld [vmem:[#allocation4 + $0x320] sm:$0xff]
    %v254 = vld [vmem:[#allocation4 + $0x328] sm:$0xff]
    %v255 = vld [vmem:[#allocation4 + $0x330] sm:$0xff]
    %v256 = vld [vmem:[#allocation4 + $0x338] sm:$0xff]
    %v257 = vld [vmem:[#allocation4 + $0x340] sm:$0xff]
    %v258 = vld [vmem:[#allocation4 + $0x348] sm:$0xff]
    %v259 = vld [vmem:[#allocation4 + $0x350] sm:$0xff]
    %v260 = vld [vmem:[#allocation4 + $0x358] sm:$0xff]
    %v261 = vld [vmem:[#allocation4 + $0x360] sm:$0xff]
    %v262 = vld [vmem:[#allocation4 + $0x368] sm:$0xff]
    %v263 = vld [vmem:[#allocation4 + $0x370] sm:$0xff]
    %v264 = vld [vmem:[#allocation4 + $0x378] sm:$0xff]
    %v265 = vld [vmem:[#allocation4 + $0x380] sm:$0xff]
    %v266 = vld [vmem:[#allocation4 + $0x388] sm:$0xff]
    %v267 = vld [vmem:[#allocation4 + $0x390] sm:$0xff]
    %v268 = vld [vmem:[#allocation4 + $0x398] sm:$0xff]
    %v269 = vld [vmem:[#allocation4 + $0x3a0] sm:$0xff]
    %v270 = vld [vmem:[#allocation4 + $0x3a8] sm:$0xff]
    %v271 = vld [vmem:[#allocation4 + $0x3b0] sm:$0xff]
    %v272 = vld [vmem:[#allocation4 + $0x3b8] sm:$0xff]
    %v273 = vld [vmem:[#allocation4 + $0x3c0] sm:$0xff]
    %v274 = vld [vmem:[#allocation4 + $0x3c8] sm:$0xff]
    %v275 = vld [vmem:[#allocation4 + $0x3d0] sm:$0xff]
    %v276 = vld [vmem:[#allocation4 + $0x3d8] sm:$0xff]
    %v277 = vld [vmem:[#allocation4 + $0x3e0] sm:$0xff]
    %v278 = vld [vmem:[#allocation4 + $0x3e8] sm:$0xff]
    %v279 = vld [vmem:[#allocation4 + $0x3f0] sm:$0xff]
    %v280 = vld [vmem:[#allocation4 + $0x3f8] sm:$0xff]
    %v281 = vld [vmem:[#allocation4 + $0x400] sm:$0xff]
    %v282 = vld [vmem:[#allocation4 + $0x408] sm:$0xff]
    %v283 = vld [vmem:[#allocation4 + $0x410] sm:$0xff]
    %v284 = vld [vmem:[#allocation4 + $0x418] sm:$0xff]
    %v285 = vld [vmem:[#allocation4 + $0x420] sm:$0xff]
    %v286 = vld [vmem:[#allocation4 + $0x428] sm:$0xff]
    %v287 = vld [vmem:[#allocation4 + $0x430] sm:$0xff]
    %v288 = vld [vmem:[#allocation4 + $0x438] sm:$0xff]
    %v289 = vld [vmem:[#allocation4 + $0x440] sm:$0xff]
    %v290 = vld [vmem:[#allocation4 + $0x448] sm:$0xff]
    %v291 = vld [vmem:[#allocation4 + $0x450] sm:$0xff]
    %v292 = vld [vmem:[#allocation4 + $0x458] sm:$0xff]
    %v293 = vld [vmem:[#allocation4 + $0x460] sm:$0xff]
    %v294 = vld [vmem:[#allocation4 + $0x468] sm:$0xff]
    %v295 = vld [vmem:[#allocation4 + $0x470] sm:$0xff]
    %v296 = vld [vmem:[#allocation4 + $0x478] sm:$0xff]
    %v297 = vld [vmem:[#allocation4 + $0x480] sm:$0xff]
    %v298 = vld [vmem:[#allocation4 + $0x488] sm:$0xff]
    %v299 = vld [vmem:[#allocation4 + $0x490] sm:$0xff]
    %v300 = vld [vmem:[#allocation4 + $0x498] sm:$0xff]
    %v301 = vld [vmem:[#allocation4 + $0x4a0] sm:$0xff]
    %v302 = vld [vmem:[#allocation4 + $0x4a8] sm:$0xff]
    %v303 = vld [vmem:[#allocation4 + $0x4b0] sm:$0xff]
    %v304 = vld [vmem:[#allocation4 + $0x4b8] sm:$0xff]
    %v305 = vld [vmem:[#allocation4 + $0x4c0] sm:$0xff]
    %v306 = vld [vmem:[#allocation4 + $0x4c8] sm:$0xff]
    %v307 = vld [vmem:[#allocation4 + $0x4d0] sm:$0xff]
    %v308 = vld [vmem:[#allocation4 + $0x4d8] sm:$0xff]
    %v309 = vld [vmem:[#allocation4 + $0x4e0] sm:$0xff]
    %v310 = vld [vmem:[#allocation4 + $0x4e8] sm:$0xff]
    %v311 = vld [vmem:[#allocation4 + $0x4f0] sm:$0xff]
    %v312 = vld [vmem:[#allocation4 + $0x4f8] sm:$0xff]
    %v313 = vld [vmem:[#allocation4 + $0x500] sm:$0xff]
    %v314 = vld [vmem:[#allocation4 + $0x508] sm:$0xff]
    %v315 = vld [vmem:[#allocation4 + $0x510] sm:$0xff]
    %v316 = vld [vmem:[#allocation4 + $0x518] sm:$0xff]
    %v317 = vld [vmem:[#allocation4 + $0x520] sm:$0xff]
    %v318 = vld [vmem:[#allocation4 + $0x528] sm:$0xff]
    %v319 = vld [vmem:[#allocation4 + $0x530] sm:$0xff]
    %v320 = vld [vmem:[#allocation4 + $0x538] sm:$0xff]
    %v321 = vld [vmem:[#allocation4 + $0x540] sm:$0xff]
    %v322 = vld [vmem:[#allocation4 + $0x548] sm:$0xff]
    %v323 = vld [vmem:[#allocation4 + $0x550] sm:$0xff]
    %v324 = vld [vmem:[#allocation4 + $0x558] sm:$0xff]
    %v325 = vld [vmem:[#allocation4 + $0x560] sm:$0xff]
    %v326 = vld [vmem:[#allocation4 + $0x568] sm:$0xff]
    %v327 = vld [vmem:[#allocation4 + $0x570] sm:$0xff]
    %v328 = vld [vmem:[#allocation4 + $0x578] sm:$0xff]
    %v329 = vld [vmem:[#allocation4 + $0x580] sm:$0xff]
    %v330 = vld [vmem:[#allocation4 + $0x588] sm:$0xff]
    %v331 = vld [vmem:[#allocation4 + $0x590] sm:$0xff]
    %v332 = vld [vmem:[#allocation4 + $0x598] sm:$0xff]
    %v333 = vld [vmem:[#allocation4 + $0x5a0] sm:$0xff]
    %v334 = vld [vmem:[#allocation4 + $0x5a8] sm:$0xff]
    %v335 = vld [vmem:[#allocation4 + $0x5b0] sm:$0xff]
    %v336 = vld [vmem:[#allocation4 + $0x5b8] sm:$0xff]
    %v337 = vld [vmem:[#allocation4 + $0x5c0] sm:$0xff]
    %v338 = vld [vmem:[#allocation4 + $0x5c8] sm:$0xff]
    %v339 = vld [vmem:[#allocation4 + $0x5d0] sm:$0xff]
    %v340 = vld [vmem:[#allocation4 + $0x5d8] sm:$0xff]
    %v341 = vld [vmem:[#allocation4 + $0x5e0] sm:$0xff]
    %v342 = vld [vmem:[#allocation4 + $0x5e8] sm:$0xff]
    %v343 = vld [vmem:[#allocation4 + $0x5f0] sm:$0xff]
    %v344 = vld [vmem:[#allocation4 + $0x5f8] sm:$0xff]
    %v345 = vld [vmem:[#allocation4 + $0x600] sm:$0xff]
    %v346 = vld [vmem:[#allocation4 + $0x608] sm:$0xff]
    %v347 = vld [vmem:[#allocation4 + $0x610] sm:$0xff]
    %v348 = vld [vmem:[#allocation4 + $0x618] sm:$0xff]
    %v349 = vld [vmem:[#allocation4 + $0x620] sm:$0xff]
    %v350 = vld [vmem:[#allocation4 + $0x628] sm:$0xff]
    %v351 = vld [vmem:[#allocation4 + $0x630] sm:$0xff]
    %v352 = vld [vmem:[#allocation4 + $0x638] sm:$0xff]
    %v353 = vld [vmem:[#allocation4 + $0x640] sm:$0xff]
    %v354 = vld [vmem:[#allocation4 + $0x648] sm:$0xff]
    %v355 = vld [vmem:[#allocation4 + $0x650] sm:$0xff]
    %v356 = vld [vmem:[#allocation4 + $0x658] sm:$0xff]
    %v357 = vld [vmem:[#allocation4 + $0x660] sm:$0xff]
    %v358 = vld [vmem:[#allocation4 + $0x668] sm:$0xff]
    %v359 = vld [vmem:[#allocation4 + $0x670] sm:$0xff]
    %v360 = vld [vmem:[#allocation4 + $0x678] sm:$0xff]
    %v361 = vld [vmem:[#allocation4 + $0x680] sm:$0xff]
    %v362 = vld [vmem:[#allocation4 + $0x688] sm:$0xff]
    %v363 = vld [vmem:[#allocation4 + $0x690] sm:$0xff]
    %v364 = vld [vmem:[#allocation4 + $0x698] sm:$0xff]
    %v365 = vld [vmem:[#allocation4 + $0x6a0] sm:$0xff]
    %v366 = vld [vmem:[#allocation4 + $0x6a8] sm:$0xff]
    %v367 = vld [vmem:[#allocation4 + $0x6b0] sm:$0xff]
    %v368 = vld [vmem:[#allocation4 + $0x6b8] sm:$0xff]
    %v369 = vld [vmem:[#allocation4 + $0x6c0] sm:$0xff]
    %v370 = vld [vmem:[#allocation4 + $0x6c8] sm:$0xff]
    %v371 = vld [vmem:[#allocation4 + $0x6d0] sm:$0xff]
    %v372 = vld [vmem:[#allocation4 + $0x6d8] sm:$0xff]
    %v373 = vld [vmem:[#allocation4 + $0x6e0] sm:$0xff]
    %v374 = vld [vmem:[#allocation4 + $0x6e8] sm:$0xff]
    %v375 = vld [vmem:[#allocation4 + $0x6f0] sm:$0xff]
    %v376 = vld [vmem:[#allocation4 + $0x6f8] sm:$0xff]
    %v377 = vld [vmem:[#allocation4 + $0x700] sm:$0xff]
    %v378 = vld [vmem:[#allocation4 + $0x708] sm:$0xff]
    %v379 = vld [vmem:[#allocation4 + $0x710] sm:$0xff]
    %v380 = vld [vmem:[#allocation4 + $0x718] sm:$0xff]
    %v381 = vld [vmem:[#allocation4 + $0x720] sm:$0xff]
    %v382 = vld [vmem:[#allocation4 + $0x728] sm:$0xff]
    %v383 = vld [vmem:[#allocation4 + $0x730] sm:$0xff]
    %v384 = vld [vmem:[#allocation4 + $0x738] sm:$0xff]
    %v385 = vld [vmem:[#allocation4 + $0x740] sm:$0xff]
    %v386 = vld [vmem:[#allocation4 + $0x748] sm:$0xff]
    %v387 = vld [vmem:[#allocation4 + $0x750] sm:$0xff]
    %v388 = vld [vmem:[#allocation4 + $0x758] sm:$0xff]
    %v389 = vld [vmem:[#allocation4 + $0x760] sm:$0xff]
    %v390 = vld [vmem:[#allocation4 + $0x768] sm:$0xff]
    %v391 = vld [vmem:[#allocation4 + $0x770] sm:$0xff]
    %v392 = vld [vmem:[#allocation4 + $0x778] sm:$0xff]
    %v393 = vld [vmem:[#allocation4 + $0x780] sm:$0xff]
    %v394 = vld [vmem:[#allocation4 + $0x788] sm:$0xff]
    %v395 = vld [vmem:[#allocation4 + $0x790] sm:$0xff]
    %v396 = vld [vmem:[#allocation4 + $0x798] sm:$0xff]
    %v397 = vld [vmem:[#allocation4 + $0x7a0] sm:$0xff]
    %v398 = vld [vmem:[#allocation4 + $0x7a8] sm:$0xff]
    %v399 = vld [vmem:[#allocation4 + $0x7b0] sm:$0xff]
    %v400 = vld [vmem:[#allocation4 + $0x7b8] sm:$0xff]
    %v401 = vld [vmem:[#allocation4 + $0x7c0] sm:$0xff]
    %v402 = vld [vmem:[#allocation4 + $0x7c8] sm:$0xff]
    %v403 = vld [vmem:[#allocation4 + $0x7d0] sm:$0xff]
    %v404 = vld [vmem:[#allocation4 + $0x7d8] sm:$0xff]
    %v405 = vld [vmem:[#allocation4 + $0x7e0] sm:$0xff]
    %v406 = vld [vmem:[#allocation4 + $0x7e8] sm:$0xff]
    %v407 = vld [vmem:[#allocation4 + $0x7f0] sm:$0xff]
    %v408 = vld [vmem:[#allocation4 + $0x7f8] sm:$0xff]
    %v409 = vld [vmem:[#allocation4 + $0x800] sm:$0xff]
    %v410 = vld [vmem:[#allocation4 + $0x808] sm:$0xff]
    %v411 = vld [vmem:[#allocation4 + $0x810] sm:$0xff]
    %v412 = vld [vmem:[#allocation4 + $0x818] sm:$0xff]
    %v413 = vld [vmem:[#allocation4 + $0x820] sm:$0xff]
    %v414 = vld [vmem:[#allocation4 + $0x828] sm:$0xff]
    %v415 = vld [vmem:[#allocation4 + $0x830] sm:$0xff]
    %v416 = vld [vmem:[#allocation4 + $0x838] sm:$0xff]
    %v417 = vld [vmem:[#allocation4 + $0x840] sm:$0xff]
    %v418 = vld [vmem:[#allocation4 + $0x848] sm:$0xff]
    %v419 = vld [vmem:[#allocation4 + $0x850] sm:$0xff]
    %v420 = vld [vmem:[#allocation4 + $0x858] sm:$0xff]
    %v421 = vld [vmem:[#allocation4 + $0x860] sm:$0xff]
    %v422 = vld [vmem:[#allocation4 + $0x868] sm:$0xff]
    %v423 = vld [vmem:[#allocation4 + $0x870] sm:$0xff]
    %v424 = vld [vmem:[#allocation4 + $0x878] sm:$0xff]
    %v425 = vld [vmem:[#allocation4 + $0x880] sm:$0xff]
    %v426 = vld [vmem:[#allocation4 + $0x888] sm:$0xff]
    %v427 = vld [vmem:[#allocation4 + $0x890] sm:$0xff]
    %v428 = vld [vmem:[#allocation4 + $0x898] sm:$0xff]
    %v429 = vld [vmem:[#allocation4 + $0x8a0] sm:$0xff]
    %v430 = vld [vmem:[#allocation4 + $0x8a8] sm:$0xff]
    %v431 = vld [vmem:[#allocation4 + $0x8b0] sm:$0xff]
    %v432 = vld [vmem:[#allocation4 + $0x8b8] sm:$0xff]
    %v433 = vld [vmem:[#allocation4 + $0x8c0] sm:$0xff]
    %v434 = vld [vmem:[#allocation4 + $0x8c8] sm:$0xff]
    %v435 = vld [vmem:[#allocation4 + $0x8d0] sm:$0xff]
    %v436 = vld [vmem:[#allocation4 + $0x8d8] sm:$0xff]
    %v437 = vld [vmem:[#allocation4 + $0x8e0] sm:$0xff]
    %v438 = vld [vmem:[#allocation4 + $0x8e8] sm:$0xff]
    %v439 = vld [vmem:[#allocation4 + $0x8f0] sm:$0xff]
    %v440 = vld [vmem:[#allocation4 + $0x8f8] sm:$0xff]
    %v441 = vld [vmem:[#allocation4 + $0x900] sm:$0xff]
    %v442 = vld [vmem:[#allocation4 + $0x908] sm:$0xff]
    %v443 = vld [vmem:[#allocation4 + $0x910] sm:$0xff]
    %v444 = vld [vmem:[#allocation4 + $0x918] sm:$0xff]
    %v445 = vld [vmem:[#allocation4 + $0x920] sm:$0xff]
    %v446 = vld [vmem:[#allocation4 + $0x928] sm:$0xff]
    %v447 = vld [vmem:[#allocation4 + $0x930] sm:$0xff]
    %v448 = vld [vmem:[#allocation4 + $0x938] sm:$0xff]
    %v449 = vld [vmem:[#allocation4 + $0x940] sm:$0xff]
    %v450 = vld [vmem:[#allocation4 + $0x948] sm:$0xff]
    %v451 = vld [vmem:[#allocation4 + $0x950] sm:$0xff]
    %v452 = vld [vmem:[#allocation4 + $0x958] sm:$0xff]
    %v453 = vld [vmem:[#allocation4 + $0x960] sm:$0xff]
    %v454 = vld [vmem:[#allocation4 + $0x968] sm:$0xff]
    %v455 = vld [vmem:[#allocation4 + $0x970] sm:$0xff]
    %v456 = vld [vmem:[#allocation4 + $0x978] sm:$0xff]
    %v457 = vld [vmem:[#allocation4 + $0x980] sm:$0xff]
    %v458 = vld [vmem:[#allocation4 + $0x988] sm:$0xff]
    %v459 = vld [vmem:[#allocation4 + $0x990] sm:$0xff]
    %v460 = vld [vmem:[#allocation4 + $0x998] sm:$0xff]
    %v461 = vld [vmem:[#allocation4 + $0x9a0] sm:$0xff]
    %v462 = vld [vmem:[#allocation4 + $0x9a8] sm:$0xff]
    %v463 = vld [vmem:[#allocation4 + $0x9b0] sm:$0xff]
    %v464 = vld [vmem:[#allocation4 + $0x9b8] sm:$0xff]
    %v465 = vld [vmem:[#allocation4 + $0x9c0] sm:$0xff]
    %v466 = vld [vmem:[#allocation4 + $0x9c8] sm:$0xff]
    %v467 = vld [vmem:[#allocation4 + $0x9d0] sm:$0xff]
    %v468 = vld [vmem:[#allocation4 + $0x9d8] sm:$0xff]
    %v469 = vld [vmem:[#allocation4 + $0x9e0] sm:$0xff]
    %v470 = vld [vmem:[#allocation4 + $0x9e8] sm:$0xff]
    %v471 = vld [vmem:[#allocation4 + $0x9f0] sm:$0xff]
    %v472 = vld [vmem:[#allocation4 + $0x9f8] sm:$0xff]
    %v473 = vld [vmem:[#allocation4 + $0xa00] sm:$0xff]
    %v474 = vld [vmem:[#allocation4 + $0xa08] sm:$0xff]
    %v475 = vld [vmem:[#allocation4 + $0xa10] sm:$0xff]
    %v476 = vld [vmem:[#allocation4 + $0xa18] sm:$0xff]
    %v477 = vld [vmem:[#allocation4 + $0xa20] sm:$0xff]
    %v478 = vld [vmem:[#allocation4 + $0xa28] sm:$0xff]
    %v479 = vld [vmem:[#allocation4 + $0xa30] sm:$0xff]
    %v480 = vld [vmem:[#allocation4 + $0xa38] sm:$0xff]
    %v481 = vld [vmem:[#allocation4 + $0xa40] sm:$0xff]
    %v482 = vld [vmem:[#allocation4 + $0xa48] sm:$0xff]
    %v483 = vld [vmem:[#allocation4 + $0xa50] sm:$0xff]
    %v484 = vld [vmem:[#allocation4 + $0xa58] sm:$0xff]
    %v485 = vld [vmem:[#allocation4 + $0xa60] sm:$0xff]
    %v486 = vld [vmem:[#allocation4 + $0xa68] sm:$0xff]
    %v487 = vld [vmem:[#allocation4 + $0xa70] sm:$0xff]
    %v488 = vld [vmem:[#allocation4 + $0xa78] sm:$0xff]
    %v489 = vld [vmem:[#allocation4 + $0xa80] sm:$0xff]
    %v490 = vld [vmem:[#allocation4 + $0xa88] sm:$0xff]
    %v491 = vld [vmem:[#allocation4 + $0xa90] sm:$0xff]
    %v492 = vld [vmem:[#allocation4 + $0xa98] sm:$0xff]
    %v493 = vld [vmem:[#allocation4 + $0xaa0] sm:$0xff]
    %v494 = vld [vmem:[#allocation4 + $0xaa8] sm:$0xff]
    %v495 = vld [vmem:[#allocation4 + $0xab0] sm:$0xff]
    %v496 = vld [vmem:[#allocation4 + $0xab8] sm:$0xff]
    %v497 = vld [vmem:[#allocation4 + $0xac0] sm:$0xff]
    %v498 = vld [vmem:[#allocation4 + $0xac8] sm:$0xff]
    %v499 = vld [vmem:[#allocation4 + $0xad0] sm:$0xff]
    %v500 = vld [vmem:[#allocation4 + $0xad8] sm:$0xff]
    %v501 = vld [vmem:[#allocation4 + $0xae0] sm:$0xff]
    %v502 = vld [vmem:[#allocation4 + $0xae8] sm:$0xff]
    %v503 = vld [vmem:[#allocation4 + $0xaf0] sm:$0xff]
    %v504 = vld [vmem:[#allocation4 + $0xaf8] sm:$0xff]
    %v505 = vld [vmem:[#allocation4 + $0xb00] sm:$0xff]
    %v506 = vld [vmem:[#allocation4 + $0xb08] sm:$0xff]
    %v507 = vld [vmem:[#allocation4 + $0xb10] sm:$0xff]
    %v508 = vld [vmem:[#allocation4 + $0xb18] sm:$0xff]
    %v509 = vld [vmem:[#allocation4 + $0xb20] sm:$0xff]
    %v510 = vld [vmem:[#allocation4 + $0xb28] sm:$0xff]
    %v511 = vld [vmem:[#allocation4 + $0xb30] sm:$0xff]
    %v512 = vld [vmem:[#allocation4 + $0xb38] sm:$0xff]
    %v513 = vld [vmem:[#allocation4 + $0xb40] sm:$0xff]
    %v514 = vld [vmem:[#allocation4 + $0xb48] sm:$0xff]
    %v515 = vld [vmem:[#allocation4 + $0xb50] sm:$0xff]
    %v516 = vld [vmem:[#allocation4 + $0xb58] sm:$0xff]
    %v517 = vld [vmem:[#allocation4 + $0xb60] sm:$0xff]
    %v518 = vld [vmem:[#allocation4 + $0xb68] sm:$0xff]
    %v519 = vld [vmem:[#allocation4 + $0xb70] sm:$0xff]
    %v520 = vld [vmem:[#allocation4 + $0xb78] sm:$0xff]
    %v521 = vld [vmem:[#allocation4 + $0xb80] sm:$0xff]
    %v522 = vld [vmem:[#allocation4 + $0xb88] sm:$0xff]
    %v523 = vld [vmem:[#allocation4 + $0xb90] sm:$0xff]
    %v524 = vld [vmem:[#allocation4 + $0xb98] sm:$0xff]
    %v525 = vld [vmem:[#allocation4 + $0xba0] sm:$0xff]
    %v526 = vld [vmem:[#allocation4 + $0xba8] sm:$0xff]
    %v527 = vld [vmem:[#allocation4 + $0xbb0] sm:$0xff]
    %v528 = vld [vmem:[#allocation4 + $0xbb8] sm:$0xff]
    %v529 = vld [vmem:[#allocation4 + $0xbc0] sm:$0xff]
    %v530 = vld [vmem:[#allocation4 + $0xbc8] sm:$0xff]
    %v531 = vld [vmem:[#allocation4 + $0xbd0] sm:$0xff]
    %v532 = vld [vmem:[#allocation4 + $0xbd8] sm:$0xff]
    %v533 = vld [vmem:[#allocation4 + $0xbe0] sm:$0xff]
    %v534 = vld [vmem:[#allocation4 + $0xbe8] sm:$0xff]
    %v535 = vld [vmem:[#allocation4 + $0xbf0] sm:$0xff]
    %v536 = vld [vmem:[#allocation4 + $0xbf8] sm:$0xff]
    %v537 = vld [vmem:[#allocation4 + $0xc00] sm:$0xff]
    %v538 = vld [vmem:[#allocation4 + $0xc08] sm:$0xff]
    %v539 = vld [vmem:[#allocation4 + $0xc10] sm:$0xff]
    %v540 = vld [vmem:[#allocation4 + $0xc18] sm:$0xff]
    %v541 = vld [vmem:[#allocation4 + $0xc20] sm:$0xff]
    %v542 = vld [vmem:[#allocation4 + $0xc28] sm:$0xff]
    %v543 = vld [vmem:[#allocation4 + $0xc30] sm:$0xff]
    %v544 = vld [vmem:[#allocation4 + $0xc38] sm:$0xff]
    %v545 = vld [vmem:[#allocation4 + $0xc40] sm:$0xff]
    %v546 = vld [vmem:[#allocation4 + $0xc48] sm:$0xff]
    %v547 = vld [vmem:[#allocation4 + $0xc50] sm:$0xff]
    %v548 = vld [vmem:[#allocation4 + $0xc58] sm:$0xff]
    %v549 = vld [vmem:[#allocation4 + $0xc60] sm:$0xff]
    %v550 = vld [vmem:[#allocation4 + $0xc68] sm:$0xff]
    %v551 = vld [vmem:[#allocation4 + $0xc70] sm:$0xff]
    %v552 = vld [vmem:[#allocation4 + $0xc78] sm:$0xff]
    %v553 = vld [vmem:[#allocation4 + $0xc80] sm:$0xff]
    %v554 = vld [vmem:[#allocation4 + $0xc88] sm:$0xff]
    %v555 = vld [vmem:[#allocation4 + $0xc90] sm:$0xff]
    %v556 = vld [vmem:[#allocation4 + $0xc98] sm:$0xff]
    %v557 = vld [vmem:[#allocation4 + $0xca0] sm:$0xff]
    %v558 = vld [vmem:[#allocation4 + $0xca8] sm:$0xff]
    %v559 = vld [vmem:[#allocation4 + $0xcb0] sm:$0xff]
    %v560 = vld [vmem:[#allocation4 + $0xcb8] sm:$0xff]
    %v561 = vld [vmem:[#allocation4 + $0xcc0] sm:$0xff]
    %v562 = vld [vmem:[#allocation4 + $0xcc8] sm:$0xff]
    %v563 = vld [vmem:[#allocation4 + $0xcd0] sm:$0xff]
    %v564 = vld [vmem:[#allocation4 + $0xcd8] sm:$0xff]
    %v565 = vld [vmem:[#allocation4 + $0xce0] sm:$0xff]
    %v566 = vld [vmem:[#allocation4 + $0xce8] sm:$0xff]
    %v567 = vld [vmem:[#allocation4 + $0xcf0] sm:$0xff]
    %v568 = vld [vmem:[#allocation4 + $0xcf8] sm:$0xff]
    %v569 = vld [vmem:[#allocation4 + $0xd00] sm:$0xff]
    %v570 = vld [vmem:[#allocation4 + $0xd08] sm:$0xff]
    %v571 = vld [vmem:[#allocation4 + $0xd10] sm:$0xff]
    %v572 = vld [vmem:[#allocation4 + $0xd18] sm:$0xff]
    %v573 = vld [vmem:[#allocation4 + $0xd20] sm:$0xff]
    %v574 = vld [vmem:[#allocation4 + $0xd28] sm:$0xff]
    %v575 = vld [vmem:[#allocation4 + $0xd30] sm:$0xff]
    %v576 = vld [vmem:[#allocation4 + $0xd38] sm:$0xff]
    %v577 = vld [vmem:[#allocation4 + $0xd40] sm:$0xff]
    %v578 = vld [vmem:[#allocation4 + $0xd48] sm:$0xff]
    %v579 = vld [vmem:[#allocation4 + $0xd50] sm:$0xff]
    %v580 = vld [vmem:[#allocation4 + $0xd58] sm:$0xff]
    %v581 = vld [vmem:[#allocation4 + $0xd60] sm:$0xff]
    %v582 = vld [vmem:[#allocation4 + $0xd68] sm:$0xff]
    %v583 = vld [vmem:[#allocation4 + $0xd70] sm:$0xff]
    %v584 = vld [vmem:[#allocation4 + $0xd78] sm:$0xff]
    %v585 = vld [vmem:[#allocation4 + $0xd80] sm:$0xff]
    %v586 = vld [vmem:[#allocation4 + $0xd88] sm:$0xff]
    %v587 = vld [vmem:[#allocation4 + $0xd90] sm:$0xff]
    %v588 = vld [vmem:[#allocation4 + $0xd98] sm:$0xff]
    %v589 = vld [vmem:[#allocation4 + $0xda0] sm:$0xff]
    %v590 = vld [vmem:[#allocation4 + $0xda8] sm:$0xff]
    %v591 = vld [vmem:[#allocation4 + $0xdb0] sm:$0xff]
    %v592 = vld [vmem:[#allocation4 + $0xdb8] sm:$0xff]
    %v593 = vld [vmem:[#allocation4 + $0xdc0] sm:$0xff]
    %v594 = vld [vmem:[#allocation4 + $0xdc8] sm:$0xff]
    %v595 = vld [vmem:[#allocation4 + $0xdd0] sm:$0xff]
    %v596 = vld [vmem:[#allocation4 + $0xdd8] sm:$0xff]
    %v597 = vld [vmem:[#allocation4 + $0xde0] sm:$0xff]
    %v598 = vld [vmem:[#allocation4 + $0xde8] sm:$0xff]
    %v599 = vld [vmem:[#allocation4 + $0xdf0] sm:$0xff]
    %v600 = vld [vmem:[#allocation4 + $0xdf8] sm:$0xff]
    %v601 = vld [vmem:[#allocation4 + $0xe00] sm:$0xff]
    %v602 = vld [vmem:[#allocation4 + $0xe08] sm:$0xff]
    %v603 = vld [vmem:[#allocation4 + $0xe10] sm:$0xff]
    %v604 = vld [vmem:[#allocation4 + $0xe18] sm:$0xff]
    %v605 = vld [vmem:[#allocation4 + $0xe20] sm:$0xff]
    %v606 = vld [vmem:[#allocation4 + $0xe28] sm:$0xff]
    %v607 = vld [vmem:[#allocation4 + $0xe30] sm:$0xff]
    %v608 = vld [vmem:[#allocation4 + $0xe38] sm:$0xff]
    %v609 = vld [vmem:[#allocation4 + $0xe40] sm:$0xff]
    %v610 = vld [vmem:[#allocation4 + $0xe48] sm:$0xff]
    %v611 = vld [vmem:[#allocation4 + $0xe50] sm:$0xff]
    %v612 = vld [vmem:[#allocation4 + $0xe58] sm:$0xff]
    %v613 = vld [vmem:[#allocation4 + $0xe60] sm:$0xff]
    %v614 = vld [vmem:[#allocation4 + $0xe68] sm:$0xff]
    %v615 = vld [vmem:[#allocation4 + $0xe70] sm:$0xff]
    %v616 = vld [vmem:[#allocation4 + $0xe78] sm:$0xff]
    %v617 = vld [vmem:[#allocation4 + $0xe80] sm:$0xff]
    %v618 = vld [vmem:[#allocation4 + $0xe88] sm:$0xff]
    %v619 = vld [vmem:[#allocation4 + $0xe90] sm:$0xff]
    %v620 = vld [vmem:[#allocation4 + $0xe98] sm:$0xff]
    %v621 = vld [vmem:[#allocation4 + $0xea0] sm:$0xff]
    %v622 = vld [vmem:[#allocation4 + $0xea8] sm:$0xff]
    %v623 = vld [vmem:[#allocation4 + $0xeb0] sm:$0xff]
    %v624 = vld [vmem:[#allocation4 + $0xeb8] sm:$0xff]
    %v625 = vld [vmem:[#allocation4 + $0xec0] sm:$0xff]
    %v626 = vld [vmem:[#allocation4 + $0xec8] sm:$0xff]
    %v627 = vld [vmem:[#allocation4 + $0xed0] sm:$0xff]
    %v628 = vld [vmem:[#allocation4 + $0xed8] sm:$0xff]
    %v629 = vld [vmem:[#allocation4 + $0xee0] sm:$0xff]
    %v630 = vld [vmem:[#allocation4 + $0xee8] sm:$0xff]
    %v631 = vld [vmem:[#allocation4 + $0xef0] sm:$0xff]
    %v632 = vld [vmem:[#allocation4 + $0xef8] sm:$0xff]
    %v633 = vld [vmem:[#allocation4 + $0xf00] sm:$0xff]
    %v634 = vld [vmem:[#allocation4 + $0xf08] sm:$0xff]
    %v635 = vld [vmem:[#allocation4 + $0xf10] sm:$0xff]
    %v636 = vld [vmem:[#allocation4 + $0xf18] sm:$0xff]
    %v637 = vld [vmem:[#allocation4 + $0xf20] sm:$0xff]
    %v638 = vld [vmem:[#allocation4 + $0xf28] sm:$0xff]
    %v639 = vld [vmem:[#allocation4 + $0xf30] sm:$0xff]
    %v640 = vld [vmem:[#allocation4 + $0xf38] sm:$0xff]
    %v641 = vld [vmem:[#allocation4 + $0xf40] sm:$0xff]
    %v642 = vld [vmem:[#allocation4 + $0xf48] sm:$0xff]
    %v643 = vld [vmem:[#allocation4 + $0xf50] sm:$0xff]
    %v644 = vld [vmem:[#allocation4 + $0xf58] sm:$0xff]
    %v645 = vld [vmem:[#allocation4 + $0xf60] sm:$0xff]
    %v646 = vld [vmem:[#allocation4 + $0xf68] sm:$0xff]
    %v647 = vld [vmem:[#allocation4 + $0xf70] sm:$0xff]
    %v648 = vld [vmem:[#allocation4 + $0xf78] sm:$0xff]
    %v649 = vld [vmem:[#allocation4 + $0xf80] sm:$0xff]
    %v650 = vld [vmem:[#allocation4 + $0xf88] sm:$0xff]
    %v651 = vld [vmem:[#allocation4 + $0xf90] sm:$0xff]
    %v652 = vld [vmem:[#allocation4 + $0xf98] sm:$0xff]
    %v653 = vld [vmem:[#allocation4 + $0xfa0] sm:$0xff]
    %v654 = vld [vmem:[#allocation4 + $0xfa8] sm:$0xff]
    %v655 = vld [vmem:[#allocation4 + $0xfb0] sm:$0xff]
    %v656 = vld [vmem:[#allocation4 + $0xfb8] sm:$0xff]
    %v657 = vld [vmem:[#allocation4 + $0xfc0] sm:$0xff]
    %v658 = vld [vmem:[#allocation4 + $0xfc8] sm:$0xff]
    %v659 = vld [vmem:[#allocation4 + $0xfd0] sm:$0xff]
    %v660 = vld [vmem:[#allocation4 + $0xfd8] sm:$0xff]
    %v661 = vld [vmem:[#allocation4 + $0xfe0] sm:$0xff]
    %v662 = vld [vmem:[#allocation4 + $0xfe8] sm:$0xff]
    %v663 = vld [vmem:[#allocation4 + $0xff0] sm:$0xff]
    %v664 = vld [vmem:[#allocation4 + $0xff8] sm:$0xff]
    %v665 = vld [vmem:[#allocation4 + $0x1000] sm:$0xff]
    %v666 = vld [vmem:[#allocation4 + $0x1008] sm:$0xff]
    %v667 = vld [vmem:[#allocation4 + $0x1010] sm:$0xff]
    %v668 = vld [vmem:[#allocation4 + $0x1018] sm:$0xff]
    %v669 = vld [vmem:[#allocation4 + $0x1020] sm:$0xff]
    %v670 = vld [vmem:[#allocation4 + $0x1028] sm:$0xff]
    %v671 = vld [vmem:[#allocation4 + $0x1030] sm:$0xff]
    %v672 = vld [vmem:[#allocation4 + $0x1038] sm:$0xff]
    %v673 = vld [vmem:[#allocation4 + $0x1040] sm:$0xff]
    %v674 = vld [vmem:[#allocation4 + $0x1048] sm:$0xff]
    %v675 = vld [vmem:[#allocation4 + $0x1050] sm:$0xff]
    %v676 = vld [vmem:[#allocation4 + $0x1058] sm:$0xff]
    %v677 = vld [vmem:[#allocation4 + $0x1060] sm:$0xff]
    %v678 = vld [vmem:[#allocation4 + $0x1068] sm:$0xff]
    %v679 = vld [vmem:[#allocation4 + $0x1070] sm:$0xff]
    %v680 = vld [vmem:[#allocation4 + $0x1078] sm:$0xff]
    %v681 = vld [vmem:[#allocation4 + $0x1080] sm:$0xff]
    %v682 = vld [vmem:[#allocation4 + $0x1088] sm:$0xff]
    %v683 = vld [vmem:[#allocation4 + $0x1090] sm:$0xff]
    %v684 = vld [vmem:[#allocation4 + $0x1098] sm:$0xff]
    %v685 = vld [vmem:[#allocation4 + $0x10a0] sm:$0xff]
    %v686 = vld [vmem:[#allocation4 + $0x10a8] sm:$0xff]
    %v687 = vld [vmem:[#allocation4 + $0x10b0] sm:$0xff]
    %v688 = vld [vmem:[#allocation4 + $0x10b8] sm:$0xff]
    %v689 = vld [vmem:[#allocation4 + $0x10c0] sm:$0xff]
    %v690 = vld [vmem:[#allocation4 + $0x10c8] sm:$0xff]
    %v691 = vld [vmem:[#allocation4 + $0x10d0] sm:$0xff]
    %v692 = vld [vmem:[#allocation4 + $0x10d8] sm:$0xff]
    %v693 = vld [vmem:[#allocation4 + $0x10e0] sm:$0xff]
    %v694 = vld [vmem:[#allocation4 + $0x10e8] sm:$0xff]
    %v695 = vld [vmem:[#allocation4 + $0x10f0] sm:$0xff]
    %v696 = vld [vmem:[#allocation4 + $0x10f8] sm:$0xff]
    %v697 = vld [vmem:[#allocation4 + $0x1100] sm:$0xff]
    %v698 = vld [vmem:[#allocation4 + $0x1108] sm:$0xff]
    %v699 = vld [vmem:[#allocation4 + $0x1110] sm:$0xff]
    %v700 = vld [vmem:[#allocation4 + $0x1118] sm:$0xff]
    %v701 = vld [vmem:[#allocation4 + $0x1120] sm:$0xff]
    %v702 = vld [vmem:[#allocation4 + $0x1128] sm:$0xff]
    %v703 = vld [vmem:[#allocation4 + $0x1130] sm:$0xff]
    %v704 = vld [vmem:[#allocation4 + $0x1138] sm:$0xff]
    %v705 = vld [vmem:[#allocation4 + $0x1140] sm:$0xff]
    %v706 = vld [vmem:[#allocation4 + $0x1148] sm:$0xff]
    %v707 = vld [vmem:[#allocation4 + $0x1150] sm:$0xff]
    %v708 = vld [vmem:[#allocation4 + $0x1158] sm:$0xff]
    %v709 = vld [vmem:[#allocation4 + $0x1160] sm:$0xff]
    %v710 = vld [vmem:[#allocation4 + $0x1168] sm:$0xff]
    %v711 = vld [vmem:[#allocation4 + $0x1170] sm:$0xff]
    %v712 = vld [vmem:[#allocation4 + $0x1178] sm:$0xff]
    %v713 = vld [vmem:[#allocation4 + $0x1180] sm:$0xff]
    %v714 = vld [vmem:[#allocation4 + $0x1188] sm:$0xff]
    %v715 = vld [vmem:[#allocation4 + $0x1190] sm:$0xff]
    %v716 = vld [vmem:[#allocation4 + $0x1198] sm:$0xff]
    %v717 = vld [vmem:[#allocation4 + $0x11a0] sm:$0xff]
    %v718 = vld [vmem:[#allocation4 + $0x11a8] sm:$0xff]
    %v719 = vld [vmem:[#allocation4 + $0x11b0] sm:$0xff]
    %v720 = vld [vmem:[#allocation4 + $0x11b8] sm:$0xff]
    %v721 = vld [vmem:[#allocation4 + $0x11c0] sm:$0xff]
    %v722 = vld [vmem:[#allocation4 + $0x11c8] sm:$0xff]
    %v723 = vld [vmem:[#allocation4 + $0x11d0] sm:$0xff]
    %v724 = vld [vmem:[#allocation4 + $0x11d8] sm:$0xff]
    %v725 = vld [vmem:[#allocation4 + $0x11e0] sm:$0xff]
    %v726 = vld [vmem:[#allocation4 + $0x11e8] sm:$0xff]
    %v727 = vld [vmem:[#allocation4 + $0x11f0] sm:$0xff]
    %v728 = vld [vmem:[#allocation4 + $0x11f8] sm:$0xff]
    %v729 = vld [vmem:[#allocation4 + $0x1200] sm:$0xff]
    %v730 = vld [vmem:[#allocation4 + $0x1208] sm:$0xff]
    %v731 = vld [vmem:[#allocation4 + $0x1210] sm:$0xff]
    %v732 = vld [vmem:[#allocation4 + $0x1218] sm:$0xff]
    %v733 = vld [vmem:[#allocation4 + $0x1220] sm:$0xff]
    %v734 = vld [vmem:[#allocation4 + $0x1228] sm:$0xff]
    %v735 = vld [vmem:[#allocation4 + $0x1230] sm:$0xff]
    %v736 = vld [vmem:[#allocation4 + $0x1238] sm:$0xff]
    %v737 = vld [vmem:[#allocation4 + $0x1240] sm:$0xff]
    %v738 = vld [vmem:[#allocation4 + $0x1248] sm:$0xff]
    %v739 = vld [vmem:[#allocation4 + $0x1250] sm:$0xff]
    %v740 = vld [vmem:[#allocation4 + $0x1258] sm:$0xff]
    %v741 = vld [vmem:[#allocation4 + $0x1260] sm:$0xff]
    %v742 = vld [vmem:[#allocation4 + $0x1268] sm:$0xff]
    %v743 = vld [vmem:[#allocation4 + $0x1270] sm:$0xff]
    %v744 = vld [vmem:[#allocation4 + $0x1278] sm:$0xff]
    %v745 = vld [vmem:[#allocation4 + $0x1280] sm:$0xff]
    %v746 = vld [vmem:[#allocation4 + $0x1288] sm:$0xff]
    %v747 = vld [vmem:[#allocation4 + $0x1290] sm:$0xff]
    %v748 = vld [vmem:[#allocation4 + $0x1298] sm:$0xff]
    %v749 = vld [vmem:[#allocation4 + $0x12a0] sm:$0xff]
    %v750 = vld [vmem:[#allocation4 + $0x12a8] sm:$0xff]
    %v751 = vld [vmem:[#allocation4 + $0x12b0] sm:$0xff]
    %v752 = vld [vmem:[#allocation4 + $0x12b8] sm:$0xff]
    %v753 = vld [vmem:[#allocation4 + $0x12c0] sm:$0xff]
    %v754 = vld [vmem:[#allocation4 + $0x12c8] sm:$0xff]
    %v755 = vld [vmem:[#allocation4 + $0x12d0] sm:$0xff]
    %v756 = vld [vmem:[#allocation4 + $0x12d8] sm:$0xff]
    %v757 = vld [vmem:[#allocation4 + $0x12e0] sm:$0xff]
    %v758 = vld [vmem:[#allocation4 + $0x12e8] sm:$0xff]
    %v759 = vld [vmem:[#allocation4 + $0x12f0] sm:$0xff]
    %v760 = vld [vmem:[#allocation4 + $0x12f8] sm:$0xff]
    %v761 = vld [vmem:[#allocation4 + $0x1300] sm:$0xff]
    %v762 = vld [vmem:[#allocation4 + $0x1308] sm:$0xff]
    %v763 = vld [vmem:[#allocation4 + $0x1310] sm:$0xff]
    %v764 = vld [vmem:[#allocation4 + $0x1318] sm:$0xff]
    %v765 = vld [vmem:[#allocation4 + $0x1320] sm:$0xff]
    %v766 = vld [vmem:[#allocation4 + $0x1328] sm:$0xff]
    %v767 = vld [vmem:[#allocation4 + $0x1330] sm:$0xff]
    %v768 = vld [vmem:[#allocation4 + $0x1338] sm:$0xff]
    %v769 = vld [vmem:[#allocation4 + $0x1340] sm:$0xff]
    %v770 = vld [vmem:[#allocation4 + $0x1348] sm:$0xff]
    %v771 = vld [vmem:[#allocation4 + $0x1350] sm:$0xff]
    %v772 = vld [vmem:[#allocation4 + $0x1358] sm:$0xff]
    %v773 = vld [vmem:[#allocation4 + $0x1360] sm:$0xff]
    %v774 = vld [vmem:[#allocation4 + $0x1368] sm:$0xff]
    %v775 = vld [vmem:[#allocation4 + $0x1370] sm:$0xff]
    %v776 = vld [vmem:[#allocation4 + $0x1378] sm:$0xff]
    %v777 = vld [vmem:[#allocation4 + $0x1380] sm:$0xff]
    %v778 = vld [vmem:[#allocation4 + $0x1388] sm:$0xff]
    %v779 = vld [vmem:[#allocation4 + $0x1390] sm:$0xff]
    %v780 = vld [vmem:[#allocation4 + $0x1398] sm:$0xff]
    %v781 = vld [vmem:[#allocation4 + $0x13a0] sm:$0xff]
    %v782 = vld [vmem:[#allocation4 + $0x13a8] sm:$0xff]
    %v783 = vld [vmem:[#allocation4 + $0x13b0] sm:$0xff]
    %v784 = vld [vmem:[#allocation4 + $0x13b8] sm:$0xff]
    %v785 = vld [vmem:[#allocation4 + $0x13c0] sm:$0xff]
    %v786 = vld [vmem:[#allocation4 + $0x13c8] sm:$0xff]
    %v787 = vld [vmem:[#allocation4 + $0x13d0] sm:$0xff]
    %v788 = vld [vmem:[#allocation4 + $0x13d8] sm:$0xff]
    %v789 = vld [vmem:[#allocation4 + $0x13e0] sm:$0xff]
    %v790 = vld [vmem:[#allocation4 + $0x13e8] sm:$0xff]
    %v791 = vld [vmem:[#allocation4 + $0x13f0] sm:$0xff]
    %v792 = vld [vmem:[#allocation4 + $0x13f8] sm:$0xff]
    %v793 = vld [vmem:[#allocation4 + $0x1400] sm:$0xff]
    %v794 = vld [vmem:[#allocation4 + $0x1408] sm:$0xff]
    %v795 = vld [vmem:[#allocation4 + $0x1410] sm:$0xff]
    %v796 = vld [vmem:[#allocation4 + $0x1418] sm:$0xff]
    %v797 = vld [vmem:[#allocation4 + $0x1420] sm:$0xff]
    %v798 = vld [vmem:[#allocation4 + $0x1428] sm:$0xff]
    %v799 = vld [vmem:[#allocation4 + $0x1430] sm:$0xff]
    %v800 = vld [vmem:[#allocation4 + $0x1438] sm:$0xff]
    %v801 = vld [vmem:[#allocation4 + $0x1440] sm:$0xff]
    %v802 = vld [vmem:[#allocation4 + $0x1448] sm:$0xff]
    %v803 = vld [vmem:[#allocation4 + $0x1450] sm:$0xff]
    %v804 = vld [vmem:[#allocation4 + $0x1458] sm:$0xff]
    %v805 = vld [vmem:[#allocation4 + $0x1460] sm:$0xff]
    %v806 = vld [vmem:[#allocation4 + $0x1468] sm:$0xff]
    %v807 = vld [vmem:[#allocation4 + $0x1470] sm:$0xff]
    %v808 = vld [vmem:[#allocation4 + $0x1478] sm:$0xff]
    %v809 = vld [vmem:[#allocation4 + $0x1480] sm:$0xff]
    %v810 = vld [vmem:[#allocation4 + $0x1488] sm:$0xff]
    %v811 = vld [vmem:[#allocation4 + $0x1490] sm:$0xff]
    %v812 = vld [vmem:[#allocation4 + $0x1498] sm:$0xff]
    %v813 = vld [vmem:[#allocation4 + $0x14a0] sm:$0xff]
    %v814 = vld [vmem:[#allocation4 + $0x14a8] sm:$0xff]
    %v815 = vld [vmem:[#allocation4 + $0x14b0] sm:$0xff]
    %v816 = vld [vmem:[#allocation4 + $0x14b8] sm:$0xff]
    %v817 = vld [vmem:[#allocation4 + $0x14c0] sm:$0xff]
    %v818 = vld [vmem:[#allocation4 + $0x14c8] sm:$0xff]
    %v819 = vld [vmem:[#allocation4 + $0x14d0] sm:$0xff]
    %v820 = vld [vmem:[#allocation4 + $0x14d8] sm:$0xff]
    %v821 = vld [vmem:[#allocation4 + $0x14e0] sm:$0xff]
    %v822 = vld [vmem:[#allocation4 + $0x14e8] sm:$0xff]
    %v823 = vld [vmem:[#allocation4 + $0x14f0] sm:$0xff]
    %v824 = vld [vmem:[#allocation4 + $0x14f8] sm:$0xff]
    %825 = vmatprep.subr.mxu0 %v154
    %826 = vmatpush1.msra.mxu0 %v153
    %827 = vmatprep.subr.mxu0 %v161
    %828 = vmatpush1.msra.mxu0 %v160
    %829 = vmatprep.subr.mxu0 %v168
    %830 = vmatpush1.msra.mxu0 %v167
    %831 = vmatprep.subr.mxu0 %v175
    %832 = vmatpush1.msra.mxu0 %v174
    %833 = vmatprep.subr.mxu0 %v182
    %834 = vmatpush1.msra.mxu0 %v181
    %835 = vmatprep.subr.mxu0 %v189
    %836 = vmatpush1.msra.mxu0 %v188
    %837 = vmatprep.subr.mxu0 %v196
    %838 = vmatpush1.msra.mxu0 %v195
    %839 = vmatprep.subr.mxu0 %v203
    %840 = vmatpush1.msra.mxu0 %v202
    %841 = vmatprep.subr.mxu0 %v210
    %842 = vmatpush1.msra.mxu0 %v209
    %843 = vmatprep.subr.mxu0 %v217
    %844 = vmatpush1.msra.mxu0 %v216
    %845 = vmatprep.subr.mxu0 %v224
    %846 = vmatpush1.msra.mxu0 %v223
    %847 = vmatprep.subr.mxu0 %v231
    %848 = vmatpush1.msra.mxu0 %v230
    %849 = vmatprep.subr.mxu0 %v238
    %850 = vmatpush1.msra.mxu0 %v237
    %851 = vmatprep.subr.mxu0 %v245
    %852 = vmatpush1.msra.mxu0 %v244
    %853 = vmatprep.subr.mxu0 %v252
    %854 = vmatpush1.msra.mxu0 %v251
    %855 = vmatprep.subr.mxu0 %v259
    %856 = vmatpush1.msra.mxu0 %v258
    %857 = vmatprep.subr.mxu0 %v266
    %858 = vmatpush1.msra.mxu0 %v265
    %859 = vmatprep.subr.mxu0 %v273
    %860 = vmatpush1.msra.mxu0 %v272
    %861 = vmatprep.subr.mxu0 %v280
    %862 = vmatpush1.msra.mxu0 %v279
    %863 = vmatprep.subr.mxu0 %v287
    %864 = vmatpush1.msra.mxu0 %v286
    %865 = vmatprep.subr.mxu0 %v294
    %866 = vmatpush1.msra.mxu0 %v293
    %867 = vmatprep.subr.mxu0 %v301
    %868 = vmatpush1.msra.mxu0 %v300
    %869 = vmatprep.subr.mxu0 %v308
    %870 = vmatpush1.msra.mxu0 %v307
    %871 = vmatprep.subr.mxu0 %v315
    %872 = vmatpush1.msra.mxu0 %v314
    %873 = vmatprep.subr.mxu0 %v322
    %874 = vmatpush1.msra.mxu0 %v321
    %875 = vmatprep.subr.mxu0 %v329
    %876 = vmatpush1.msra.mxu0 %v328
    %877 = vmatprep.subr.mxu0 %v336
    %878 = vmatpush1.msra.mxu0 %v335
    %879 = vmatprep.subr.mxu0 %v343
    %880 = vmatpush1.msra.mxu0 %v342
    %881 = vmatprep.subr.mxu0 %v350
    %882 = vmatpush1.msra.mxu0 %v349
    %883 = vmatprep.subr.mxu0 %v357
    %884 = vmatpush1.msra.mxu0 %v356
    %885 = vmatprep.subr.mxu0 %v364
    %886 = vmatpush1.msra.mxu0 %v363
    %887 = vmatprep.subr.mxu0 %v371
    %888 = vmatpush1.msra.mxu0 %v370
    %889 = vmatprep.mubr.f32.mxu0 %v148
    %890 = vmatmul.mubr.f32.gmra.mrb[0].mxu0 %v147
    %v891 = vpop.f32.mrb[0].mxu0
    %v892 = vadd.f32 0.0, %v891
    %v893 = vpop.f32.mrb[0].mxu0
    %v894 = vadd.f32 0.0, %v893
    %895 = vdwg.mxu0
    %896 = vmatprep.subr.mxu0 %v378
    %897 = vmatpush1.msra.mxu0 %v377
    %898 = vmatprep.subr.mxu0 %v385
    %899 = vmatpush1.msra.mxu0 %v384
    %900 = vmatprep.subr.mxu0 %v392
    %901 = vmatpush1.msra.mxu0 %v391
    %902 = vmatprep.subr.mxu0 %v399
    %903 = vmatpush1.msra.mxu0 %v398
    %904 = vmatprep.subr.mxu0 %v406
    %905 = vmatpush1.msra.mxu0 %v405
    %906 = vmatprep.subr.mxu0 %v413
    %907 = vmatpush1.msra.mxu0 %v412
    %908 = vmatprep.subr.mxu0 %v420
    %909 = vmatpush1.msra.mxu0 %v419
    %910 = vmatprep.subr.mxu0 %v427
    %911 = vmatpush1.msra.mxu0 %v426
    %912 = vmatprep.subr.mxu0 %v434
    %913 = vmatpush1.msra.mxu0 %v433
    %914 = vmatprep.subr.mxu0 %v441
    %915 = vmatpush1.msra.mxu0 %v440
    %916 = vmatprep.subr.mxu0 %v448
    %917 = vmatpush1.msra.mxu0 %v447
    %918 = vmatprep.subr.mxu0 %v455
    %919 = vmatpush1.msra.mxu0 %v454
    %920 = vmatprep.subr.mxu0 %v462
    %921 = vmatpush1.msra.mxu0 %v461
    %922 = vmatprep.subr.mxu0 %v469
    %923 = vmatpush1.msra.mxu0 %v468
    %924 = vmatprep.subr.mxu0 %v476
    %925 = vmatpush1.msra.mxu0 %v475
    %926 = vmatprep.subr.mxu0 %v483
    %927 = vmatpush1.msra.mxu0 %v482
    %928 = vmatprep.subr.mxu0 %v490
    %929 = vmatpush1.msra.mxu0 %v489
    %930 = vmatprep.subr.mxu0 %v497
    %931 = vmatpush1.msra.mxu0 %v496
    %932 = vmatprep.subr.mxu0 %v504
    %933 = vmatpush1.msra.mxu0 %v503
    %934 = vmatprep.subr.mxu0 %v511
    %935 = vmatpush1.msra.mxu0 %v510
    %936 = vmatprep.subr.mxu0 %v518
    %937 = vmatpush1.msra.mxu0 %v517
    %938 = vmatprep.subr.mxu0 %v525
    %939 = vmatpush1.msra.mxu0 %v524
    %940 = vmatprep.subr.mxu0 %v532
    %941 = vmatpush1.msra.mxu0 %v531
    %942 = vmatprep.subr.mxu0 %v539
    %943 = vmatpush1.msra.mxu0 %v538
    %944 = vmatprep.subr.mxu0 %v546
    %945 = vmatpush1.msra.mxu0 %v545
    %946 = vmatprep.subr.mxu0 %v553
    %947 = vmatpush1.msra.mxu0 %v552
    %948 = vmatprep.subr.mxu0 %v560
    %949 = vmatpush1.msra.mxu0 %v559
    %950 = vmatprep.subr.mxu0 %v567
    %951 = vmatpush1.msra.mxu0 %v566
    %952 = vmatprep.subr.mxu0 %v574
    %953 = vmatpush1.msra.mxu0 %v573
    %954 = vmatprep.subr.mxu0 %v581
    %955 = vmatpush1.msra.mxu0 %v580
    %956 = vmatprep.subr.mxu0 %v588
    %957 = vmatpush1.msra.mxu0 %v587
    %958 = vmatprep.subr.mxu0 %v595
    %959 = vmatpush1.msra.mxu0 %v594
    %960 = vmatprep.mubr.f32.mxu0 %v150
    %961 = vmatmul.mubr.f32.gmra.mrb[0].mxu0 %v149
    %v962 = vpop.f32.mrb[0].mxu0
    %v963 = vadd.f32 %v892, %v962
    %v964 = vpop.f32.mrb[0].mxu0
    %v965 = vadd.f32 %v894, %v964
    %966 = vdwg.mxu0
    %967 = vmatprep.subr.mxu0 %v602
    %968 = vmatpush1.msra.mxu0 %v601
    %969 = vmatprep.subr.mxu0 %v609
    %970 = vmatpush1.msra.mxu0 %v608
    %971 = vmatprep.subr.mxu0 %v616
    %972 = vmatpush1.msra.mxu0 %v615
    %973 = vmatprep.subr.mxu0 %v623
    %974 = vmatpush1.msra.mxu0 %v622
    %975 = vmatprep.subr.mxu0 %v630
    %976 = vmatpush1.msra.mxu0 %v629
    %977 = vmatprep.subr.mxu0 %v637
    %978 = vmatpush1.msra.mxu0 %v636
    %979 = vmatprep.subr.mxu0 %v644
    %980 = vmatpush1.msra.mxu0 %v643
    %981 = vmatprep.subr.mxu0 %v651
    %982 = vmatpush1.msra.mxu0 %v650
    %983 = vmatprep.subr.mxu0 %v658
    %984 = vmatpush1.msra.mxu0 %v657
    %985 = vmatprep.subr.mxu0 %v665
    %986 = vmatpush1.msra.mxu0 %v664
    %987 = vmatprep.subr.mxu0 %v672
    %988 = vmatpush1.msra.mxu0 %v671
    %989 = vmatprep.subr.mxu0 %v679
    %990 = vmatpush1.msra.mxu0 %v678
    %991 = vmatprep.subr.mxu0 %v686
    %992 = vmatpush1.msra.mxu0 %v685
    %993 = vmatprep.subr.mxu0 %v693
    %994 = vmatpush1.msra.mxu0 %v692
    %995 = vmatprep.subr.mxu0 %v700
    %996 = vmatpush1.msra.mxu0 %v699
    %997 = vmatprep.subr.mxu0 %v707
    %998 = vmatpush1.msra.mxu0 %v706
    %999 = vmatprep.subr.mxu0 %v714
    %1000 = vmatpush1.msra.mxu0 %v713
    %1001 = vmatprep.subr.mxu0 %v721
    %1002 = vmatpush1.msra.mxu0 %v720
    %1003 = vmatprep.subr.mxu0 %v728
    %1004 = vmatpush1.msra.mxu0 %v727
    %1005 = vmatprep.subr.mxu0 %v735
    %1006 = vmatpush1.msra.mxu0 %v734
    %1007 = vmatprep.subr.mxu0 %v742
    %1008 = vmatpush1.msra.mxu0 %v741
    %1009 = vmatprep.subr.mxu0 %v749
    %1010 = vmatpush1.msra.mxu0 %v748
    %1011 = vmatprep.subr.mxu0 %v756
    %1012 = vmatpush1.msra.mxu0 %v755
    %1013 = vmatprep.subr.mxu0 %v763
    %1014 = vmatpush1.msra.mxu0 %v762
    %1015 = vmatprep.subr.mxu0 %v770
    %1016 = vmatpush1.msra.mxu0 %v769
    %1017 = vmatprep.subr.mxu0 %v777
    %1018 = vmatpush1.msra.mxu0 %v776
    %1019 = vmatprep.subr.mxu0 %v784
    %1020 = vmatpush1.msra.mxu0 %v783
    %1021 = vmatprep.subr.mxu0 %v791
    %1022 = vmatpush1.msra.mxu0 %v790
    %1023 = vmatprep.subr.mxu0 %v798
    %1024 = vmatpush1.msra.mxu0 %v797
    %1025 = vmatprep.subr.mxu0 %v805
    %1026 = vmatpush1.msra.mxu0 %v804
    %1027 = vmatprep.subr.mxu0 %v812
    %1028 = vmatpush1.msra.mxu0 %v811
    %1029 = vmatprep.subr.mxu0 %v819
    %1030 = vmatpush1.msra.mxu0 %v818
    %1031 = vmatprep.mubr.f32.mxu0 %v152
    %1032 = vmatmul.mubr.f32.gmra.mrb[0].mxu0 %v151
    %v1033 = vpop.f32.mrb[0].mxu0
    %v1034 = vadd.f32 %v963, %v1033
    %v1035 = vpop.f32.mrb[0].mxu0
    %v1036 = vadd.f32 %v965, %v1035
    %1037 = vdwg.mxu0
    %1038 = vmatprep.subr.mxu0 %v156
    %1039 = vmatpush1.msra.mxu0 %v155
    %1040 = vmatprep.subr.mxu0 %v163
    %1041 = vmatpush1.msra.mxu0 %v162
    %1042 = vmatprep.subr.mxu0 %v170
    %1043 = vmatpush1.msra.mxu0 %v169
    %1044 = vmatprep.subr.mxu0 %v177
    %1045 = vmatpush1.msra.mxu0 %v176
    %1046 = vmatprep.subr.mxu0 %v184
    %1047 = vmatpush1.msra.mxu0 %v183
    %1048 = vmatprep.subr.mxu0 %v191
    %1049 = vmatpush1.msra.mxu0 %v190
    %1050 = vmatprep.subr.mxu0 %v198
    %1051 = vmatpush1.msra.mxu0 %v197
    %1052 = vmatprep.subr.mxu0 %v205
    %1053 = vmatpush1.msra.mxu0 %v204
    %1054 = vmatprep.subr.mxu0 %v212
    %1055 = vmatpush1.msra.mxu0 %v211
    %1056 = vmatprep.subr.mxu0 %v219
    %1057 = vmatpush1.msra.mxu0 %v218
    %1058 = vmatprep.subr.mxu0 %v226
    %1059 = vmatpush1.msra.mxu0 %v225
    %1060 = vmatprep.subr.mxu0 %v233
    %1061 = vmatpush1.msra.mxu0 %v232
    %1062 = vmatprep.subr.mxu0 %v240
    %1063 = vmatpush1.msra.mxu0 %v239
    %1064 = vmatprep.subr.mxu0 %v247
    %1065 = vmatpush1.msra.mxu0 %v246
    %1066 = vmatprep.subr.mxu0 %v254
    %1067 = vmatpush1.msra.mxu0 %v253
    %1068 = vmatprep.subr.mxu0 %v261
    %1069 = vmatpush1.msra.mxu0 %v260
    %1070 = vmatprep.subr.mxu0 %v268
    %1071 = vmatpush1.msra.mxu0 %v267
    %1072 = vmatprep.subr.mxu0 %v275
    %1073 = vmatpush1.msra.mxu0 %v274
    %1074 = vmatprep.subr.mxu0 %v282
    %1075 = vmatpush1.msra.mxu0 %v281
    %1076 = vmatprep.subr.mxu0 %v289
    %1077 = vmatpush1.msra.mxu0 %v288
    %1078 = vmatprep.subr.mxu0 %v296
    %1079 = vmatpush1.msra.mxu0 %v295
    %1080 = vmatprep.subr.mxu0 %v303
    %1081 = vmatpush1.msra.mxu0 %v302
    %1082 = vmatprep.subr.mxu0 %v310
    %1083 = vmatpush1.msra.mxu0 %v309
    %1084 = vmatprep.subr.mxu0 %v317
    %1085 = vmatpush1.msra.mxu0 %v316
    %1086 = vmatprep.subr.mxu0 %v324
    %1087 = vmatpush1.msra.mxu0 %v323
    %1088 = vmatprep.subr.mxu0 %v331
    %1089 = vmatpush1.msra.mxu0 %v330
    %1090 = vmatprep.subr.mxu0 %v338
    %1091 = vmatpush1.msra.mxu0 %v337
    %1092 = vmatprep.subr.mxu0 %v345
    %1093 = vmatpush1.msra.mxu0 %v344
    %1094 = vmatprep.subr.mxu0 %v352
    %1095 = vmatpush1.msra.mxu0 %v351
    %1096 = vmatprep.subr.mxu0 %v359
    %1097 = vmatpush1.msra.mxu0 %v358
    %1098 = vmatprep.subr.mxu0 %v366
    %1099 = vmatpush1.msra.mxu0 %v365
    %1100 = vmatprep.subr.mxu0 %v373
    %1101 = vmatpush1.msra.mxu0 %v372
    %1102 = vmatprep.mubr.f32.mxu0 %v148
    %1103 = vmatmul.mubr.f32.gmra.mrb[0].mxu0 %v147
    %v1104 = vpop.f32.mrb[0].mxu0
    %v1105 = vadd.f32 0.0, %v1104
    %v1106 = vpop.f32.mrb[0].mxu0
    %v1107 = vadd.f32 0.0, %v1106
    %1108 = vdwg.mxu0
    %1109 = vmatprep.subr.mxu0 %v380
    %1110 = vmatpush1.msra.mxu0 %v379
    %1111 = vmatprep.subr.mxu0 %v387
    %1112 = vmatpush1.msra.mxu0 %v386
    %1113 = vmatprep.subr.mxu0 %v394
    %1114 = vmatpush1.msra.mxu0 %v393
    %1115 = vmatprep.subr.mxu0 %v401
    %1116 = vmatpush1.msra.mxu0 %v400
    %1117 = vmatprep.subr.mxu0 %v408
    %1118 = vmatpush1.msra.mxu0 %v407
    %1119 = vmatprep.subr.mxu0 %v415
    %1120 = vmatpush1.msra.mxu0 %v414
    %1121 = vmatprep.subr.mxu0 %v422
    %1122 = vmatpush1.msra.mxu0 %v421
    %1123 = vmatprep.subr.mxu0 %v429
    %1124 = vmatpush1.msra.mxu0 %v428
    %1125 = vmatprep.subr.mxu0 %v436
    %1126 = vmatpush1.msra.mxu0 %v435
    %1127 = vmatprep.subr.mxu0 %v443
    %1128 = vmatpush1.msra.mxu0 %v442
    %1129 = vmatprep.subr.mxu0 %v450
    %1130 = vmatpush1.msra.mxu0 %v449
    %1131 = vmatprep.subr.mxu0 %v457
    %1132 = vmatpush1.msra.mxu0 %v456
    %1133 = vmatprep.subr.mxu0 %v464
    %1134 = vmatpush1.msra.mxu0 %v463
    %1135 = vmatprep.subr.mxu0 %v471
    %1136 = vmatpush1.msra.mxu0 %v470
    %1137 = vmatprep.subr.mxu0 %v478
    %1138 = vmatpush1.msra.mxu0 %v477
    %1139 = vmatprep.subr.mxu0 %v485
    %1140 = vmatpush1.msra.mxu0 %v484
    %1141 = vmatprep.subr.mxu0 %v492
    %1142 = vmatpush1.msra.mxu0 %v491
    %1143 = vmatprep.subr.mxu0 %v499
    %1144 = vmatpush1.msra.mxu0 %v498
    %1145 = vmatprep.subr.mxu0 %v506
    %1146 = vmatpush1.msra.mxu0 %v505
    %1147 = vmatprep.subr.mxu0 %v513
    %1148 = vmatpush1.msra.mxu0 %v512
    %1149 = vmatprep.subr.mxu0 %v520
    %1150 = vmatpush1.msra.mxu0 %v519
    %1151 = vmatprep.subr.mxu0 %v527
    %1152 = vmatpush1.msra.mxu0 %v526
    %1153 = vmatprep.subr.mxu0 %v534
    %1154 = vmatpush1.msra.mxu0 %v533
    %1155 = vmatprep.subr.mxu0 %v541
    %1156 = vmatpush1.msra.mxu0 %v540
    %1157 = vmatprep.subr.mxu0 %v548
    %1158 = vmatpush1.msra.mxu0 %v547
    %1159 = vmatprep.subr.mxu0 %v555
    %1160 = vmatpush1.msra.mxu0 %v554
    %1161 = vmatprep.subr.mxu0 %v562
    %1162 = vmatpush1.msra.mxu0 %v561
    %1163 = vmatprep.subr.mxu0 %v569
    %1164 = vmatpush1.msra.mxu0 %v568
    %1165 = vmatprep.subr.mxu0 %v576
    %1166 = vmatpush1.msra.mxu0 %v575
    %1167 = vmatprep.subr.mxu0 %v583
    %1168 = vmatpush1.msra.mxu0 %v582
    %1169 = vmatprep.subr.mxu0 %v590
    %1170 = vmatpush1.msra.mxu0 %v589
    %1171 = vmatprep.subr.mxu0 %v597
    %1172 = vmatpush1.msra.mxu0 %v596
    %1173 = vmatprep.mubr.f32.mxu0 %v150
    %1174 = vmatmul.mubr.f32.gmra.mrb[0].mxu0 %v149
    %v1175 = vpop.f32.mrb[0].mxu0
    %v1176 = vadd.f32 %v1105, %v1175
    %v1177 = vpop.f32.mrb[0].mxu0
    %v1178 = vadd.f32 %v1107, %v1177
    %1179 = vdwg.mxu0
    %1180 = vmatprep.subr.mxu0 %v604
    %1181 = vmatpush1.msra.mxu0 %v603
    %1182 = vmatprep.subr.mxu0 %v611
    %1183 = vmatpush1.msra.mxu0 %v610
    %1184 = vmatprep.subr.mxu0 %v618
    %1185 = vmatpush1.msra.mxu0 %v617
    %1186 = vmatprep.subr.mxu0 %v625
    %1187 = vmatpush1.msra.mxu0 %v624
    %1188 = vmatprep.subr.mxu0 %v632
    %1189 = vmatpush1.msra.mxu0 %v631
    %1190 = vmatprep.subr.mxu0 %v639
    %1191 = vmatpush1.msra.mxu0 %v638
    %1192 = vmatprep.subr.mxu0 %v646
    %1193 = vmatpush1.msra.mxu0 %v645
    %1194 = vmatprep.subr.mxu0 %v653
    %1195 = vmatpush1.msra.mxu0 %v652
    %1196 = vmatprep.subr.mxu0 %v660
    %1197 = vmatpush1.msra.mxu0 %v659
    %1198 = vmatprep.subr.mxu0 %v667
    %1199 = vmatpush1.msra.mxu0 %v666
    %1200 = vmatprep.subr.mxu0 %v674
    %1201 = vmatpush1.msra.mxu0 %v673
    %1202 = vmatprep.subr.mxu0 %v681
    %1203 = vmatpush1.msra.mxu0 %v680
    %1204 = vmatprep.subr.mxu0 %v688
    %1205 = vmatpush1.msra.mxu0 %v687
    %1206 = vmatprep.subr.mxu0 %v695
    %1207 = vmatpush1.msra.mxu0 %v694
    %1208 = vmatprep.subr.mxu0 %v702
    %1209 = vmatpush1.msra.mxu0 %v701
    %1210 = vmatprep.subr.mxu0 %v709
    %1211 = vmatpush1.msra.mxu0 %v708
    %1212 = vmatprep.subr.mxu0 %v716
    %1213 = vmatpush1.msra.mxu0 %v715
    %1214 = vmatprep.subr.mxu0 %v723
    %1215 = vmatpush1.msra.mxu0 %v722
    %1216 = vmatprep.subr.mxu0 %v730
    %1217 = vmatpush1.msra.mxu0 %v729
    %1218 = vmatprep.subr.mxu0 %v737
    %1219 = vmatpush1.msra.mxu0 %v736
    %1220 = vmatprep.subr.mxu0 %v744
    %1221 = vmatpush1.msra.mxu0 %v743
    %1222 = vmatprep.subr.mxu0 %v751
    %1223 = vmatpush1.msra.mxu0 %v750
    %1224 = vmatprep.subr.mxu0 %v758
    %1225 = vmatpush1.msra.mxu0 %v757
    %1226 = vmatprep.subr.mxu0 %v765
    %1227 = vmatpush1.msra.mxu0 %v764
    %1228 = vmatprep.subr.mxu0 %v772
    %1229 = vmatpush1.msra.mxu0 %v771
    %1230 = vmatprep.subr.mxu0 %v779
    %1231 = vmatpush1.msra.mxu0 %v778
    %1232 = vmatprep.subr.mxu0 %v786
    %1233 = vmatpush1.msra.mxu0 %v785
    %1234 = vmatprep.subr.mxu0 %v793
    %1235 = vmatpush1.msra.mxu0 %v792
    %1236 = vmatprep.subr.mxu0 %v800
    %1237 = vmatpush1.msra.mxu0 %v799
    %1238 = vmatprep.subr.mxu0 %v807
    %1239 = vmatpush1.msra.mxu0 %v806
    %1240 = vmatprep.subr.mxu0 %v814
    %1241 = vmatpush1.msra.mxu0 %v813
    %1242 = vmatprep.subr.mxu0 %v821
    %1243 = vmatpush1.msra.mxu0 %v820
    %1244 = vmatprep.mubr.f32.mxu0 %v152
    %1245 = vmatmul.mubr.f32.gmra.mrb[0].mxu0 %v151
    %v1246 = vpop.f32.mrb[0].mxu0
    %v1247 = vadd.f32 %v1176, %v1246
    %v1248 = vpop.f32.mrb[0].mxu0
    %v1249 = vadd.f32 %v1178, %v1248
    %1250 = vdwg.mxu0
    %1251 = vmatprep.subr.mxu0 %v158
    %1252 = vmatpush1.msra.mxu0 %v157
    %1253 = vmatprep.subr.mxu0 %v165
    %1254 = vmatpush1.msra.mxu0 %v164
    %1255 = vmatprep.subr.mxu0 %v172
    %1256 = vmatpush1.msra.mxu0 %v171
    %1257 = vmatprep.subr.mxu0 %v179
    %1258 = vmatpush1.msra.mxu0 %v178
    %1259 = vmatprep.subr.mxu0 %v186
    %1260 = vmatpush1.msra.mxu0 %v185
    %1261 = vmatprep.subr.mxu0 %v193
    %1262 = vmatpush1.msra.mxu0 %v192
    %1263 = vmatprep.subr.mxu0 %v200
    %1264 = vmatpush1.msra.mxu0 %v199
    %1265 = vmatprep.subr.mxu0 %v207
    %1266 = vmatpush1.msra.mxu0 %v206
    %1267 = vmatprep.subr.mxu0 %v214
    %1268 = vmatpush1.msra.mxu0 %v213
    %1269 = vmatprep.subr.mxu0 %v221
    %1270 = vmatpush1.msra.mxu0 %v220
    %1271 = vmatprep.subr.mxu0 %v228
    %1272 = vmatpush1.msra.mxu0 %v227
    %1273 = vmatprep.subr.mxu0 %v235
    %1274 = vmatpush1.msra.mxu0 %v234
    %1275 = vmatprep.subr.mxu0 %v242
    %1276 = vmatpush1.msra.mxu0 %v241
    %1277 = vmatprep.subr.mxu0 %v249
    %1278 = vmatpush1.msra.mxu0 %v248
    %1279 = vmatprep.subr.mxu0 %v256
    %1280 = vmatpush1.msra.mxu0 %v255
    %1281 = vmatprep.subr.mxu0 %v263
    %1282 = vmatpush1.msra.mxu0 %v262
    %1283 = vmatprep.subr.mxu0 %v270
    %1284 = vmatpush1.msra.mxu0 %v269
    %1285 = vmatprep.subr.mxu0 %v277
    %1286 = vmatpush1.msra.mxu0 %v276
    %1287 = vmatprep.subr.mxu0 %v284
    %1288 = vmatpush1.msra.mxu0 %v283
    %1289 = vmatprep.subr.mxu0 %v291
    %1290 = vmatpush1.msra.mxu0 %v290
    %1291 = vmatprep.subr.mxu0 %v298
    %1292 = vmatpush1.msra.mxu0 %v297
    %1293 = vmatprep.subr.mxu0 %v305
    %1294 = vmatpush1.msra.mxu0 %v304
    %1295 = vmatprep.subr.mxu0 %v312
    %1296 = vmatpush1.msra.mxu0 %v311
    %1297 = vmatprep.subr.mxu0 %v319
    %1298 = vmatpush1.msra.mxu0 %v318
    %1299 = vmatprep.subr.mxu0 %v326
    %1300 = vmatpush1.msra.mxu0 %v325
    %1301 = vmatprep.subr.mxu0 %v333
    %1302 = vmatpush1.msra.mxu0 %v332
    %1303 = vmatprep.subr.mxu0 %v340
    %1304 = vmatpush1.msra.mxu0 %v339
    %1305 = vmatprep.subr.mxu0 %v347
    %1306 = vmatpush1.msra.mxu0 %v346
    %1307 = vmatprep.subr.mxu0 %v354
    %1308 = vmatpush1.msra.mxu0 %v353
    %1309 = vmatprep.subr.mxu0 %v361
    %1310 = vmatpush1.msra.mxu0 %v360
    %1311 = vmatprep.subr.mxu0 %v368
    %1312 = vmatpush1.msra.mxu0 %v367
    %1313 = vmatprep.subr.mxu0 %v375
    %1314 = vmatpush1.msra.mxu0 %v374
    %1315 = vmatprep.mubr.f32.mxu0 %v148
    %1316 = vmatmul.mubr.f32.gmra.mrb[0].mxu0 %v147
    %v1317 = vpop.f32.mrb[0].mxu0
    %v1318 = vadd.f32 0.0, %v1317
    %v1319 = vpop.f32.mrb[0].mxu0
    %v1320 = vadd.f32 0.0, %v1319
    %1321 = vdwg.mxu0
    %1322 = vmatprep.subr.mxu0 %v382
    %1323 = vmatpush1.msra.mxu0 %v381
    %1324 = vmatprep.subr.mxu0 %v389
    %1325 = vmatpush1.msra.mxu0 %v388
    %1326 = vmatprep.subr.mxu0 %v396
    %1327 = vmatpush1.msra.mxu0 %v395
    %1328 = vmatprep.subr.mxu0 %v403
    %1329 = vmatpush1.msra.mxu0 %v402
    %1330 = vmatprep.subr.mxu0 %v410
    %1331 = vmatpush1.msra.mxu0 %v409
    %1332 = vmatprep.subr.mxu0 %v417
    %1333 = vmatpush1.msra.mxu0 %v416
    %1334 = vmatprep.subr.mxu0 %v424
    %1335 = vmatpush1.msra.mxu0 %v423
    %1336 = vmatprep.subr.mxu0 %v431
    %1337 = vmatpush1.msra.mxu0 %v430
    %1338 = vmatprep.subr.mxu0 %v438
    %1339 = vmatpush1.msra.mxu0 %v437
    %1340 = vmatprep.subr.mxu0 %v445
    %1341 = vmatpush1.msra.mxu0 %v444
    %1342 = vmatprep.subr.mxu0 %v452
    %1343 = vmatpush1.msra.mxu0 %v451
    %1344 = vmatprep.subr.mxu0 %v459
    %1345 = vmatpush1.msra.mxu0 %v458
    %1346 = vmatprep.subr.mxu0 %v466
    %1347 = vmatpush1.msra.mxu0 %v465
    %1348 = vmatprep.subr.mxu0 %v473
    %1349 = vmatpush1.msra.mxu0 %v472
    %1350 = vmatprep.subr.mxu0 %v480
    %1351 = vmatpush1.msra.mxu0 %v479
    %1352 = vmatprep.subr.mxu0 %v487
    %1353 = vmatpush1.msra.mxu0 %v486
    %1354 = vmatprep.subr.mxu0 %v494
    %1355 = vmatpush1.msra.mxu0 %v493
    %1356 = vmatprep.subr.mxu0 %v501
    %1357 = vmatpush1.msra.mxu0 %v500
    %1358 = vmatprep.subr.mxu0 %v508
    %1359 = vmatpush1.msra.mxu0 %v507
    %1360 = vmatprep.subr.mxu0 %v515
    %1361 = vmatpush1.msra.mxu0 %v514
    %1362 = vmatprep.subr.mxu0 %v522
    %1363 = vmatpush1.msra.mxu0 %v521
    %1364 = vmatprep.subr.mxu0 %v529
    %1365 = vmatpush1.msra.mxu0 %v528
    %1366 = vmatprep.subr.mxu0 %v536
    %1367 = vmatpush1.msra.mxu0 %v535
    %1368 = vmatprep.subr.mxu0 %v543
    %1369 = vmatpush1.msra.mxu0 %v542
    %1370 = vmatprep.subr.mxu0 %v550
    %1371 = vmatpush1.msra.mxu0 %v549
    %1372 = vmatprep.subr.mxu0 %v557
    %1373 = vmatpush1.msra.mxu0 %v556
    %1374 = vmatprep.subr.mxu0 %v564
    %1375 = vmatpush1.msra.mxu0 %v563
    %1376 = vmatprep.subr.mxu0 %v571
    %1377 = vmatpush1.msra.mxu0 %v570
    %1378 = vmatprep.subr.mxu0 %v578
    %1379 = vmatpush1.msra.mxu0 %v577
    %1380 = vmatprep.subr.mxu0 %v585
    %1381 = vmatpush1.msra.mxu0 %v584
    %1382 = vmatprep.subr.mxu0 %v592
    %1383 = vmatpush1.msra.mxu0 %v591
    %1384 = vmatprep.subr.mxu0 %v599
    %1385 = vmatpush1.msra.mxu0 %v598
    %1386 = vmatprep.mubr.f32.mxu0 %v150
    %1387 = vmatmul.mubr.f32.gmra.mrb[0].mxu0 %v149
    %v1388 = vpop.f32.mrb[0].mxu0
    %v1389 = vadd.f32 %v1318, %v1388
    %v1390 = vpop.f32.mrb[0].mxu0
    %v1391 = vadd.f32 %v1320, %v1390
    %1392 = vdwg.mxu0
    %1393 = vmatprep.subr.mxu0 %v606
    %1394 = vmatpush1.msra.mxu0 %v605
    %1395 = vmatprep.subr.mxu0 %v613
    %1396 = vmatpush1.msra.mxu0 %v612
    %1397 = vmatprep.subr.mxu0 %v620
    %1398 = vmatpush1.msra.mxu0 %v619
    %1399 = vmatprep.subr.mxu0 %v627
    %1400 = vmatpush1.msra.mxu0 %v626
    %1401 = vmatprep.subr.mxu0 %v634
    %1402 = vmatpush1.msra.mxu0 %v633
    %1403 = vmatprep.subr.mxu0 %v641
    %1404 = vmatpush1.msra.mxu0 %v640
    %1405 = vmatprep.subr.mxu0 %v648
    %1406 = vmatpush1.msra.mxu0 %v647
    %1407 = vmatprep.subr.mxu0 %v655
    %1408 = vmatpush1.msra.mxu0 %v654
    %1409 = vmatprep.subr.mxu0 %v662
    %1410 = vmatpush1.msra.mxu0 %v661
    %1411 = vmatprep.subr.mxu0 %v669
    %1412 = vmatpush1.msra.mxu0 %v668
    %1413 = vmatprep.subr.mxu0 %v676
    %1414 = vmatpush1.msra.mxu0 %v675
    %1415 = vmatprep.subr.mxu0 %v683
    %1416 = vmatpush1.msra.mxu0 %v682
    %1417 = vmatprep.subr.mxu0 %v690
    %1418 = vmatpush1.msra.mxu0 %v689
    %1419 = vmatprep.subr.mxu0 %v697
    %1420 = vmatpush1.msra.mxu0 %v696
    %1421 = vmatprep.subr.mxu0 %v704
    %1422 = vmatpush1.msra.mxu0 %v703
    %1423 = vmatprep.subr.mxu0 %v711
    %1424 = vmatpush1.msra.mxu0 %v710
    %1425 = vmatprep.subr.mxu0 %v718
    %1426 = vmatpush1.msra.mxu0 %v717
    %1427 = vmatprep.subr.mxu0 %v725
    %1428 = vmatpush1.msra.mxu0 %v724
    %1429 = vmatprep.subr.mxu0 %v732
    %1430 = vmatpush1.msra.mxu0 %v731
    %1431 = vmatprep.subr.mxu0 %v739
    %1432 = vmatpush1.msra.mxu0 %v738
    %1433 = vmatprep.subr.mxu0 %v746
    %1434 = vmatpush1.msra.mxu0 %v745
    %1435 = vmatprep.subr.mxu0 %v753
    %1436 = vmatpush1.msra.mxu0 %v752
    %1437 = vmatprep.subr.mxu0 %v760
    %1438 = vmatpush1.msra.mxu0 %v759
    %1439 = vmatprep.subr.mxu0 %v767
    %1440 = vmatpush1.msra.mxu0 %v766
    %1441 = vmatprep.subr.mxu0 %v774
    %1442 = vmatpush1.msra.mxu0 %v773
    %1443 = vmatprep.subr.mxu0 %v781
    %1444 = vmatpush1.msra.mxu0 %v780
    %1445 = vmatprep.subr.mxu0 %v788
    %1446 = vmatpush1.msra.mxu0 %v787
    %1447 = vmatprep.subr.mxu0 %v795
    %1448 = vmatpush1.msra.mxu0 %v794
    %1449 = vmatprep.subr.mxu0 %v802
    %1450 = vmatpush1.msra.mxu0 %v801
    %1451 = vmatprep.subr.mxu0 %v809
    %1452 = vmatpush1.msra.mxu0 %v808
    %1453 = vmatprep.subr.mxu0 %v816
    %1454 = vmatpush1.msra.mxu0 %v815
    %1455 = vmatprep.subr.mxu0 %v823
    %1456 = vmatpush1.msra.mxu0 %v822
    %1457 = vmatprep.mubr.f32.mxu0 %v152
    %1458 = vmatmul.mubr.f32.gmra.mrb[0].mxu0 %v151
    %v1459 = vpop.f32.mrb[0].mxu0
    %v1460 = vadd.f32 %v1389, %v1459
    %v1461 = vpop.f32.mrb[0].mxu0
    %v1462 = vadd.f32 %v1391, %v1461
    %1463 = vdwg.mxu0
    %1464 = vmatprep.subr.mxu0 0.0
    %1465 = vmatpush1.msra.mxu0 %v159
    %1466 = vmatprep.subr.mxu0 0.0
    %1467 = vmatpush1.msra.mxu0 %v166
    %1468 = vmatprep.subr.mxu0 0.0
    %1469 = vmatpush1.msra.mxu0 %v173
    %1470 = vmatprep.subr.mxu0 0.0
    %1471 = vmatpush1.msra.mxu0 %v180
    %1472 = vmatprep.subr.mxu0 0.0
    %1473 = vmatpush1.msra.mxu0 %v187
    %1474 = vmatprep.subr.mxu0 0.0
    %1475 = vmatpush1.msra.mxu0 %v194
    %1476 = vmatprep.subr.mxu0 0.0
    %1477 = vmatpush1.msra.mxu0 %v201
    %1478 = vmatprep.subr.mxu0 0.0
    %1479 = vmatpush1.msra.mxu0 %v208
    %1480 = vmatprep.subr.mxu0 0.0
    %1481 = vmatpush1.msra.mxu0 %v215
    %1482 = vmatprep.subr.mxu0 0.0
    %1483 = vmatpush1.msra.mxu0 %v222
    %1484 = vmatprep.subr.mxu0 0.0
    %1485 = vmatpush1.msra.mxu0 %v229
    %1486 = vmatprep.subr.mxu0 0.0
    %1487 = vmatpush1.msra.mxu0 %v236
    %1488 = vmatprep.subr.mxu0 0.0
    %1489 = vmatpush1.msra.mxu0 %v243
    %1490 = vmatprep.subr.mxu0 0.0
    %1491 = vmatpush1.msra.mxu0 %v250
    %1492 = vmatprep.subr.mxu0 0.0
    %1493 = vmatpush1.msra.mxu0 %v257
    %1494 = vmatprep.subr.mxu0 0.0
    %1495 = vmatpush1.msra.mxu0 %v264
    %1496 = vmatprep.subr.mxu0 0.0
    %1497 = vmatpush1.msra.mxu0 %v271
    %1498 = vmatprep.subr.mxu0 0.0
    %1499 = vmatpush1.msra.mxu0 %v278
    %1500 = vmatprep.subr.mxu0 0.0
    %1501 = vmatpush1.msra.mxu0 %v285
    %1502 = vmatprep.subr.mxu0 0.0
    %1503 = vmatpush1.msra.mxu0 %v292
    %1504 = vmatprep.subr.mxu0 0.0
    %1505 = vmatpush1.msra.mxu0 %v299
    %1506 = vmatprep.subr.mxu0 0.0
    %1507 = vmatpush1.msra.mxu0 %v306
    %1508 = vmatprep.subr.mxu0 0.0
    %1509 = vmatpush1.msra.mxu0 %v313
    %1510 = vmatprep.subr.mxu0 0.0
    %1511 = vmatpush1.msra.mxu0 %v320
    %1512 = vmatprep.subr.mxu0 0.0
    %1513 = vmatpush1.msra.mxu0 %v327
    %1514 = vmatprep.subr.mxu0 0.0
    %1515 = vmatpush1.msra.mxu0 %v334
    %1516 = vmatprep.subr.mxu0 0.0
    %1517 = vmatpush1.msra.mxu0 %v341
    %1518 = vmatprep.subr.mxu0 0.0
    %1519 = vmatpush1.msra.mxu0 %v348
    %1520 = vmatprep.subr.mxu0 0.0
    %1521 = vmatpush1.msra.mxu0 %v355
    %1522 = vmatprep.subr.mxu0 0.0
    %1523 = vmatpush1.msra.mxu0 %v362
    %1524 = vmatprep.subr.mxu0 0.0
    %1525 = vmatpush1.msra.mxu0 %v369
    %1526 = vmatprep.subr.mxu0 0.0
    %1527 = vmatpush1.msra.mxu0 %v376
    %1528 = vmatprep.mubr.f32.mxu0 %v148
    %1529 = vmatmul.mubr.f32.gmra.mrb[0].mxu0 %v147
    %v1530 = vpop.f32.mrb[0].mxu0
    %v1531 = vadd.f32 0.0, %v1530
    %v1532 = vpop.f32.mrb[0].mxu0
    %1533 = vdwg.mxu0
    %1534 = vmatprep.subr.mxu0 0.0
    %1535 = vmatpush1.msra.mxu0 %v383
    %1536 = vmatprep.subr.mxu0 0.0
    %1537 = vmatpush1.msra.mxu0 %v390
    %1538 = vmatprep.subr.mxu0 0.0
    %1539 = vmatpush1.msra.mxu0 %v397
    %1540 = vmatprep.subr.mxu0 0.0
    %1541 = vmatpush1.msra.mxu0 %v404
    %1542 = vmatprep.subr.mxu0 0.0
    %1543 = vmatpush1.msra.mxu0 %v411
    %1544 = vmatprep.subr.mxu0 0.0
    %1545 = vmatpush1.msra.mxu0 %v418
    %1546 = vmatprep.subr.mxu0 0.0
    %1547 = vmatpush1.msra.mxu0 %v425
    %1548 = vmatprep.subr.mxu0 0.0
    %1549 = vmatpush1.msra.mxu0 %v432
    %1550 = vmatprep.subr.mxu0 0.0
    %1551 = vmatpush1.msra.mxu0 %v439
    %1552 = vmatprep.subr.mxu0 0.0
    %1553 = vmatpush1.msra.mxu0 %v446
    %1554 = vmatprep.subr.mxu0 0.0
    %1555 = vmatpush1.msra.mxu0 %v453
    %1556 = vmatprep.subr.mxu0 0.0
    %1557 = vmatpush1.msra.mxu0 %v460
    %1558 = vmatprep.subr.mxu0 0.0
    %1559 = vmatpush1.msra.mxu0 %v467
    %1560 = vmatprep.subr.mxu0 0.0
    %1561 = vmatpush1.msra.mxu0 %v474
    %1562 = vmatprep.subr.mxu0 0.0
    %1563 = vmatpush1.msra.mxu0 %v481
    %1564 = vmatprep.subr.mxu0 0.0
    %1565 = vmatpush1.msra.mxu0 %v488
    %1566 = vmatprep.subr.mxu0 0.0
    %1567 = vmatpush1.msra.mxu0 %v495
    %1568 = vmatprep.subr.mxu0 0.0
    %1569 = vmatpush1.msra.mxu0 %v502
    %1570 = vmatprep.subr.mxu0 0.0
    %1571 = vmatpush1.msra.mxu0 %v509
    %1572 = vmatprep.subr.mxu0 0.0
    %1573 = vmatpush1.msra.mxu0 %v516
    %1574 = vmatprep.subr.mxu0 0.0
    %1575 = vmatpush1.msra.mxu0 %v523
    %1576 = vmatprep.subr.mxu0 0.0
    %1577 = vmatpush1.msra.mxu0 %v530
    %1578 = vmatprep.subr.mxu0 0.0
    %1579 = vmatpush1.msra.mxu0 %v537
    %1580 = vmatprep.subr.mxu0 0.0
    %1581 = vmatpush1.msra.mxu0 %v544
    %1582 = vmatprep.subr.mxu0 0.0
    %1583 = vmatpush1.msra.mxu0 %v551
    %1584 = vmatprep.subr.mxu0 0.0
    %1585 = vmatpush1.msra.mxu0 %v558
    %1586 = vmatprep.subr.mxu0 0.0
    %1587 = vmatpush1.msra.mxu0 %v565
    %1588 = vmatprep.subr.mxu0 0.0
    %1589 = vmatpush1.msra.mxu0 %v572
    %1590 = vmatprep.subr.mxu0 0.0
    %1591 = vmatpush1.msra.mxu0 %v579
    %1592 = vmatprep.subr.mxu0 0.0
    %1593 = vmatpush1.msra.mxu0 %v586
    %1594 = vmatprep.subr.mxu0 0.0
    %1595 = vmatpush1.msra.mxu0 %v593
    %1596 = vmatprep.subr.mxu0 0.0
    %1597 = vmatpush1.msra.mxu0 %v600
    %1598 = vmatprep.mubr.f32.mxu0 %v150
    %1599 = vmatmul.mubr.f32.gmra.mrb[0].mxu0 %v149
    %v1600 = vpop.f32.mrb[0].mxu0
    %v1601 = vadd.f32 %v1531, %v1600
    %v1602 = vpop.f32.mrb[0].mxu0
    %1603 = vdwg.mxu0
    %1604 = vmatprep.subr.mxu0 0.0
    %1605 = vmatpush1.msra.mxu0 %v607
    %1606 = vmatprep.subr.mxu0 0.0
    %1607 = vmatpush1.msra.mxu0 %v614
    %1608 = vmatprep.subr.mxu0 0.0
    %1609 = vmatpush1.msra.mxu0 %v621
    %1610 = vmatprep.subr.mxu0 0.0
    %1611 = vmatpush1.msra.mxu0 %v628
    %1612 = vmatprep.subr.mxu0 0.0
    %1613 = vmatpush1.msra.mxu0 %v635
    %1614 = vmatprep.subr.mxu0 0.0
    %1615 = vmatpush1.msra.mxu0 %v642
    %1616 = vmatprep.subr.mxu0 0.0
    %1617 = vmatpush1.msra.mxu0 %v649
    %1618 = vmatprep.subr.mxu0 0.0
    %1619 = vmatpush1.msra.mxu0 %v656
    %1620 = vmatprep.subr.mxu0 0.0
    %1621 = vmatpush1.msra.mxu0 %v663
    %1622 = vmatprep.subr.mxu0 0.0
    %1623 = vmatpush1.msra.mxu0 %v670
    %1624 = vmatprep.subr.mxu0 0.0
    %1625 = vmatpush1.msra.mxu0 %v677
    %1626 = vmatprep.subr.mxu0 0.0
    %1627 = vmatpush1.msra.mxu0 %v684
    %1628 = vmatprep.subr.mxu0 0.0
    %1629 = vmatpush1.msra.mxu0 %v691
    %1630 = vmatprep.subr.mxu0 0.0
    %1631 = vmatpush1.msra.mxu0 %v698
    %1632 = vmatprep.subr.mxu0 0.0
    %1633 = vmatpush1.msra.mxu0 %v705
    %1634 = vmatprep.subr.mxu0 0.0
    %1635 = vmatpush1.msra.mxu0 %v712
    %1636 = vmatprep.subr.mxu0 0.0
    %1637 = vmatpush1.msra.mxu0 %v719
    %1638 = vmatprep.subr.mxu0 0.0
    %1639 = vmatpush1.msra.mxu0 %v726
    %1640 = vmatprep.subr.mxu0 0.0
    %1641 = vmatpush1.msra.mxu0 %v733
    %1642 = vmatprep.subr.mxu0 0.0
    %1643 = vmatpush1.msra.mxu0 %v740
    %1644 = vmatprep.subr.mxu0 0.0
    %1645 = vmatpush1.msra.mxu0 %v747
    %1646 = vmatprep.subr.mxu0 0.0
    %1647 = vmatpush1.msra.mxu0 %v754
    %1648 = vmatprep.subr.mxu0 0.0
    %1649 = vmatpush1.msra.mxu0 %v761
    %1650 = vmatprep.subr.mxu0 0.0
    %1651 = vmatpush1.msra.mxu0 %v768
    %1652 = vmatprep.subr.mxu0 0.0
    %1653 = vmatpush1.msra.mxu0 %v775
    %1654 = vmatprep.subr.mxu0 0.0
    %1655 = vmatpush1.msra.mxu0 %v782
    %1656 = vmatprep.subr.mxu0 0.0
    %1657 = vmatpush1.msra.mxu0 %v789
    %1658 = vmatprep.subr.mxu0 0.0
    %1659 = vmatpush1.msra.mxu0 %v796
    %1660 = vmatprep.subr.mxu0 0.0
    %1661 = vmatpush1.msra.mxu0 %v803
    %1662 = vmatprep.subr.mxu0 0.0
    %1663 = vmatpush1.msra.mxu0 %v810
    %1664 = vmatprep.subr.mxu0 0.0
    %1665 = vmatpush1.msra.mxu0 %v817
    %1666 = vmatprep.subr.mxu0 0.0
    %1667 = vmatpush1.msra.mxu0 %v824
    %1668 = vmatprep.mubr.f32.mxu0 %v152
    %1669 = vmatmul.mubr.f32.gmra.mrb[0].mxu0 %v151
    %v1670 = vpop.f32.mrb[0].mxu0
    %v1671 = vadd.f32 %v1601, %v1670
    %v1672 = vpop.f32.mrb[0].mxu0
    %1673 = vdwg.mxu0
    %v1674 = vmul.f32 %v1036, %v1249
    %v1675 = vmul.f32 %v1247, %v1460
    %v1676 = vld [vmem:[%s4] sm:$0xff]
    %v1677 = vld [vmem:[%s4 + $0x8] sm:$0xff]
    %v1678 = vld [vmem:[%s4 + $0x10] sm:$0xff]
    %v1679 = vld [vmem:[%s4 + $0x18] sm:$0xff]
    %v1680 = vld [vmem:[%s4 + $0x20] sm:$0xff]
    %v1681 = vld [vmem:[%s4 + $0x28] sm:$0xff]
    %v1682 = vld [vmem:[%s4 + $0x30] sm:$0xff]
    %v1683 = vld [vmem:[%s4 + $0x38] sm:$0xff]
    %v1684 = vld [vmem:[%s4 + $0x40] sm:$0xff]
    %v1685 = vld [vmem:[%s4 + $0x48] sm:$0xff]
    %v1686 = vld [vmem:[%s4 + $0x50] sm:$0xff]
    %v1687 = vld [vmem:[%s4 + $0x58] sm:$0xff]
    %v1688 = vld [vmem:[%s4 + $0x60] sm:$0xff]
    %v1689 = vld [vmem:[%s4 + $0x68] sm:$0xff]
    %v1690 = vld [vmem:[%s4 + $0x70] sm:$0xff]
    %v1691 = vld [vmem:[%s4 + $0x78] sm:$0xff]
    %v1692 = vld [vmem:[%s4 + $0x80] sm:$0xff]
    %v1693 = vld [vmem:[%s4 + $0x88] sm:$0xff]
    %v1694 = vld [vmem:[%s4 + $0x90] sm:$0xff]
    %v1695 = vld [vmem:[%s4 + $0x98] sm:$0xff]
    %v1696 = vld [vmem:[%s4 + $0xa0] sm:$0xff]
    %v1697 = vld [vmem:[%s4 + $0xa8] sm:$0xff]
    %v1698 = vld [vmem:[%s4 + $0xb0] sm:$0xff]
    %v1699 = vld [vmem:[%s4 + $0xb8] sm:$0xff]
    %v1700 = vld [vmem:[%s4 + $0xc0] sm:$0xff]
    %v1701 = vld [vmem:[%s4 + $0xc8] sm:$0xff]
    %v1702 = vld [vmem:[%s4 + $0xd0] sm:$0xff]
    %v1703 = vld [vmem:[%s4 + $0xd8] sm:$0xff]
    %v1704 = vld [vmem:[%s4 + $0xe0] sm:$0xff]
    %v1705 = vld [vmem:[%s4 + $0xe8] sm:$0xff]
    %v1706 = vld [vmem:[%s4 + $0xf0] sm:$0xff]
    %v1707 = vld [vmem:[%s4 + $0xf8] sm:$0xff]
    %1708 = vmatprep.subr.mxu0 0.0
    %1709 = vmatpush1.msra.mxu0 %v1676
    %1710 = vmatprep.subr.mxu0 0.0
    %1711 = vmatpush1.msra.mxu0 %v1677
    %1712 = vmatprep.subr.mxu0 0.0
    %1713 = vmatpush1.msra.mxu0 %v1678
    %1714 = vmatprep.subr.mxu0 0.0
    %1715 = vmatpush1.msra.mxu0 %v1679
    %1716 = vmatprep.subr.mxu0 0.0
    %1717 = vmatpush1.msra.mxu0 %v1680
    %1718 = vmatprep.subr.mxu0 0.0
    %1719 = vmatpush1.msra.mxu0 %v1681
    %1720 = vmatprep.subr.mxu0 0.0
    %1721 = vmatpush1.msra.mxu0 %v1682
    %1722 = vmatprep.subr.mxu0 0.0
    %1723 = vmatpush1.msra.mxu0 %v1683
    %1724 = vmatprep.subr.mxu0 0.0
    %1725 = vmatpush1.msra.mxu0 %v1684
    %1726 = vmatprep.subr.mxu0 0.0
    %1727 = vmatpush1.msra.mxu0 %v1685
    %1728 = vmatprep.subr.mxu0 0.0
    %1729 = vmatpush1.msra.mxu0 %v1686
    %1730 = vmatprep.subr.mxu0 0.0
    %1731 = vmatpush1.msra.mxu0 %v1687
    %1732 = vmatprep.subr.mxu0 0.0
    %1733 = vmatpush1.msra.mxu0 %v1688
    %1734 = vmatprep.subr.mxu0 0.0
    %1735 = vmatpush1.msra.mxu0 %v1689
    %1736 = vmatprep.subr.mxu0 0.0
    %1737 = vmatpush1.msra.mxu0 %v1690
    %1738 = vmatprep.subr.mxu0 0.0
    %1739 = vmatpush1.msra.mxu0 %v1691
    %1740 = vmatprep.subr.mxu0 0.0
    %1741 = vmatpush1.msra.mxu0 %v1692
    %1742 = vmatprep.subr.mxu0 0.0
    %1743 = vmatpush1.msra.mxu0 %v1693
    %1744 = vmatprep.subr.mxu0 0.0
    %1745 = vmatpush1.msra.mxu0 %v1694
    %1746 = vmatprep.subr.mxu0 0.0
    %1747 = vmatpush1.msra.mxu0 %v1695
    %1748 = vmatprep.subr.mxu0 0.0
    %1749 = vmatpush1.msra.mxu0 %v1696
    %1750 = vmatprep.subr.mxu0 0.0
    %1751 = vmatpush1.msra.mxu0 %v1697
    %1752 = vmatprep.subr.mxu0 0.0
    %1753 = vmatpush1.msra.mxu0 %v1698
    %1754 = vmatprep.subr.mxu0 0.0
    %1755 = vmatpush1.msra.mxu0 %v1699
    %1756 = vmatprep.subr.mxu0 0.0
    %1757 = vmatpush1.msra.mxu0 %v1700
    %1758 = vmatprep.subr.mxu0 0.0
    %1759 = vmatpush1.msra.mxu0 %v1701
    %1760 = vmatprep.subr.mxu0 0.0
    %1761 = vmatpush1.msra.mxu0 %v1702
    %1762 = vmatprep.subr.mxu0 0.0
    %1763 = vmatpush1.msra.mxu0 %v1703
    %1764 = vmatprep.subr.mxu0 0.0
    %1765 = vmatpush1.msra.mxu0 %v1704
    %1766 = vmatprep.subr.mxu0 0.0
    %1767 = vmatpush1.msra.mxu0 %v1705
    %1768 = vmatprep.subr.mxu0 0.0
    %1769 = vmatpush1.msra.mxu0 %v1706
    %1770 = vmatprep.subr.mxu0 0.0
    %1771 = vmatpush1.msra.mxu0 %v1707
    %1772 = vmatprep.mubr.f32.mxu0 %v1675
    %1773 = vmatmul.mubr.f32.gmra.mrb[0].mxu0 %v1674
    %v1774 = vpop.f32.mrb[0].mxu0
    %v1775 = vadd.f32 0.0, %v1774
    %v1776 = vpop.f32.mrb[0].mxu0
    %1777 = vdwg.mxu0
    %v1778 = vmul.f32 %v1775, 1.442695
    %v1779 = vpow.pop %v1778
    %v1780 = vld [vmem:[#allocation7] sm:$0xff]
    %v1781 = vld [vmem:[#allocation7 + $0x8] sm:$0xff]
    %vm1782 = vcmask 130048
    %v1784 = vsel %vm1782, %v1779, 0
    %1786 = vmatprep.subr.mxu0 0.0
    %1787 = vmatpush1.msra.mxu0 %v1780
    %1788 = vmatprep.subr.mxu0 0.0
    %1789 = vmatpush1.msra.mxu0 %v1781
    %1790 = vmatprep.subr.mxu0 0.0
    %1791 = vmatpush1.msra.mxu0 0.0
    %1792 = vmatprep.subr.mxu0 0.0
    %1793 = vmatpush1.msra.mxu0 0.0
    %1794 = vmatprep.subr.mxu0 0.0
    %1795 = vmatpush1.msra.mxu0 0.0
    %1796 = vmatprep.subr.mxu0 0.0
    %1797 = vmatpush1.msra.mxu0 0.0
    %1798 = vmatprep.subr.mxu0 0.0
    %1799 = vmatpush1.msra.mxu0 0.0
    %1800 = vmatprep.subr.mxu0 0.0
    %1801 = vmatpush1.msra.mxu0 0.0
    %1802 = vmatprep.subr.mxu0 0.0
    %1803 = vmatpush1.msra.mxu0 0.0
    %1804 = vmatprep.subr.mxu0 0.0
    %1805 = vmatpush1.msra.mxu0 0.0
    %1806 = vmatprep.subr.mxu0 0.0
    %1807 = vmatpush1.msra.mxu0 0.0
    %1808 = vmatprep.subr.mxu0 0.0
    %1809 = vmatpush1.msra.mxu0 0.0
    %1810 = vmatprep.subr.mxu0 0.0
    %1811 = vmatpush1.msra.mxu0 0.0
    %1812 = vmatprep.subr.mxu0 0.0
    %1813 = vmatpush1.msra.mxu0 0.0
    %1814 = vmatprep.subr.mxu0 0.0
    %1815 = vmatpush1.msra.mxu0 0.0
    %1816 = vmatprep.subr.mxu0 0.0
    %1817 = vmatpush1.msra.mxu0 0.0
    %1818 = vmatprep.subr.mxu0 0.0
    %1819 = vmatpush1.msra.mxu0 0.0
    %1820 = vmatprep.subr.mxu0 0.0
    %1821 = vmatpush1.msra.mxu0 0.0
    %1822 = vmatprep.subr.mxu0 0.0
    %1823 = vmatpush1.msra.mxu0 0.0
    %1824 = vmatprep.subr.mxu0 0.0
    %1825 = vmatpush1.msra.mxu0 0.0
    %1826 = vmatprep.subr.mxu0 0.0
    %1827 = vmatpush1.msra.mxu0 0.0
    %1828 = vmatprep.subr.mxu0 0.0
    %1829 = vmatpush1.msra.mxu0 0.0
    %1830 = vmatprep.subr.mxu0 0.0
    %1831 = vmatpush1.msra.mxu0 0.0
    %1832 = vmatprep.subr.mxu0 0.0
    %1833 = vmatpush1.msra.mxu0 0.0
    %1834 = vmatprep.subr.mxu0 0.0
    %1835 = vmatpush1.msra.mxu0 0.0
    %1836 = vmatprep.subr.mxu0 0.0
    %1837 = vmatpush1.msra.mxu0 0.0
    %1838 = vmatprep.subr.mxu0 0.0
    %1839 = vmatpush1.msra.mxu0 0.0
    %1840 = vmatprep.subr.mxu0 0.0
    %1841 = vmatpush1.msra.mxu0 0.0
    %1842 = vmatprep.subr.mxu0 0.0
    %1843 = vmatpush1.msra.mxu0 0.0
    %1844 = vmatprep.subr.mxu0 0.0
    %1845 = vmatpush1.msra.mxu0 0.0
    %1846 = vmatprep.subr.mxu0 0.0
    %1847 = vmatpush1.msra.mxu0 0.0
    %1848 = vmatprep.subr.mxu0 0.0
    %1849 = vmatpush1.msra.mxu0 0.0
    %1850 = vmatprep.mubr.f32.mxu0 0.0
    %1851 = vmatmul.mubr.f32.gmra.mrb[0].mxu0 %v1784
    %v1852 = vpop.f32.mrb[0].mxu0
    %v1853 = vadd.f32 0.0, %v1852
    %v1854 = vpop.f32.mrb[0].mxu0
    %1855 = vdwg.mxu0
    %v1856 = vrcp.pop %v1853
    %v1857 = vmul.f32 %v1779, %v1856
    %v1858 = vld [vmem:[#allocation9] sm:$0xff]
    %v1859 = vld [vmem:[#allocation9 + $0x8] sm:$0xff]
    %v1860 = vld [vmem:[#allocation9 + $0x10] sm:$0xff]
    %v1861 = vld [vmem:[#allocation9 + $0x18] sm:$0xff]
    %v1863 = vsel %vm1782, %v1857, 0
    %1865 = vmatprep.subr.mxu0 %v1859
    %1866 = vmatpush1.msra.mxu0 %v1858
    %1867 = vmatprep.subr.mxu0 %v1861
    %1868 = vmatpush1.msra.mxu0 %v1860
    %1869 = vmatprep.subr.mxu0 0.0
    %1870 = vmatpush1.msra.mxu0 0.0
    %1871 = vmatprep.subr.mxu0 0.0
    %1872 = vmatpush1.msra.mxu0 0.0
    %1873 = vmatprep.subr.mxu0 0.0
    %1874 = vmatpush1.msra.mxu0 0.0
    %1875 = vmatprep.subr.mxu0 0.0
    %1876 = vmatpush1.msra.mxu0 0.0
    %1877 = vmatprep.subr.mxu0 0.0
    %1878 = vmatpush1.msra.mxu0 0.0
    %1879 = vmatprep.subr.mxu0 0.0
    %1880 = vmatpush1.msra.mxu0 0.0
    %1881 = vmatprep.subr.mxu0 0.0
    %1882 = vmatpush1.msra.mxu0 0.0
    %1883 = vmatprep.subr.mxu0 0.0
    %1884 = vmatpush1.msra.mxu0 0.0
    %1885 = vmatprep.subr.mxu0 0.0
    %1886 = vmatpush1.msra.mxu0 0.0
    %1887 = vmatprep.subr.mxu0 0.0
    %1888 = vmatpush1.msra.mxu0 0.0
    %1889 = vmatprep.subr.mxu0 0.0
    %1890 = vmatpush1.msra.mxu0 0.0
    %1891 = vmatprep.subr.mxu0 0.0
    %1892 = vmatpush1.msra.mxu0 0.0
    %1893 = vmatprep.subr.mxu0 0.0
    %1894 = vmatpush1.msra.mxu0 0.0
    %1895 = vmatprep.subr.mxu0 0.0
    %1896 = vmatpush1.msra.mxu0 0.0
    %1897 = vmatprep.subr.mxu0 0.0
    %1898 = vmatpush1.msra.mxu0 0.0
    %1899 = vmatprep.subr.mxu0 0.0
    %1900 = vmatpush1.msra.mxu0 0.0
    %1901 = vmatprep.subr.mxu0 0.0
    %1902 = vmatpush1.msra.mxu0 0.0
    %1903 = vmatprep.subr.mxu0 0.0
    %1904 = vmatpush1.msra.mxu0 0.0
    %1905 = vmatprep.subr.mxu0 0.0
    %1906 = vmatpush1.msra.mxu0 0.0
    %1907 = vmatprep.subr.mxu0 0.0
    %1908 = vmatpush1.msra.mxu0 0.0
    %1909 = vmatprep.subr.mxu0 0.0
    %1910 = vmatpush1.msra.mxu0 0.0
    %1911 = vmatprep.subr.mxu0 0.0
    %1912 = vmatpush1.msra.mxu0 0.0
    %1913 = vmatprep.subr.mxu0 0.0
    %1914 = vmatpush1.msra.mxu0 0.0
    %1915 = vmatprep.subr.mxu0 0.0
    %1916 = vmatpush1.msra.mxu0 0.0
    %1917 = vmatprep.subr.mxu0 0.0
    %1918 = vmatpush1.msra.mxu0 0.0
    %1919 = vmatprep.subr.mxu0 0.0
    %1920 = vmatpush1.msra.mxu0 0.0
    %1921 = vmatprep.subr.mxu0 0.0
    %1922 = vmatpush1.msra.mxu0 0.0
    %1923 = vmatprep.subr.mxu0 0.0
    %1924 = vmatpush1.msra.mxu0 0.0
    %1925 = vmatprep.subr.mxu0 0.0
    %1926 = vmatpush1.msra.mxu0 0.0
    %1927 = vmatprep.subr.mxu0 0.0
    %1928 = vmatpush1.msra.mxu0 0.0
    %1929 = vmatprep.mubr.f32.mxu0 0.0
    %1930 = vmatmul.mubr.f32.gmra.mrb[0].mxu0 %v1863
    %v1931 = vpop.f32.mrb[0].mxu0
    %v1932 = vadd.f32 0.0, %v1931
    %v1933 = vpop.f32.mrb[0].mxu0
    %v1934 = vadd.f32 0.0, %v1933
    %1935 = vdwg.mxu0
    %v1936 = vmul.f32 %v1932, %v1462
    %v1937 = vmul.f32 %v1934, %v1671
    %v1938 = vld [vmem:[%s7] sm:$0xff]
    %v1939 = vld [vmem:[%s7 + $0x8] sm:$0xff]
    %v1940 = vld [vmem:[%s7 + $0x10] sm:$0xff]
    %v1941 = vld [vmem:[%s7 + $0x18] sm:$0xff]
    %v1942 = vld [vmem:[%s7 + $0x20] sm:$0xff]
    %v1943 = vld [vmem:[%s7 + $0x28] sm:$0xff]
    %v1944 = vld [vmem:[%s7 + $0x30] sm:$0xff]
    %v1945 = vld [vmem:[%s7 + $0x38] sm:$0xff]
    %v1946 = vld [vmem:[%s7 + $0x40] sm:$0xff]
    %v1947 = vld [vmem:[%s7 + $0x48] sm:$0xff]
    %v1948 = vld [vmem:[%s7 + $0x50] sm:$0xff]
    %v1949 = vld [vmem:[%s7 + $0x58] sm:$0xff]
    %v1950 = vld [vmem:[%s7 + $0x60] sm:$0xff]
    %v1951 = vld [vmem:[%s7 + $0x68] sm:$0xff]
    %v1952 = vld [vmem:[%s7 + $0x70] sm:$0xff]
    %v1953 = vld [vmem:[%s7 + $0x78] sm:$0xff]
    %v1954 = vld [vmem:[%s7 + $0x80] sm:$0xff]
    %v1955 = vld [vmem:[%s7 + $0x88] sm:$0xff]
    %v1956 = vld [vmem:[%s7 + $0x90] sm:$0xff]
    %v1957 = vld [vmem:[%s7 + $0x98] sm:$0xff]
    %v1958 = vld [vmem:[%s7 + $0xa0] sm:$0xff]
    %v1959 = vld [vmem:[%s7 + $0xa8] sm:$0xff]
    %v1960 = vld [vmem:[%s7 + $0xb0] sm:$0xff]
    %v1961 = vld [vmem:[%s7 + $0xb8] sm:$0xff]
    %v1962 = vld [vmem:[%s7 + $0xc0] sm:$0xff]
    %v1963 = vld [vmem:[%s7 + $0xc8] sm:$0xff]
    %v1964 = vld [vmem:[%s7 + $0xd0] sm:$0xff]
    %v1965 = vld [vmem:[%s7 + $0xd8] sm:$0xff]
    %v1966 = vld [vmem:[%s7 + $0xe0] sm:$0xff]
    %v1967 = vld [vmem:[%s7 + $0xe8] sm:$0xff]
    %v1968 = vld [vmem:[%s7 + $0xf0] sm:$0xff]
    %v1969 = vld [vmem:[%s7 + $0xf8] sm:$0xff]
    %1970 = vmatprep.subr.mxu0 0.0
    %1971 = vmatpush1.msra.mxu0 %v1938
    %1972 = vmatprep.subr.mxu0 0.0
    %1973 = vmatpush1.msra.mxu0 %v1939
    %1974 = vmatprep.subr.mxu0 0.0
    %1975 = vmatpush1.msra.mxu0 %v1940
    %1976 = vmatprep.subr.mxu0 0.0
    %1977 = vmatpush1.msra.mxu0 %v1941
    %1978 = vmatprep.subr.mxu0 0.0
    %1979 = vmatpush1.msra.mxu0 %v1942
    %1980 = vmatprep.subr.mxu0 0.0
    %1981 = vmatpush1.msra.mxu0 %v1943
    %1982 = vmatprep.subr.mxu0 0.0
    %1983 = vmatpush1.msra.mxu0 %v1944
    %1984 = vmatprep.subr.mxu0 0.0
    %1985 = vmatpush1.msra.mxu0 %v1945
    %1986 = vmatprep.subr.mxu0 0.0
    %1987 = vmatpush1.msra.mxu0 %v1946
    %1988 = vmatprep.subr.mxu0 0.0
    %1989 = vmatpush1.msra.mxu0 %v1947
    %1990 = vmatprep.subr.mxu0 0.0
    %1991 = vmatpush1.msra.mxu0 %v1948
    %1992 = vmatprep.subr.mxu0 0.0
    %1993 = vmatpush1.msra.mxu0 %v1949
    %1994 = vmatprep.subr.mxu0 0.0
    %1995 = vmatpush1.msra.mxu0 %v1950
    %1996 = vmatprep.subr.mxu0 0.0
    %1997 = vmatpush1.msra.mxu0 %v1951
    %1998 = vmatprep.subr.mxu0 0.0
    %1999 = vmatpush1.msra.mxu0 %v1952
    %2000 = vmatprep.subr.mxu0 0.0
    %2001 = vmatpush1.msra.mxu0 %v1953
    %2002 = vmatprep.subr.mxu0 0.0
    %2003 = vmatpush1.msra.mxu0 %v1954
    %2004 = vmatprep.subr.mxu0 0.0
    %2005 = vmatpush1.msra.mxu0 %v1955
    %2006 = vmatprep.subr.mxu0 0.0
    %2007 = vmatpush1.msra.mxu0 %v1956
    %2008 = vmatprep.subr.mxu0 0.0
    %2009 = vmatpush1.msra.mxu0 %v1957
    %2010 = vmatprep.subr.mxu0 0.0
    %2011 = vmatpush1.msra.mxu0 %v1958
    %2012 = vmatprep.subr.mxu0 0.0
    %2013 = vmatpush1.msra.mxu0 %v1959
    %2014 = vmatprep.subr.mxu0 0.0
    %2015 = vmatpush1.msra.mxu0 %v1960
    %2016 = vmatprep.subr.mxu0 0.0
    %2017 = vmatpush1.msra.mxu0 %v1961
    %2018 = vmatprep.subr.mxu0 0.0
    %2019 = vmatpush1.msra.mxu0 %v1962
    %2020 = vmatprep.subr.mxu0 0.0
    %2021 = vmatpush1.msra.mxu0 %v1963
    %2022 = vmatprep.subr.mxu0 0.0
    %2023 = vmatpush1.msra.mxu0 %v1964
    %2024 = vmatprep.subr.mxu0 0.0
    %2025 = vmatpush1.msra.mxu0 %v1965
    %2026 = vmatprep.subr.mxu0 0.0
    %2027 = vmatpush1.msra.mxu0 %v1966
    %2028 = vmatprep.subr.mxu0 0.0
    %2029 = vmatpush1.msra.mxu0 %v1967
    %2030 = vmatprep.subr.mxu0 0.0
    %2031 = vmatpush1.msra.mxu0 %v1968
    %2032 = vmatprep.subr.mxu0 0.0
    %2033 = vmatpush1.msra.mxu0 %v1969
    %2034 = vmatprep.mubr.f32.mxu0 %v1937
    %2035 = vmatmul.mubr.f32.gmra.mrb[0].mxu0 %v1936
    %v2036 = vpop.f32.mrb[0].mxu0
    %v2037 = vadd.f32 0.0, %v2036
    %v2038 = vpop.f32.mrb[0].mxu0
    %2039 = vdwg.mxu0
    %v2040 = vadd.f32 %v1034, %v2037
    %v2041 = vmul.f32 %v2040, 0.5
    %v2042 = vld [vmem:[#allocation10] sm:$0xff]
    %v2043 = vld [vmem:[#allocation10 + $0x8] sm:$0xff]
    %v2044 = vld [vmem:[#allocation10 + $0x10] sm:$0xff]
    %v2045 = vld [vmem:[#allocation10 + $0x18] sm:$0xff]
    %v2046 = vld [vmem:[#allocation10 + $0x20] sm:$0xff]
    %v2047 = vld [vmem:[#allocation10 + $0x28] sm:$0xff]
    %v2048 = vld [vmem:[#allocation10 + $0x30] sm:$0xff]
    %v2049 = vld [vmem:[#allocation10 + $0x38] sm:$0xff]
    %vm2050 = vcmask 523264
    %v2052 = vsel %vm2050, %v2041, 0
    %v2055 = vsel %vm2050, %v2042, 0
    %v2058 = vsel %vm2050, %v2043, 0
    %v2061 = vsel %vm2050, %v2044, 0
    %v2064 = vsel %vm2050, %v2045, 0
    %v2067 = vsel %vm2050, %v2046, 0
    %v2070 = vsel %vm2050, %v2047, 0
    %v2073 = vsel %vm2050, %v2048, 0
    %v2076 = vsel %vm2050, %v2049, 0
    %2078 = vmatprep.subr.mxu0 0.0
    %2079 = vmatpush1.xpose.msra.mxu0 %v2055
    %2080 = vmatprep.subr.mxu0 0.0
    %2081 = vmatpush1.xpose.msra.mxu0 %v2058
    %2082 = vmatprep.subr.mxu0 0.0
    %2083 = vmatpush1.xpose.msra.mxu0 %v2061
    %2084 = vmatprep.subr.mxu0 0.0
    %2085 = vmatpush1.xpose.msra.mxu0 %v2064
    %2086 = vmatprep.subr.mxu0 0.0
    %2087 = vmatpush1.xpose.msra.mxu0 %v2067
    %2088 = vmatprep.subr.mxu0 0.0
    %2089 = vmatpush1.xpose.msra.mxu0 %v2070
    %2090 = vmatprep.subr.mxu0 0.0
    %2091 = vmatpush1.xpose.msra.mxu0 %v2073
    %2092 = vmatprep.subr.mxu0 0.0
    %2093 = vmatpush1.xpose.msra.mxu0 %v2076
    %2094 = vmatprep.subr.mxu0 0.0
    %2095 = vmatpush1.xpose.msra.mxu0 0.0
    %2096 = vmatprep.subr.mxu0 0.0
    %2097 = vmatpush1.xpose.msra.mxu0 0.0
    %2098 = vmatprep.subr.mxu0 0.0
    %2099 = vmatpush1.xpose.msra.mxu0 0.0
    %2100 = vmatprep.subr.mxu0 0.0
    %2101 = vmatpush1.xpose.msra.mxu0 0.0
    %2102 = vmatprep.subr.mxu0 0.0
    %2103 = vmatpush1.xpose.msra.mxu0 0.0
    %2104 = vmatprep.subr.mxu0 0.0
    %2105 = vmatpush1.xpose.msra.mxu0 0.0
    %2106 = vmatprep.subr.mxu0 0.0
    %2107 = vmatpush1.xpose.msra.mxu0 0.0
    %2108 = vmatprep.subr.mxu0 0.0
    %2109 = vmatpush1.xpose.msra.mxu0 0.0
    %2110 = vmatprep.subr.mxu0 0.0
    %2111 = vmatpush1.xpose.msra.mxu0 0.0
    %2112 = vmatprep.subr.mxu0 0.0
    %2113 = vmatpush1.xpose.msra.mxu0 0.0
    %2114 = vmatprep.subr.mxu0 0.0
    %2115 = vmatpush1.xpose.msra.mxu0 0.0
    %2116 = vmatprep.subr.mxu0 0.0
    %2117 = vmatpush1.xpose.msra.mxu0 0.0
    %2118 = vmatprep.subr.mxu0 0.0
    %2119 = vmatpush1.xpose.msra.mxu0 0.0
    %2120 = vmatprep.subr.mxu0 0.0
    %2121 = vmatpush1.xpose.msra.mxu0 0.0
    %2122 = vmatprep.subr.mxu0 0.0
    %2123 = vmatpush1.xpose.msra.mxu0 0.0
    %2124 = vmatprep.subr.mxu0 0.0
    %2125 = vmatpush1.xpose.msra.mxu0 0.0
    %2126 = vmatprep.subr.mxu0 0.0
    %2127 = vmatpush1.xpose.msra.mxu0 0.0
    %2128 = vmatprep.subr.mxu0 0.0
    %2129 = vmatpush1.xpose.msra.mxu0 0.0
    %2130 = vmatprep.subr.mxu0 0.0
    %2131 = vmatpush1.xpose.msra.mxu0 0.0
    %2132 = vmatprep.subr.mxu0 0.0
    %2133 = vmatpush1.xpose.msra.mxu0 0.0
    %2134 = vmatprep.subr.mxu0 0.0
    %2135 = vmatpush1.xpose.msra.mxu0 0.0
    %2136 = vmatprep.subr.mxu0 0.0
    %2137 = vmatpush1.xpose.msra.mxu0 0.0
    %2138 = vmatprep.subr.mxu0 0.0
    %2139 = vmatpush1.xpose.msra.mxu0 0.0
    %2140 = vmatprep.subr.mxu0 0.0
    %2141 = vmatpush1.xpose.msra.mxu0 0.0
    %2142 = vmatprep.mubr.f32.mxu0 0.0
    %2143 = vmatmul.mubr.f32.gmra.mrb[0].mxu0 %v2052
    %v2144 = vpop.f32.mrb[0].mxu0
    %v2145 = vadd.f32 0.0, %v2144
    %v2146 = vpop.f32.mrb[0].mxu0
    %2147 = vdwg.mxu0
    %v2148 = vmax.f32 %v2145, 0.0
    %v2149 = vld [vmem:[#allocation12] sm:$0xff]
    %v2150 = vld [vmem:[#allocation12 + $0x8] sm:$0xff]
    %v2151 = vld [vmem:[#allocation12 + $0x10] sm:$0xff]
    %v2152 = vld [vmem:[#allocation12 + $0x18] sm:$0xff]
    %v2154 = vsel %vm2050, %v2148, 0
    %v2157 = vsel %vm2050, %v2149, 0
    %v2160 = vsel %vm2050, %v2150, 0
    %v2163 = vsel %vm2050, %v2151, 0
    %v2166 = vsel %vm2050, %v2152, 0
    %2168 = vmatprep.subr.mxu0 0.0
    %2169 = vmatpush1.xpose.msra.mxu0 %v2157
    %2170 = vmatprep.subr.mxu0 0.0
    %2171 = vmatpush1.xpose.msra.mxu0 %v2160
    %2172 = vmatprep.subr.mxu0 0.0
    %2173 = vmatpush1.xpose.msra.mxu0 %v2163
    %2174 = vmatprep.subr.mxu0 0.0
    %2175 = vmatpush1.xpose.msra.mxu0 %v2166
    %2176 = vmatprep.subr.mxu0 0.0
    %2177 = vmatpush1.xpose.msra.mxu0 0.0
    %2178 = vmatprep.subr.mxu0 0.0
    %2179 = vmatpush1.xpose.msra.mxu0 0.0
    %2180 = vmatprep.subr.mxu0 0.0
    %2181 = vmatpush1.xpose.msra.mxu0 0.0
    %2182 = vmatprep.subr.mxu0 0.0
    %2183 = vmatpush1.xpose.msra.mxu0 0.0
    %2184 = vmatprep.subr.mxu0 0.0
    %2185 = vmatpush1.xpose.msra.mxu0 0.0
    %2186 = vmatprep.subr.mxu0 0.0
    %2187 = vmatpush1.xpose.msra.mxu0 0.0
    %2188 = vmatprep.subr.mxu0 0.0
    %2189 = vmatpush1.xpose.msra.mxu0 0.0
    %2190 = vmatprep.subr.mxu0 0.0
    %2191 = vmatpush1.xpose.msra.mxu0 0.0
    %2192 = vmatprep.subr.mxu0 0.0
    %2193 = vmatpush1.xpose.msra.mxu0 0.0
    %2194 = vmatprep.subr.mxu0 0.0
    %2195 = vmatpush1.xpose.msra.mxu0 0.0
    %2196 = vmatprep.subr.mxu0 0.0
    %2197 = vmatpush1.xpose.msra.mxu0 0.0
    %2198 = vmatprep.subr.mxu0 0.0
    %2199 = vmatpush1.xpose.msra.mxu0 0.0
    %2200 = vmatprep.subr.mxu0 0.0
    %2201 = vmatpush1.xpose.msra.mxu0 0.0
    %2202 = vmatprep.subr.mxu0 0.0
    %2203 = vmatpush1.xpose.msra.mxu0 0.0
    %2204 = vmatprep.subr.mxu0 0.0
    %2205 = vmatpush1.xpose.msra.mxu0 0.0
    %2206 = vmatprep.subr.mxu0 0.0
    %2207 = vmatpush1.xpose.msra.mxu0 0.0
    %2208 = vmatprep.subr.mxu0 0.0
    %2209 = vmatpush1.xpose.msra.mxu0 0.0
    %2210 = vmatprep.subr.mxu0 0.0
    %2211 = vmatpush1.xpose.msra.mxu0 0.0
    %2212 = vmatprep.subr.mxu0 0.0
    %2213 = vmatpush1.xpose.msra.mxu0 0.0
    %2214 = vmatprep.subr.mxu0 0.0
    %2215 = vmatpush1.xpose.msra.mxu0 0.0
    %2216 = vmatprep.subr.mxu0 0.0
    %2217 = vmatpush1.xpose.msra.mxu0 0.0
    %2218 = vmatprep.subr.mxu0 0.0
    %2219 = vmatpush1.xpose.msra.mxu0 0.0
    %2220 = vmatprep.subr.mxu0 0.0
    %2221 = vmatpush1.xpose.msra.mxu0 0.0
    %2222 = vmatprep.subr.mxu0 0.0
    %2223 = vmatpush1.xpose.msra.mxu0 0.0
    %2224 = vmatprep.subr.mxu0 0.0
    %2225 = vmatpush1.xpose.msra.mxu0 0.0
    %2226 = vmatprep.subr.mxu0 0.0
    %2227 = vmatpush1.xpose.msra.mxu0 0.0
    %2228 = vmatprep.subr.mxu0 0.0
    %2229 = vmatpush1.xpose.msra.mxu0 0.0
    %2230 = vmatprep.subr.mxu0 0.0
    %2231 = vmatpush1.xpose.msra.mxu0 0.0
    %2232 = vmatprep.mubr.f32.mxu0 0.0
    %2233 = vmatmul.mubr.f32.gmra.mrb[0].mxu0 %v2154
    %v2234 = vpop.f32.mrb[0].mxu0
    %v2235 = vadd.f32 0.0, %v2234
    %v2236 = vpop.f32.mrb[0].mxu0
    %2237 = vdwg.mxu0
    %v2238 = vmul.f32 %v2235, %v2235
    %vm2239 = vcmask 261120
    %v2240 = vsel %vm2239, %v2238, 0.0
    %2241 = vadd.xlane.f32.xlu0 %v2240
    %v2242 = vpop.xlane.xlu0 %2241
    %v2243 = vadd.f32 %v2242, 1e-24
    %v2244 = vrsqrt.pop %v2243
    %v2245 = vmul.f32 %v2235, %v2244
    %v2247 = vrot.slane %v2245, 2
    %v2248 = vrot.slane %v2245, 4
    %v2249 = vsel %vm2239, %v2247, 0
    %v2251 = vsel %vm2239, %v2248, 0
    %2253 = vmatprep.subr.mxu0 0.0
    %2254 = vmatpush1.xpose.msra.mxu0 %v2251
    %2255 = vmatprep.subr.mxu0 0.0
    %2256 = vmatpush1.xpose.msra.mxu0 0.0
    %2257 = vmatprep.subr.mxu0 0.0
    %2258 = vmatpush1.xpose.msra.mxu0 0.0
    %2259 = vmatprep.subr.mxu0 0.0
    %2260 = vmatpush1.xpose.msra.mxu0 0.0
    %2261 = vmatprep.subr.mxu0 0.0
    %2262 = vmatpush1.xpose.msra.mxu0 0.0
    %2263 = vmatprep.subr.mxu0 0.0
    %2264 = vmatpush1.xpose.msra.mxu0 0.0
    %2265 = vmatprep.subr.mxu0 0.0
    %2266 = vmatpush1.xpose.msra.mxu0 0.0
    %2267 = vmatprep.subr.mxu0 0.0
    %2268 = vmatpush1.xpose.msra.mxu0 0.0
    %2269 = vmatprep.subr.mxu0 0.0
    %2270 = vmatpush1.xpose.msra.mxu0 0.0
    %2271 = vmatprep.subr.mxu0 0.0
    %2272 = vmatpush1.xpose.msra.mxu0 0.0
    %2273 = vmatprep.subr.mxu0 0.0
    %2274 = vmatpush1.xpose.msra.mxu0 0.0
    %2275 = vmatprep.subr.mxu0 0.0
    %2276 = vmatpush1.xpose.msra.mxu0 0.0
    %2277 = vmatprep.subr.mxu0 0.0
    %2278 = vmatpush1.xpose.msra.mxu0 0.0
    %2279 = vmatprep.subr.mxu0 0.0
    %2280 = vmatpush1.xpose.msra.mxu0 0.0
    %2281 = vmatprep.subr.mxu0 0.0
    %2282 = vmatpush1.xpose.msra.mxu0 0.0
    %2283 = vmatprep.subr.mxu0 0.0
    %2284 = vmatpush1.xpose.msra.mxu0 0.0
    %2285 = vmatprep.subr.mxu0 0.0
    %2286 = vmatpush1.xpose.msra.mxu0 0.0
    %2287 = vmatprep.subr.mxu0 0.0
    %2288 = vmatpush1.xpose.msra.mxu0 0.0
    %2289 = vmatprep.subr.mxu0 0.0
    %2290 = vmatpush1.xpose.msra.mxu0 0.0
    %2291 = vmatprep.subr.mxu0 0.0
    %2292 = vmatpush1.xpose.msra.mxu0 0.0
    %2293 = vmatprep.subr.mxu0 0.0
    %2294 = vmatpush1.xpose.msra.mxu0 0.0
    %2295 = vmatprep.subr.mxu0 0.0
    %2296 = vmatpush1.xpose.msra.mxu0 0.0
    %2297 = vmatprep.subr.mxu0 0.0
    %2298 = vmatpush1.xpose.msra.mxu0 0.0
    %2299 = vmatprep.subr.mxu0 0.0
    %2300 = vmatpush1.xpose.msra.mxu0 0.0
    %2301 = vmatprep.subr.mxu0 0.0
    %2302 = vmatpush1.xpose.msra.mxu0 0.0
    %2303 = vmatprep.subr.mxu0 0.0
    %2304 = vmatpush1.xpose.msra.mxu0 0.0
    %2305 = vmatprep.subr.mxu0 0.0
    %2306 = vmatpush1.xpose.msra.mxu0 0.0
    %2307 = vmatprep.subr.mxu0 0.0
    %2308 = vmatpush1.xpose.msra.mxu0 0.0
    %2309 = vmatprep.subr.mxu0 0.0
    %2310 = vmatpush1.xpose.msra.mxu0 0.0
    %2311 = vmatprep.subr.mxu0 0.0
    %2312 = vmatpush1.xpose.msra.mxu0 0.0
    %2313 = vmatprep.subr.mxu0 0.0
    %2314 = vmatpush1.xpose.msra.mxu0 0.0
    %2315 = vmatprep.subr.mxu0 0.0
    %2316 = vmatpush1.xpose.msra.mxu0 0.0
    %2317 = vmatprep.mubr.f32.mxu0 0.0
    %2318 = vmatmul.mubr.f32.gmra.mrb[0].mxu0 %v2249
    %v2319 = vpop.f32.mrb[0].mxu0
    %v2320 = vadd.f32 0.0, %v2319
    %v2321 = vpop.f32.mrb[0].mxu0
    %2322 = vdwg.mxu0
    %v2323 = vmul.f32 %v2320, 14.285714
    %v2324 = vld [vmem:[#allocation2] sm:$0xff]
    %v2325 = vld [vmem:[#allocation2 + $0x8] sm:$0x3]
    %v2326 = vld [vmem:[#allocation6] sm:$0xff]
    %v2327 = vld [vmem:[#allocation6 + $0x8] sm:$0xff]
    %v2328 = vld [vmem:[#allocation6 + $0x10] sm:$0xff]
    %v2329 = vld [vmem:[#allocation6 + $0x18] sm:$0xff]
    %v2330 = vld [vmem:[#allocation6 + $0x20] sm:$0xff]
    %v2331 = vld [vmem:[#allocation6 + $0x28] sm:$0xff]
    %v2332 = vld [vmem:[#allocation6 + $0x30] sm:$0xff]
    %v2333 = vld [vmem:[#allocation6 + $0x38] sm:$0xff]
    %vm2334 = vcmask 629760
    %v2336 = vsel %vm2334, %v2324, 0
    %v2339 = vsel %vm2334, %v2325, 0
    %v2342 = vsel %vm2334, %v2326, 0
    %v2345 = vsel %vm2334, %v2327, 0
    %v2348 = vsel %vm2334, %v2328, 0
    %v2351 = vsel %vm2334, %v2329, 0
    %v2354 = vsel %vm2334, %v2330, 0
    %v2357 = vsel %vm2334, %v2331, 0
    %v2360 = vsel %vm2334, %v2332, 0
    %v2363 = vsel %vm2334, %v2333, 0
    %2365 = vmatprep.subr.mxu0 0.0
    %2366 = vmatpush1.xpose.msra.mxu0 %v2342
    %2367 = vmatprep.subr.mxu0 0.0
    %2368 = vmatpush1.xpose.msra.mxu0 %v2345
    %2369 = vmatprep.subr.mxu0 0.0
    %2370 = vmatpush1.xpose.msra.mxu0 %v2348
    %2371 = vmatprep.subr.mxu0 0.0
    %2372 = vmatpush1.xpose.msra.mxu0 %v2351
    %2373 = vmatprep.subr.mxu0 0.0
    %2374 = vmatpush1.xpose.msra.mxu0 %v2354
    %2375 = vmatprep.subr.mxu0 0.0
    %2376 = vmatpush1.xpose.msra.mxu0 %v2357
    %2377 = vmatprep.subr.mxu0 0.0
    %2378 = vmatpush1.xpose.msra.mxu0 %v2360
    %2379 = vmatprep.subr.mxu0 0.0
    %2380 = vmatpush1.xpose.msra.mxu0 %v2363
    %2381 = vmatprep.subr.mxu0 0.0
    %2382 = vmatpush1.xpose.msra.mxu0 0.0
    %2383 = vmatprep.subr.mxu0 0.0
    %2384 = vmatpush1.xpose.msra.mxu0 0.0
    %2385 = vmatprep.subr.mxu0 0.0
    %2386 = vmatpush1.xpose.msra.mxu0 0.0
    %2387 = vmatprep.subr.mxu0 0.0
    %2388 = vmatpush1.xpose.msra.mxu0 0.0
    %2389 = vmatprep.subr.mxu0 0.0
    %2390 = vmatpush1.xpose.msra.mxu0 0.0
    %2391 = vmatprep.subr.mxu0 0.0
    %2392 = vmatpush1.xpose.msra.mxu0 0.0
    %2393 = vmatprep.subr.mxu0 0.0
    %2394 = vmatpush1.xpose.msra.mxu0 0.0
    %2395 = vmatprep.subr.mxu0 0.0
    %2396 = vmatpush1.xpose.msra.mxu0 0.0
    %2397 = vmatprep.subr.mxu0 0.0
    %2398 = vmatpush1.xpose.msra.mxu0 0.0
    %2399 = vmatprep.subr.mxu0 0.0
    %2400 = vmatpush1.xpose.msra.mxu0 0.0
    %2401 = vmatprep.subr.mxu0 0.0
    %2402 = vmatpush1.xpose.msra.mxu0 0.0
    %2403 = vmatprep.subr.mxu0 0.0
    %2404 = vmatpush1.xpose.msra.mxu0 0.0
    %2405 = vmatprep.subr.mxu0 0.0
    %2406 = vmatpush1.xpose.msra.mxu0 0.0
    %2407 = vmatprep.subr.mxu0 0.0
    %2408 = vmatpush1.xpose.msra.mxu0 0.0
    %2409 = vmatprep.subr.mxu0 0.0
    %2410 = vmatpush1.xpose.msra.mxu0 0.0
    %2411 = vmatprep.subr.mxu0 0.0
    %2412 = vmatpush1.xpose.msra.mxu0 0.0
    %2413 = vmatprep.subr.mxu0 0.0
    %2414 = vmatpush1.xpose.msra.mxu0 0.0
    %2415 = vmatprep.subr.mxu0 0.0
    %2416 = vmatpush1.xpose.msra.mxu0 0.0
    %2417 = vmatprep.subr.mxu0 0.0
    %2418 = vmatpush1.xpose.msra.mxu0 0.0
    %2419 = vmatprep.subr.mxu0 0.0
    %2420 = vmatpush1.xpose.msra.mxu0 0.0
    %2421 = vmatprep.subr.mxu0 0.0
    %2422 = vmatpush1.xpose.msra.mxu0 0.0
    %2423 = vmatprep.subr.mxu0 0.0
    %2424 = vmatpush1.xpose.msra.mxu0 0.0
    %2425 = vmatprep.subr.mxu0 0.0
    %2426 = vmatpush1.xpose.msra.mxu0 0.0
    %2427 = vmatprep.subr.mxu0 0.0
    %2428 = vmatpush1.xpose.msra.mxu0 0.0
    %2429 = vmatprep.mubr.f32.mxu0 0.0
    %2430 = vmatmul.mubr.f32.gmra.mrb[0].mxu0 %v2336
    %v2431 = vpop.f32.mrb[0].mxu0
    %v2432 = vadd.f32 0.0, %v2431
    %v2433 = vpop.f32.mrb[0].mxu0
    %2434 = vmatprep.mubr.f32.mxu0 0.0
    %2435 = vmatmul.mubr.f32.gmra.mrb[0].mxu0 %v2339
    %v2436 = vpop.f32.mrb[0].mxu0
    %v2437 = vadd.f32 0.0, %v2436
    %v2438 = vpop.f32.mrb[0].mxu0
    %2439 = vdwg.mxu0
    %v2440 = vld [vmem:[#allocation13] sm:$0xff]
    %v2441 = vld [vmem:[#allocation13 + $0x8] sm:$0xff]
    %v2442 = vld [vmem:[#allocation13 + $0x10] sm:$0xf]
    %vm2445 = vcmask 1043456
    %v2446 = vrot.slane %v2432, 4
    %v2447 = vrot.slane %v2437, 4
    %v2448 = vsel %vm2445, %v2446, %v2447
    %v2451 = vsel %vm2445, %v2442, %v2446
    %v2452 = vmul.f32 %v2440, %v2440
    %v2453 = vmul.f32 %v2441, %v2441
    %v2454 = vmul.f32 %v2451, %v2451
    %v2455 = vmul.f32 %v2448, %v2448
    %v2456 = vsel %vm2050, %v2452, 0.0
    %2457 = vadd.xlane.f32.xlu0 %v2456
    %v2458 = vpop.xlane.xlu0 %2457
    %v2459 = vsel %vm2050, %v2453, 0.0
    %2460 = vadd.xlane.f32.xlu0 %v2459
    %v2461 = vpop.xlane.xlu0 %2460
    %v2462 = vsel %vm2050, %v2454, 0.0
    %2463 = vadd.xlane.f32.xlu0 %v2462
    %v2464 = vpop.xlane.xlu0 %2463
    %vm2465 = vcmask 521216
    %v2466 = vsel %vm2465, %v2455, 0.0
    %2467 = vadd.xlane.f32.xlu0 %v2466
    %v2468 = vpop.xlane.xlu0 %2467
    %v2469 = vadd.f32 %v2458, 1e-24
    %v2470 = vadd.f32 %v2461, 1e-24
    %v2471 = vadd.f32 %v2464, 1e-24
    %v2472 = vadd.f32 %v2468, 1e-24
    %v2473 = vrsqrt.pop %v2469
    %v2474 = vrsqrt.pop %v2470
    %v2475 = vrsqrt.pop %v2471
    %v2476 = vrsqrt.pop %v2472
    %v2477 = vmul.f32 %v2440, %v2473
    %v2478 = vmul.f32 %v2441, %v2474
    %v2479 = vmul.f32 %v2451, %v2475
    %v2480 = vmul.f32 %v2448, %v2476
    %v2481 = vmul.f32 %v2041, %v2041
    %v2482 = vsel %vm2050, %v2481, 0.0
    %2483 = vadd.xlane.f32.xlu0 %v2482
    %v2484 = vpop.xlane.xlu0 %2483
    %v2485 = vadd.f32 %v2484, 1e-24
    %v2486 = vrsqrt.pop %v2485
    %v2487 = vmul.f32 %v2041, %v2486
    %v2489 = vsel %vm2050, %v2487, 0
    %v2492 = vsel %vm2050, %v2477, 0
    %v2495 = vsel %vm2050, %v2478, 0
    %v2498 = vsel %vm2050, %v2479, 0
    %v2501 = vsel %vm2050, %v2480, 0
    %2503 = vmatprep.subr.mxu0 0.0
    %2504 = vmatpush1.xpose.msra.mxu0 %v2492
    %2505 = vmatprep.subr.mxu0 0.0
    %2506 = vmatpush1.xpose.msra.mxu0 %v2495
    %2507 = vmatprep.subr.mxu0 0.0
    %2508 = vmatpush1.xpose.msra.mxu0 %v2498
    %2509 = vmatprep.subr.mxu0 0.0
    %2510 = vmatpush1.xpose.msra.mxu0 %v2501
    %2511 = vmatprep.subr.mxu0 0.0
    %2512 = vmatpush1.xpose.msra.mxu0 0.0
    %2513 = vmatprep.subr.mxu0 0.0
    %2514 = vmatpush1.xpose.msra.mxu0 0.0
    %2515 = vmatprep.subr.mxu0 0.0
    %2516 = vmatpush1.xpose.msra.mxu0 0.0
    %2517 = vmatprep.subr.mxu0 0.0
    %2518 = vmatpush1.xpose.msra.mxu0 0.0
    %2519 = vmatprep.subr.mxu0 0.0
    %2520 = vmatpush1.xpose.msra.mxu0 0.0
    %2521 = vmatprep.subr.mxu0 0.0
    %2522 = vmatpush1.xpose.msra.mxu0 0.0
    %2523 = vmatprep.subr.mxu0 0.0
    %2524 = vmatpush1.xpose.msra.mxu0 0.0
    %2525 = vmatprep.subr.mxu0 0.0
    %2526 = vmatpush1.xpose.msra.mxu0 0.0
    %2527 = vmatprep.subr.mxu0 0.0
    %2528 = vmatpush1.xpose.msra.mxu0 0.0
    %2529 = vmatprep.subr.mxu0 0.0
    %2530 = vmatpush1.xpose.msra.mxu0 0.0
    %2531 = vmatprep.subr.mxu0 0.0
    %2532 = vmatpush1.xpose.msra.mxu0 0.0
    %2533 = vmatprep.subr.mxu0 0.0
    %2534 = vmatpush1.xpose.msra.mxu0 0.0
    %2535 = vmatprep.subr.mxu0 0.0
    %2536 = vmatpush1.xpose.msra.mxu0 0.0
    %2537 = vmatprep.subr.mxu0 0.0
    %2538 = vmatpush1.xpose.msra.mxu0 0.0
    %2539 = vmatprep.subr.mxu0 0.0
    %2540 = vmatpush1.xpose.msra.mxu0 0.0
    %2541 = vmatprep.subr.mxu0 0.0
    %2542 = vmatpush1.xpose.msra.mxu0 0.0
    %2543 = vmatprep.subr.mxu0 0.0
    %2544 = vmatpush1.xpose.msra.mxu0 0.0
    %2545 = vmatprep.subr.mxu0 0.0
    %2546 = vmatpush1.xpose.msra.mxu0 0.0
    %2547 = vmatprep.subr.mxu0 0.0
    %2548 = vmatpush1.xpose.msra.mxu0 0.0
    %2549 = vmatprep.subr.mxu0 0.0
    %2550 = vmatpush1.xpose.msra.mxu0 0.0
    %2551 = vmatprep.subr.mxu0 0.0
    %2552 = vmatpush1.xpose.msra.mxu0 0.0
    %2553 = vmatprep.subr.mxu0 0.0
    %2554 = vmatpush1.xpose.msra.mxu0 0.0
    %2555 = vmatprep.subr.mxu0 0.0
    %2556 = vmatpush1.xpose.msra.mxu0 0.0
    %2557 = vmatprep.subr.mxu0 0.0
    %2558 = vmatpush1.xpose.msra.mxu0 0.0
    %2559 = vmatprep.subr.mxu0 0.0
    %2560 = vmatpush1.xpose.msra.mxu0 0.0
    %2561 = vmatprep.subr.mxu0 0.0
    %2562 = vmatpush1.xpose.msra.mxu0 0.0
    %2563 = vmatprep.subr.mxu0 0.0
    %2564 = vmatpush1.xpose.msra.mxu0 0.0
    %2565 = vmatprep.subr.mxu0 0.0
    %2566 = vmatpush1.xpose.msra.mxu0 0.0
    %2567 = vmatprep.mubr.f32.mxu0 0.0
    %2568 = vmatmul.mubr.f32.gmra.mrb[0].mxu0 %v2489
    %v2569 = vpop.f32.mrb[0].mxu0
    %v2570 = vadd.f32 0.0, %v2569
    %v2571 = vpop.f32.mrb[0].mxu0
    %2572 = vdwg.mxu0
    %v2573 = vmul.f32 %v2570, 16.0
    %2575 = vrot.lane.b32.xlu0 %v2323, 30
    %v2576 = vpop.permute.xlu0 %2575
    %vm2578 = vcmask 244736
    %v2579 = vsel %vm2578, %v2573, %v2576
    %v2580 = vsel %vm2239, %v2579, 0.0
    %2581 = vst [vmem:[%s11] sm:$0x3] %v2580
    // Predicated region
    $region78: #{mynet_forward.1} parent=1 // pred_check
      _
    $region79: #{mynet_forward.1} parent=1 // pred_check_branch
      %2583 = sbr.rel (0) target = $region81
    $region80: #{mynet_forward.1} parent=1 // pred_region
      _
    $region81: #{mynet_forward.1} parent=1 // pred_fallthru
      _
    // Predicated region
    $region82: #{mynet_forward.1} parent=1 // pred_check
      _
    $region83: #{mynet_forward.1} parent=1 // pred_check_branch
      %2585 = sbr.rel (0) target = $region85
    $region84: #{mynet_forward.1} parent=1 // pred_region
      _
    $region85: #{mynet_forward.1} parent=1 // pred_fallthru
      _
    %2586 = vsyncpa [#allocation3], 1
    %2587 = vsyncpa [#allocation5], 1
    %2588 = vsyncpa [#allocation8], 1
    %2589 = vsyncpa [#allocation11], 1
    %2590 = vsyncpa [#allocation14], 1

</llo_original>
